<compile_context>
chip_gen: v7x
topology: tpu7x:2x2x1
jax: 0.10.0
libtpu: 0.0.40
codegen_flags: <defaults>
</compile_context>

<pallas_src>
import numpy as np
import jax
import jax.numpy as jnp
from jax.experimental import pallas as pl
from jax.experimental.pallas import tpu as pltpu


# ----------------------------------------------------------------------------
# Fused Pallas kernel: 1x1 conv (VPU) + factored 2-D DFT filter (MXU).
# One grid step == one batch element.
# ----------------------------------------------------------------------------
def _outconv_fused_kernel(x_ref, w_ref, b_ref, ch_ref, sh_ref, cw_ref,
                          sw_ref, mask_ref, o_ref):
    cout, cin = w_ref.shape          # weight lives in SMEM: scalar reads
    H, W = mask_ref.shape

    ch = ch_ref[...]                 # (H, H) cos DFT matrix
    sh = sh_ref[...]                 # (H, H) sin DFT matrix
    cw = cw_ref[...]                 # (W, W)
    sw = sw_ref[...]                 # (W, W)
    mask = mask_ref[...]             # (H, W) real frequency mask
    inv_hw = 1.0 / float(H * W)

    # ---- 1x1 conv: y[o] = sum_i w[o,i] * x[i] + b[o] (unrolled scalar FMAs) --
    y = [jnp.full((H, W), b_ref[o], dtype=jnp.float32) for o in range(cout)]
    for i in range(cin):
        xi = x_ref[0, i].astype(jnp.float32)          # (H, W)
        for o in range(cout):
            y[o] = y[o] + w_ref[o, i] * xi

    # ---- spectral filter: ifft2(fft2(img) * mask).real, factored real DFT ---
    for o in range(cout):
        img = y[o]
        a = jnp.dot(ch, img, preferred_element_type=jnp.float32)   # C_H img
        s = jnp.dot(sh, img, preferred_element_type=jnp.float32)   # S_H img
        # forward fft2: Y = (C_H - iS_H) img (C_W - iS_W)
        yr = (jnp.dot(a, cw, preferred_element_type=jnp.float32)
              - jnp.dot(s, sw, preferred_element_type=jnp.float32))
        yi = -(jnp.dot(a, sw, preferred_element_type=jnp.float32)
               + jnp.dot(s, cw, preferred_element_type=jnp.float32))
        # apply real mask
        zr = yr * mask
        zi = yi * mask
        # inverse fft2, real part: (1/HW) * Re[(C_H+iS_H)(zr+izi)(C_W+iS_W)]
        p = (jnp.dot(ch, zr, preferred_element_type=jnp.float32)
             - jnp.dot(sh, zi, preferred_element_type=jnp.float32))
        q = (jnp.dot(ch, zi, preferred_element_type=jnp.float32)
             + jnp.dot(sh, zr, preferred_element_type=jnp.float32))
        out_o = (jnp.dot(p, cw, preferred_element_type=jnp.float32)
                 - jnp.dot(q, sw, preferred_element_type=jnp.float32)) * inv_hw
        o_ref[0, o] = out_o.astype(o_ref.dtype)


# ----------------------------------------------------------------------------
# Host-side precompute (numpy, trace-time constants)
# ----------------------------------------------------------------------------
def _dft_real_matrices(n):
    """C[m,k]=cos(2*pi*m*k/n), S[m,k]=sin(2*pi*m*k/n); F = C - iS, F^{-1}=(C+iS)/n."""
    idx = np.arange(n)
    ang = 2.0 * np.pi * np.outer(idx, idx) / float(n)
    return (jnp.asarray(np.cos(ang), dtype=jnp.float32),
            jnp.asarray(np.sin(ang), dtype=jnp.float32))


def _k_grid(H, W):
    L = 25.0
    kx = np.fft.fftfreq(H, d=1.0 / (H * 2.0 * np.pi / L))
    ky = np.fft.fftfreq(W, d=1.0 / (W * 2.0 * np.pi / L))
    kxg, kyg = np.meshgrid(kx, ky, indexing="ij")
    return np.sqrt(kxg ** 2 + kyg ** 2)


def _make_mask(H, W, *, inverse_blue_filter, high_pass, k_h, order):
    k = _k_grid(H, W)
    if high_pass:
        mask = np.exp(-k_h / (k + 1e-8))
        mask[0, 0] = 0.0
    elif inverse_blue_filter:
        # `order` is unused in the reference _inverse_blue_filter
        mask = np.ones_like(k)
        nz = k != 0
        mask[nz] = 1.0 / k[nz]
    else:
        # zeroing the DC bin == subtracting the spatial mean
        mask = np.ones((H, W))
        mask[0, 0] = 0.0
    return jnp.asarray(mask, dtype=jnp.float32)


# ----------------------------------------------------------------------------
# OutConv forward
# ----------------------------------------------------------------------------
def out_conv_forward(x, weight, bias, *, inverse_blue_filter=True,
                     high_pass=False, k_h=3.0, order=1.0):
    """x: (B, Cin, H, W) NCHW.  weight: (Cout, Cin).  bias: (Cout,).
    Returns (B, Cout, H, W) NCHW."""
    B, Cin, H, W = x.shape
    Cout = weight.shape[0]

    if not inverse_blue_filter and not high_pass:
        print("no high pass, no blue filter in training")

    ch, sh = _dft_real_matrices(H)
    cw, sw = _dft_real_matrices(W)
    mask = _make_mask(H, W, inverse_blue_filter=inverse_blue_filter,
                      high_pass=high_pass, k_h=k_h, order=order)

    return pl.pallas_call(
        _outconv_fused_kernel,
        out_shape=jax.ShapeDtypeStruct((B, Cout, H, W), x.dtype),
        grid_spec=pltpu.PrefetchScalarGridSpec(
            num_scalar_prefetch=0,
            grid=(B,),
            in_specs=[
                pl.BlockSpec((1, Cin, H, W), lambda b: (b, 0, 0, 0)),      # x
                pl.BlockSpec(memory_space=pltpu.MemorySpace.SMEM),         # weight
                pl.BlockSpec(memory_space=pltpu.MemorySpace.SMEM),         # bias
                pl.BlockSpec((H, H), lambda b: (0, 0)),                    # cos_H
                pl.BlockSpec((H, H), lambda b: (0, 0)),                    # sin_H
                pl.BlockSpec((W, W), lambda b: (0, 0)),                    # cos_W
                pl.BlockSpec((W, W), lambda b: (0, 0)),                    # sin_W
                pl.BlockSpec((H, W), lambda b: (0, 0)),                    # mask
            ],
            out_specs=pl.BlockSpec((1, Cout, H, W), lambda b: (b, 0, 0, 0)),
        ),
        compiler_params=pltpu.CompilerParams(
            dimension_semantics=("parallel",),
        ),
    )(x, weight, bias, ch, sh, cw, sw, mask)


# ----------------------------------------------------------------------------
# Reference (plain JAX, mirrors the PyTorch module) for sanity checking
# ----------------------------------------------------------------------------
def _reference_forward(x, weight, bias, *, inverse_blue_filter=True,
                       high_pass=False, k_h=3.0, order=1.0):
    y = jnp.einsum("bihw,oi->bohw", x, weight) + bias[None, :, None, None]
    H, W = x.shape[-2:]
    if high_pass or inverse_blue_filter:
        mask = _make_mask(H, W, inverse_blue_filter=inverse_blue_filter,
                          high_pass=high_pass, k_h=k_h, order=order)
        return jnp.real(jnp.fft.ifft2(jnp.fft.fft2(y) * mask[None, None]))
    return y - y.mean(axis=(2, 3), keepdims=True)


# ----------------------------------------------------------------------------
if __name__ == "__main__":
    B, Cin, Cout, H, W = 2, 4, 3, 16, 16

    key = jax.random.PRNGKey(0)
    kx_, kw_, kb_ = jax.random.split(key, 3)
    x = jax.random.normal(kx_, (B, Cin, H, W), dtype=jnp.float32)
    # Conv2d(kernel_size=1) parameters: weight (Cout, Cin), bias (Cout,)
    bound = 1.0 / np.sqrt(Cin)
    weight = jax.random.uniform(kw_, (Cout, Cin), minval=-bound, maxval=bound,
                                dtype=jnp.float32)
    bias = jax.random.uniform(kb_, (Cout,), minval=-bound, maxval=bound,
                              dtype=jnp.float32)

    # default path: inverse_blue_filter=True
    out = jax.block_until_ready(out_conv_forward(x, weight, bias))
    ref = _reference_forward(x, weight, bias)
    assert out.shape == (B, Cout, H, W)
    np.testing.assert_allclose(np.asarray(out), np.asarray(ref),
                               rtol=1e-3, atol=1e-3)

    # high-pass path
    out_hp = jax.block_until_ready(
        out_conv_forward(x, weight, bias, inverse_blue_filter=False,
                         high_pass=True, k_h=3.0))
    ref_hp = _reference_forward(x, weight, bias, inverse_blue_filter=False,
                                high_pass=True, k_h=3.0)
    np.testing.assert_allclose(np.asarray(out_hp), np.asarray(ref_hp),
                               rtol=1e-3, atol=1e-3)

    print("KERNEL_OK")
</pallas_src>

<mosaic_0001>
module attributes {stable_mosaic.version = 11 : i64} {
  func.func @_outconv_fused_kernel(%arg0: i32, %arg1: memref<1x4x16x16xf32, #tpu.memory_space<vmem>>, %arg2: memref<3x4xf32, #tpu.memory_space<smem>>, %arg3: memref<3xf32, #tpu.memory_space<smem>>, %arg4: memref<16x16xf32, #tpu.memory_space<vmem>>, %arg5: memref<16x16xf32, #tpu.memory_space<vmem>>, %arg6: memref<16x16xf32, #tpu.memory_space<vmem>>, %arg7: memref<16x16xf32, #tpu.memory_space<vmem>>, %arg8: memref<16x16xf32, #tpu.memory_space<vmem>>, %arg9: memref<1x3x16x16xf32, #tpu.memory_space<vmem>>) attributes {dimension_semantics = [#tpu.dimension_semantics<parallel>], iteration_bounds = array<i64: 2>, scalar_prefetch = 0 : i64, scratch_operands = 0 : i64, tpu.core_type = #tpu.core_type<tc>, window_params = [{transform_indices = @transform_0, window_bounds = array<i64: 1, 4, 16, 16>}, {transform_indices = @transform_1, window_bounds = array<i64: 3, 4>}, {transform_indices = @transform_2, window_bounds = array<i64: 3>}, {pipeline_mode = #tpu.pipeline_mode<synchronous>, transform_indices = @transform_3, window_bounds = array<i64: 16, 16>}, {pipeline_mode = #tpu.pipeline_mode<synchronous>, transform_indices = @transform_4, window_bounds = array<i64: 16, 16>}, {pipeline_mode = #tpu.pipeline_mode<synchronous>, transform_indices = @transform_5, window_bounds = array<i64: 16, 16>}, {pipeline_mode = #tpu.pipeline_mode<synchronous>, transform_indices = @transform_6, window_bounds = array<i64: 16, 16>}, {pipeline_mode = #tpu.pipeline_mode<synchronous>, transform_indices = @transform_7, window_bounds = array<i64: 16, 16>}, {transform_indices = @transform_8, window_bounds = array<i64: 1, 3, 16, 16>}]} {
    %c0 = arith.constant 0 : index
    %c0_0 = arith.constant 0 : index
    %0 = vector.load %arg4[%c0, %c0_0] : memref<16x16xf32, #tpu.memory_space<vmem>>, vector<16x16xf32>
    %c0_1 = arith.constant 0 : index
    %c0_2 = arith.constant 0 : index
    %1 = vector.load %arg5[%c0_1, %c0_2] : memref<16x16xf32, #tpu.memory_space<vmem>>, vector<16x16xf32>
    %c0_3 = arith.constant 0 : index
    %c0_4 = arith.constant 0 : index
    %2 = vector.load %arg6[%c0_3, %c0_4] : memref<16x16xf32, #tpu.memory_space<vmem>>, vector<16x16xf32>
    %c0_5 = arith.constant 0 : index
    %c0_6 = arith.constant 0 : index
    %3 = vector.load %arg7[%c0_5, %c0_6] : memref<16x16xf32, #tpu.memory_space<vmem>>, vector<16x16xf32>
    %c0_7 = arith.constant 0 : index
    %c0_8 = arith.constant 0 : index
    %4 = vector.load %arg8[%c0_7, %c0_8] : memref<16x16xf32, #tpu.memory_space<vmem>>, vector<16x16xf32>
    %c0_9 = arith.constant 0 : index
    %5 = memref.load %arg3[%c0_9] : memref<3xf32, #tpu.memory_space<smem>>
    %6 = vector.broadcast %5 : f32 to vector<16x16xf32>
    %c1 = arith.constant 1 : index
    %7 = memref.load %arg3[%c1] : memref<3xf32, #tpu.memory_space<smem>>
    %8 = vector.broadcast %7 : f32 to vector<16x16xf32>
    %c2 = arith.constant 2 : index
    %9 = memref.load %arg3[%c2] : memref<3xf32, #tpu.memory_space<smem>>
    %10 = vector.broadcast %9 : f32 to vector<16x16xf32>
    %c0_10 = arith.constant 0 : index
    %c0_11 = arith.constant 0 : index
    %c0_12 = arith.constant 0 : index
    %c0_13 = arith.constant 0 : index
    %11 = vector.load %arg1[%c0_10, %c0_11, %c0_12, %c0_13] : memref<1x4x16x16xf32, #tpu.memory_space<vmem>>, vector<1x1x16x16xf32>
    %12 = vector.shape_cast %11 : vector<1x1x16x16xf32> to vector<16x16xf32>
    %c0_14 = arith.constant 0 : index
    %c0_15 = arith.constant 0 : index
    %13 = memref.load %arg2[%c0_14, %c0_15] : memref<3x4xf32, #tpu.memory_space<smem>>
    %14 = vector.broadcast %13 : f32 to vector<16x16xf32>
    %15 = arith.mulf %14, %12 : vector<16x16xf32>
    %16 = arith.addf %6, %15 : vector<16x16xf32>
    %c1_16 = arith.constant 1 : index
    %c0_17 = arith.constant 0 : index
    %17 = memref.load %arg2[%c1_16, %c0_17] : memref<3x4xf32, #tpu.memory_space<smem>>
    %18 = vector.broadcast %17 : f32 to vector<16x16xf32>
    %19 = arith.mulf %18, %12 : vector<16x16xf32>
    %20 = arith.addf %8, %19 : vector<16x16xf32>
    %c2_18 = arith.constant 2 : index
    %c0_19 = arith.constant 0 : index
    %21 = memref.load %arg2[%c2_18, %c0_19] : memref<3x4xf32, #tpu.memory_space<smem>>
    %22 = vector.broadcast %21 : f32 to vector<16x16xf32>
    %23 = arith.mulf %22, %12 : vector<16x16xf32>
    %24 = arith.addf %10, %23 : vector<16x16xf32>
    %c0_20 = arith.constant 0 : index
    %c1_21 = arith.constant 1 : index
    %c0_22 = arith.constant 0 : index
    %c0_23 = arith.constant 0 : index
    %25 = vector.load %arg1[%c0_20, %c1_21, %c0_22, %c0_23] : memref<1x4x16x16xf32, #tpu.memory_space<vmem>>, vector<1x1x16x16xf32>
    %26 = vector.shape_cast %25 : vector<1x1x16x16xf32> to vector<16x16xf32>
    %c0_24 = arith.constant 0 : index
    %c1_25 = arith.constant 1 : index
    %27 = memref.load %arg2[%c0_24, %c1_25] : memref<3x4xf32, #tpu.memory_space<smem>>
    %28 = vector.broadcast %27 : f32 to vector<16x16xf32>
    %29 = arith.mulf %28, %26 : vector<16x16xf32>
    %30 = arith.addf %16, %29 : vector<16x16xf32>
    %c1_26 = arith.constant 1 : index
    %c1_27 = arith.constant 1 : index
    %31 = memref.load %arg2[%c1_26, %c1_27] : memref<3x4xf32, #tpu.memory_space<smem>>
    %32 = vector.broadcast %31 : f32 to vector<16x16xf32>
    %33 = arith.mulf %32, %26 : vector<16x16xf32>
    %34 = arith.addf %20, %33 : vector<16x16xf32>
    %c2_28 = arith.constant 2 : index
    %c1_29 = arith.constant 1 : index
    %35 = memref.load %arg2[%c2_28, %c1_29] : memref<3x4xf32, #tpu.memory_space<smem>>
    %36 = vector.broadcast %35 : f32 to vector<16x16xf32>
    %37 = arith.mulf %36, %26 : vector<16x16xf32>
    %38 = arith.addf %24, %37 : vector<16x16xf32>
    %c0_30 = arith.constant 0 : index
    %c2_31 = arith.constant 2 : index
    %c0_32 = arith.constant 0 : index
    %c0_33 = arith.constant 0 : index
    %39 = vector.load %arg1[%c0_30, %c2_31, %c0_32, %c0_33] : memref<1x4x16x16xf32, #tpu.memory_space<vmem>>, vector<1x1x16x16xf32>
    %40 = vector.shape_cast %39 : vector<1x1x16x16xf32> to vector<16x16xf32>
    %c0_34 = arith.constant 0 : index
    %c2_35 = arith.constant 2 : index
    %41 = memref.load %arg2[%c0_34, %c2_35] : memref<3x4xf32, #tpu.memory_space<smem>>
    %42 = vector.broadcast %41 : f32 to vector<16x16xf32>
    %43 = arith.mulf %42, %40 : vector<16x16xf32>
    %44 = arith.addf %30, %43 : vector<16x16xf32>
    %c1_36 = arith.constant 1 : index
    %c2_37 = arith.constant 2 : index
    %45 = memref.load %arg2[%c1_36, %c2_37] : memref<3x4xf32, #tpu.memory_space<smem>>
    %46 = vector.broadcast %45 : f32 to vector<16x16xf32>
    %47 = arith.mulf %46, %40 : vector<16x16xf32>
    %48 = arith.addf %34, %47 : vector<16x16xf32>
    %c2_38 = arith.constant 2 : index
    %c2_39 = arith.constant 2 : index
    %49 = memref.load %arg2[%c2_38, %c2_39] : memref<3x4xf32, #tpu.memory_space<smem>>
    %50 = vector.broadcast %49 : f32 to vector<16x16xf32>
    %51 = arith.mulf %50, %40 : vector<16x16xf32>
    %52 = arith.addf %38, %51 : vector<16x16xf32>
    %c0_40 = arith.constant 0 : index
    %c3 = arith.constant 3 : index
    %c0_41 = arith.constant 0 : index
    %c0_42 = arith.constant 0 : index
    %53 = vector.load %arg1[%c0_40, %c3, %c0_41, %c0_42] : memref<1x4x16x16xf32, #tpu.memory_space<vmem>>, vector<1x1x16x16xf32>
    %54 = vector.shape_cast %53 : vector<1x1x16x16xf32> to vector<16x16xf32>
    %c0_43 = arith.constant 0 : index
    %c3_44 = arith.constant 3 : index
    %55 = memref.load %arg2[%c0_43, %c3_44] : memref<3x4xf32, #tpu.memory_space<smem>>
    %56 = vector.broadcast %55 : f32 to vector<16x16xf32>
    %57 = arith.mulf %56, %54 : vector<16x16xf32>
    %58 = arith.addf %44, %57 : vector<16x16xf32>
    %c1_45 = arith.constant 1 : index
    %c3_46 = arith.constant 3 : index
    %59 = memref.load %arg2[%c1_45, %c3_46] : memref<3x4xf32, #tpu.memory_space<smem>>
    %60 = vector.broadcast %59 : f32 to vector<16x16xf32>
    %61 = arith.mulf %60, %54 : vector<16x16xf32>
    %62 = arith.addf %48, %61 : vector<16x16xf32>
    %c2_47 = arith.constant 2 : index
    %c3_48 = arith.constant 3 : index
    %63 = memref.load %arg2[%c2_47, %c3_48] : memref<3x4xf32, #tpu.memory_space<smem>>
    %64 = vector.broadcast %63 : f32 to vector<16x16xf32>
    %65 = arith.mulf %64, %54 : vector<16x16xf32>
    %66 = arith.addf %52, %65 : vector<16x16xf32>
    %cst = arith.constant dense<0.000000e+00> : vector<16x16xf32>
    %67 = tpu.matmul %0, %58, %cst {dimension_numbers = #tpu.dot_dimension_numbers<[1], [0], [0], [1], [0, 0, 1, 1], [], []>} : vector<16x16xf32>, vector<16x16xf32>, vector<16x16xf32> -> vector<16x16xf32>
    %cst_49 = arith.constant dense<0.000000e+00> : vector<16x16xf32>
    %68 = tpu.matmul %1, %58, %cst_49 {dimension_numbers = #tpu.dot_dimension_numbers<[1], [0], [0], [1], [0, 0, 1, 1], [], []>} : vector<16x16xf32>, vector<16x16xf32>, vector<16x16xf32> -> vector<16x16xf32>
    %cst_50 = arith.constant dense<0.000000e+00> : vector<16x16xf32>
    %69 = tpu.matmul %67, %2, %cst_50 {dimension_numbers = #tpu.dot_dimension_numbers<[1], [0], [0], [1], [0, 0, 1, 1], [], []>} : vector<16x16xf32>, vector<16x16xf32>, vector<16x16xf32> -> vector<16x16xf32>
    %cst_51 = arith.constant dense<0.000000e+00> : vector<16x16xf32>
    %70 = tpu.matmul %68, %3, %cst_51 {dimension_numbers = #tpu.dot_dimension_numbers<[1], [0], [0], [1], [0, 0, 1, 1], [], []>} : vector<16x16xf32>, vector<16x16xf32>, vector<16x16xf32> -> vector<16x16xf32>
    %71 = arith.subf %69, %70 : vector<16x16xf32>
    %cst_52 = arith.constant dense<0.000000e+00> : vector<16x16xf32>
    %72 = tpu.matmul %67, %3, %cst_52 {dimension_numbers = #tpu.dot_dimension_numbers<[1], [0], [0], [1], [0, 0, 1, 1], [], []>} : vector<16x16xf32>, vector<16x16xf32>, vector<16x16xf32> -> vector<16x16xf32>
    %cst_53 = arith.constant dense<0.000000e+00> : vector<16x16xf32>
    %73 = tpu.matmul %68, %2, %cst_53 {dimension_numbers = #tpu.dot_dimension_numbers<[1], [0], [0], [1], [0, 0, 1, 1], [], []>} : vector<16x16xf32>, vector<16x16xf32>, vector<16x16xf32> -> vector<16x16xf32>
    %74 = arith.addf %72, %73 : vector<16x16xf32>
    %cst_54 = arith.constant 0.000000e+00 : f32
    %75 = vector.broadcast %cst_54 : f32 to vector<16x16xf32>
    %76 = arith.subf %75, %74 : vector<16x16xf32>
    %77 = arith.mulf %71, %4 : vector<16x16xf32>
    %78 = arith.mulf %76, %4 : vector<16x16xf32>
    %cst_55 = arith.constant dense<0.000000e+00> : vector<16x16xf32>
    %79 = tpu.matmul %0, %77, %cst_55 {dimension_numbers = #tpu.dot_dimension_numbers<[1], [0], [0], [1], [0, 0, 1, 1], [], []>} : vector<16x16xf32>, vector<16x16xf32>, vector<16x16xf32> -> vector<16x16xf32>
    %cst_56 = arith.constant dense<0.000000e+00> : vector<16x16xf32>
    %80 = tpu.matmul %1, %78, %cst_56 {dimension_numbers = #tpu.dot_dimension_numbers<[1], [0], [0], [1], [0, 0, 1, 1], [], []>} : vector<16x16xf32>, vector<16x16xf32>, vector<16x16xf32> -> vector<16x16xf32>
    %81 = arith.subf %79, %80 : vector<16x16xf32>
    %cst_57 = arith.constant dense<0.000000e+00> : vector<16x16xf32>
    %82 = tpu.matmul %0, %78, %cst_57 {dimension_numbers = #tpu.dot_dimension_numbers<[1], [0], [0], [1], [0, 0, 1, 1], [], []>} : vector<16x16xf32>, vector<16x16xf32>, vector<16x16xf32> -> vector<16x16xf32>
    %cst_58 = arith.constant dense<0.000000e+00> : vector<16x16xf32>
    %83 = tpu.matmul %1, %77, %cst_58 {dimension_numbers = #tpu.dot_dimension_numbers<[1], [0], [0], [1], [0, 0, 1, 1], [], []>} : vector<16x16xf32>, vector<16x16xf32>, vector<16x16xf32> -> vector<16x16xf32>
    %84 = arith.addf %82, %83 : vector<16x16xf32>
    %cst_59 = arith.constant dense<0.000000e+00> : vector<16x16xf32>
    %85 = tpu.matmul %81, %2, %cst_59 {dimension_numbers = #tpu.dot_dimension_numbers<[1], [0], [0], [1], [0, 0, 1, 1], [], []>} : vector<16x16xf32>, vector<16x16xf32>, vector<16x16xf32> -> vector<16x16xf32>
    %cst_60 = arith.constant dense<0.000000e+00> : vector<16x16xf32>
    %86 = tpu.matmul %84, %3, %cst_60 {dimension_numbers = #tpu.dot_dimension_numbers<[1], [0], [0], [1], [0, 0, 1, 1], [], []>} : vector<16x16xf32>, vector<16x16xf32>, vector<16x16xf32> -> vector<16x16xf32>
    %87 = arith.subf %85, %86 : vector<16x16xf32>
    %cst_61 = arith.constant 3.906250e-03 : f32
    %88 = vector.broadcast %cst_61 : f32 to vector<16x16xf32>
    %89 = arith.mulf %87, %88 : vector<16x16xf32>
    %c0_62 = arith.constant 0 : index
    %c0_63 = arith.constant 0 : index
    %c0_64 = arith.constant 0 : index
    %c0_65 = arith.constant 0 : index
    %90 = vector.load %arg9[%c0_62, %c0_63, %c0_64, %c0_65] : memref<1x3x16x16xf32, #tpu.memory_space<vmem>>, vector<1x1x16x16xf32>
    %91 = vector.shape_cast %90 : vector<1x1x16x16xf32> to vector<16x16xf32>
    %92 = vector.shape_cast %89 : vector<16x16xf32> to vector<1x1x16x16xf32>
    tpu.vector_store %arg9[%c0_62, %c0_63, %c0_64, %c0_65], %92 {strides = array<i32>} : memref<1x3x16x16xf32, #tpu.memory_space<vmem>>, vector<1x1x16x16xf32>,
    %cst_66 = arith.constant dense<0.000000e+00> : vector<16x16xf32>
    %93 = tpu.matmul %0, %62, %cst_66 {dimension_numbers = #tpu.dot_dimension_numbers<[1], [0], [0], [1], [0, 0, 1, 1], [], []>} : vector<16x16xf32>, vector<16x16xf32>, vector<16x16xf32> -> vector<16x16xf32>
    %cst_67 = arith.constant dense<0.000000e+00> : vector<16x16xf32>
    %94 = tpu.matmul %1, %62, %cst_67 {dimension_numbers = #tpu.dot_dimension_numbers<[1], [0], [0], [1], [0, 0, 1, 1], [], []>} : vector<16x16xf32>, vector<16x16xf32>, vector<16x16xf32> -> vector<16x16xf32>
    %cst_68 = arith.constant dense<0.000000e+00> : vector<16x16xf32>
    %95 = tpu.matmul %93, %2, %cst_68 {dimension_numbers = #tpu.dot_dimension_numbers<[1], [0], [0], [1], [0, 0, 1, 1], [], []>} : vector<16x16xf32>, vector<16x16xf32>, vector<16x16xf32> -> vector<16x16xf32>
    %cst_69 = arith.constant dense<0.000000e+00> : vector<16x16xf32>
    %96 = tpu.matmul %94, %3, %cst_69 {dimension_numbers = #tpu.dot_dimension_numbers<[1], [0], [0], [1], [0, 0, 1, 1], [], []>} : vector<16x16xf32>, vector<16x16xf32>, vector<16x16xf32> -> vector<16x16xf32>
    %97 = arith.subf %95, %96 : vector<16x16xf32>
    %cst_70 = arith.constant dense<0.000000e+00> : vector<16x16xf32>
    %98 = tpu.matmul %93, %3, %cst_70 {dimension_numbers = #tpu.dot_dimension_numbers<[1], [0], [0], [1], [0, 0, 1, 1], [], []>} : vector<16x16xf32>, vector<16x16xf32>, vector<16x16xf32> -> vector<16x16xf32>
    %cst_71 = arith.constant dense<0.000000e+00> : vector<16x16xf32>
    %99 = tpu.matmul %94, %2, %cst_71 {dimension_numbers = #tpu.dot_dimension_numbers<[1], [0], [0], [1], [0, 0, 1, 1], [], []>} : vector<16x16xf32>, vector<16x16xf32>, vector<16x16xf32> -> vector<16x16xf32>
    %100 = arith.addf %98, %99 : vector<16x16xf32>
    %cst_72 = arith.constant 0.000000e+00 : f32
    %101 = vector.broadcast %cst_72 : f32 to vector<16x16xf32>
    %102 = arith.subf %101, %100 : vector<16x16xf32>
    %103 = arith.mulf %97, %4 : vector<16x16xf32>
    %104 = arith.mulf %102, %4 : vector<16x16xf32>
    %cst_73 = arith.constant dense<0.000000e+00> : vector<16x16xf32>
    %105 = tpu.matmul %0, %103, %cst_73 {dimension_numbers = #tpu.dot_dimension_numbers<[1], [0], [0], [1], [0, 0, 1, 1], [], []>} : vector<16x16xf32>, vector<16x16xf32>, vector<16x16xf32> -> vector<16x16xf32>
    %cst_74 = arith.constant dense<0.000000e+00> : vector<16x16xf32>
    %106 = tpu.matmul %1, %104, %cst_74 {dimension_numbers = #tpu.dot_dimension_numbers<[1], [0], [0], [1], [0, 0, 1, 1], [], []>} : vector<16x16xf32>, vector<16x16xf32>, vector<16x16xf32> -> vector<16x16xf32>
    %107 = arith.subf %105, %106 : vector<16x16xf32>
    %cst_75 = arith.constant dense<0.000000e+00> : vector<16x16xf32>
    %108 = tpu.matmul %0, %104, %cst_75 {dimension_numbers = #tpu.dot_dimension_numbers<[1], [0], [0], [1], [0, 0, 1, 1], [], []>} : vector<16x16xf32>, vector<16x16xf32>, vector<16x16xf32> -> vector<16x16xf32>
    %cst_76 = arith.constant dense<0.000000e+00> : vector<16x16xf32>
    %109 = tpu.matmul %1, %103, %cst_76 {dimension_numbers = #tpu.dot_dimension_numbers<[1], [0], [0], [1], [0, 0, 1, 1], [], []>} : vector<16x16xf32>, vector<16x16xf32>, vector<16x16xf32> -> vector<16x16xf32>
    %110 = arith.addf %108, %109 : vector<16x16xf32>
    %cst_77 = arith.constant dense<0.000000e+00> : vector<16x16xf32>
    %111 = tpu.matmul %107, %2, %cst_77 {dimension_numbers = #tpu.dot_dimension_numbers<[1], [0], [0], [1], [0, 0, 1, 1], [], []>} : vector<16x16xf32>, vector<16x16xf32>, vector<16x16xf32> -> vector<16x16xf32>
    %cst_78 = arith.constant dense<0.000000e+00> : vector<16x16xf32>
    %112 = tpu.matmul %110, %3, %cst_78 {dimension_numbers = #tpu.dot_dimension_numbers<[1], [0], [0], [1], [0, 0, 1, 1], [], []>} : vector<16x16xf32>, vector<16x16xf32>, vector<16x16xf32> -> vector<16x16xf32>
    %113 = arith.subf %111, %112 : vector<16x16xf32>
    %cst_79 = arith.constant 3.906250e-03 : f32
    %114 = vector.broadcast %cst_79 : f32 to vector<16x16xf32>
    %115 = arith.mulf %113, %114 : vector<16x16xf32>
    %c0_80 = arith.constant 0 : index
    %c1_81 = arith.constant 1 : index
    %c0_82 = arith.constant 0 : index
    %c0_83 = arith.constant 0 : index
    %116 = vector.load %arg9[%c0_80, %c1_81, %c0_82, %c0_83] : memref<1x3x16x16xf32, #tpu.memory_space<vmem>>, vector<1x1x16x16xf32>
    %117 = vector.shape_cast %116 : vector<1x1x16x16xf32> to vector<16x16xf32>
    %118 = vector.shape_cast %115 : vector<16x16xf32> to vector<1x1x16x16xf32>
    tpu.vector_store %arg9[%c0_80, %c1_81, %c0_82, %c0_83], %118 {strides = array<i32>} : memref<1x3x16x16xf32, #tpu.memory_space<vmem>>, vector<1x1x16x16xf32>,
    %cst_84 = arith.constant dense<0.000000e+00> : vector<16x16xf32>
    %119 = tpu.matmul %0, %66, %cst_84 {dimension_numbers = #tpu.dot_dimension_numbers<[1], [0], [0], [1], [0, 0, 1, 1], [], []>} : vector<16x16xf32>, vector<16x16xf32>, vector<16x16xf32> -> vector<16x16xf32>
    %cst_85 = arith.constant dense<0.000000e+00> : vector<16x16xf32>
    %120 = tpu.matmul %1, %66, %cst_85 {dimension_numbers = #tpu.dot_dimension_numbers<[1], [0], [0], [1], [0, 0, 1, 1], [], []>} : vector<16x16xf32>, vector<16x16xf32>, vector<16x16xf32> -> vector<16x16xf32>
    %cst_86 = arith.constant dense<0.000000e+00> : vector<16x16xf32>
    %121 = tpu.matmul %119, %2, %cst_86 {dimension_numbers = #tpu.dot_dimension_numbers<[1], [0], [0], [1], [0, 0, 1, 1], [], []>} : vector<16x16xf32>, vector<16x16xf32>, vector<16x16xf32> -> vector<16x16xf32>
    %cst_87 = arith.constant dense<0.000000e+00> : vector<16x16xf32>
    %122 = tpu.matmul %120, %3, %cst_87 {dimension_numbers = #tpu.dot_dimension_numbers<[1], [0], [0], [1], [0, 0, 1, 1], [], []>} : vector<16x16xf32>, vector<16x16xf32>, vector<16x16xf32> -> vector<16x16xf32>
    %123 = arith.subf %121, %122 : vector<16x16xf32>
    %cst_88 = arith.constant dense<0.000000e+00> : vector<16x16xf32>
    %124 = tpu.matmul %119, %3, %cst_88 {dimension_numbers = #tpu.dot_dimension_numbers<[1], [0], [0], [1], [0, 0, 1, 1], [], []>} : vector<16x16xf32>, vector<16x16xf32>, vector<16x16xf32> -> vector<16x16xf32>
    %cst_89 = arith.constant dense<0.000000e+00> : vector<16x16xf32>
    %125 = tpu.matmul %120, %2, %cst_89 {dimension_numbers = #tpu.dot_dimension_numbers<[1], [0], [0], [1], [0, 0, 1, 1], [], []>} : vector<16x16xf32>, vector<16x16xf32>, vector<16x16xf32> -> vector<16x16xf32>
    %126 = arith.addf %124, %125 : vector<16x16xf32>
    %cst_90 = arith.constant 0.000000e+00 : f32
    %127 = vector.broadcast %cst_90 : f32 to vector<16x16xf32>
    %128 = arith.subf %127, %126 : vector<16x16xf32>
    %129 = arith.mulf %123, %4 : vector<16x16xf32>
    %130 = arith.mulf %128, %4 : vector<16x16xf32>
    %cst_91 = arith.constant dense<0.000000e+00> : vector<16x16xf32>
    %131 = tpu.matmul %0, %129, %cst_91 {dimension_numbers = #tpu.dot_dimension_numbers<[1], [0], [0], [1], [0, 0, 1, 1], [], []>} : vector<16x16xf32>, vector<16x16xf32>, vector<16x16xf32> -> vector<16x16xf32>
    %cst_92 = arith.constant dense<0.000000e+00> : vector<16x16xf32>
    %132 = tpu.matmul %1, %130, %cst_92 {dimension_numbers = #tpu.dot_dimension_numbers<[1], [0], [0], [1], [0, 0, 1, 1], [], []>} : vector<16x16xf32>, vector<16x16xf32>, vector<16x16xf32> -> vector<16x16xf32>
    %133 = arith.subf %131, %132 : vector<16x16xf32>
    %cst_93 = arith.constant dense<0.000000e+00> : vector<16x16xf32>
    %134 = tpu.matmul %0, %130, %cst_93 {dimension_numbers = #tpu.dot_dimension_numbers<[1], [0], [0], [1], [0, 0, 1, 1], [], []>} : vector<16x16xf32>, vector<16x16xf32>, vector<16x16xf32> -> vector<16x16xf32>
    %cst_94 = arith.constant dense<0.000000e+00> : vector<16x16xf32>
    %135 = tpu.matmul %1, %129, %cst_94 {dimension_numbers = #tpu.dot_dimension_numbers<[1], [0], [0], [1], [0, 0, 1, 1], [], []>} : vector<16x16xf32>, vector<16x16xf32>, vector<16x16xf32> -> vector<16x16xf32>
    %136 = arith.addf %134, %135 : vector<16x16xf32>
    %cst_95 = arith.constant dense<0.000000e+00> : vector<16x16xf32>
    %137 = tpu.matmul %133, %2, %cst_95 {dimension_numbers = #tpu.dot_dimension_numbers<[1], [0], [0], [1], [0, 0, 1, 1], [], []>} : vector<16x16xf32>, vector<16x16xf32>, vector<16x16xf32> -> vector<16x16xf32>
    %cst_96 = arith.constant dense<0.000000e+00> : vector<16x16xf32>
    %138 = tpu.matmul %136, %3, %cst_96 {dimension_numbers = #tpu.dot_dimension_numbers<[1], [0], [0], [1], [0, 0, 1, 1], [], []>} : vector<16x16xf32>, vector<16x16xf32>, vector<16x16xf32> -> vector<16x16xf32>
    %139 = arith.subf %137, %138 : vector<16x16xf32>
    %cst_97 = arith.constant 3.906250e-03 : f32
    %140 = vector.broadcast %cst_97 : f32 to vector<16x16xf32>
    %141 = arith.mulf %139, %140 : vector<16x16xf32>
    %c0_98 = arith.constant 0 : index
    %c2_99 = arith.constant 2 : index
    %c0_100 = arith.constant 0 : index
    %c0_101 = arith.constant 0 : index
    %142 = vector.load %arg9[%c0_98, %c2_99, %c0_100, %c0_101] : memref<1x3x16x16xf32, #tpu.memory_space<vmem>>, vector<1x1x16x16xf32>
    %143 = vector.shape_cast %142 : vector<1x1x16x16xf32> to vector<16x16xf32>
    %144 = vector.shape_cast %141 : vector<16x16xf32> to vector<1x1x16x16xf32>
    tpu.vector_store %arg9[%c0_98, %c2_99, %c0_100, %c0_101], %144 {strides = array<i32>} : memref<1x3x16x16xf32, #tpu.memory_space<vmem>>, vector<1x1x16x16xf32>,
    return
  }
  func.func @transform_0(%arg0: i32) -> (i32, i32, i32, i32) {
    %c0_i32 = arith.constant 0 : i32
    %c0_i32_0 = arith.constant 0 : i32
    %c0_i32_1 = arith.constant 0 : i32
    %c0_i32_2 = arith.constant 0 : i32
    return %arg0, %c0_i32, %c0_i32_0, %c0_i32_1 : i32, i32, i32, i32
  }
  func.func @transform_1(%arg0: i32) -> (i32, i32) {
    %c0_i32 = arith.constant 0 : i32
    %c0_i32_0 = arith.constant 0 : i32
    %c0_i32_1 = arith.constant 0 : i32
    return %c0_i32, %c0_i32_0 : i32, i32
  }
  func.func @transform_2(%arg0: i32) -> i32 {
    %c0_i32 = arith.constant 0 : i32
    %c0_i32_0 = arith.constant 0 : i32
    return %c0_i32 : i32
  }
  func.func @transform_3(%arg0: i32) -> (i32, i32) {
    %c0_i32 = arith.constant 0 : i32
    %c0_i32_0 = arith.constant 0 : i32
    %c0_i32_1 = arith.constant 0 : i32
    return %c0_i32, %c0_i32_0 : i32, i32
  }
  func.func @transform_4(%arg0: i32) -> (i32, i32) {
    %c0_i32 = arith.constant 0 : i32
    %c0_i32_0 = arith.constant 0 : i32
    %c0_i32_1 = arith.constant 0 : i32
    return %c0_i32, %c0_i32_0 : i32, i32
  }
  func.func @transform_5(%arg0: i32) -> (i32, i32) {
    %c0_i32 = arith.constant 0 : i32
    %c0_i32_0 = arith.constant 0 : i32
    %c0_i32_1 = arith.constant 0 : i32
    return %c0_i32, %c0_i32_0 : i32, i32
  }
  func.func @transform_6(%arg0: i32) -> (i32, i32) {
    %c0_i32 = arith.constant 0 : i32
    %c0_i32_0 = arith.constant 0 : i32
    %c0_i32_1 = arith.constant 0 : i32
    return %c0_i32, %c0_i32_0 : i32, i32
  }
  func.func @transform_7(%arg0: i32) -> (i32, i32) {
    %c0_i32 = arith.constant 0 : i32
    %c0_i32_0 = arith.constant 0 : i32
    %c0_i32_1 = arith.constant 0 : i32
    return %c0_i32, %c0_i32_0 : i32, i32
  }
  func.func @transform_8(%arg0: i32) -> (i32, i32, i32, i32) {
    %c0_i32 = arith.constant 0 : i32
    %c0_i32_0 = arith.constant 0 : i32
    %c0_i32_1 = arith.constant 0 : i32
    %c0_i32_2 = arith.constant 0 : i32
    return %arg0, %c0_i32, %c0_i32_0, %c0_i32_1 : i32, i32, i32, i32
  }
}

</mosaic_0001>

<llo_original>
// kernel: tpu_custom_call.1
$region0: #{tpu_custom_call.1}
  #allocation0 [shape = 'u32[]', space=smem, size = 0x4, offset = 0x4, fixed_abs, tag = 'smem constant byte address 0x4 - core index']
  #allocation1 [shape = 'u32[144,128]{1,0:T(1,128)}', space=vmem, size = 0x12000, scoped, tag = 'internal scratch']
  %s0 = inlined_call_operand.hbm [shape: f32[2,4,16,16], index: 0, kind: input, shape index: {}]
  %s1 = inlined_call_operand.hbm [shape: f32[3,4], index: 1, kind: input, shape index: {}]
  %s2 = inlined_call_operand.vmem [shape: f32[3], index: 2, kind: input, shape index: {}]
  %s3 = inlined_call_operand.hbm [shape: f32[16,16], index: 3, kind: input, shape index: {}]
  %s4 = inlined_call_operand.hbm [shape: f32[16,16], index: 4, kind: input, shape index: {}]
  %s5 = inlined_call_operand.vmem [shape: f32[16,16], index: 5, kind: input, shape index: {}]
  %s6 = inlined_call_operand.hbm [shape: f32[16,16], index: 6, kind: input, shape index: {}]
  %s7 = inlined_call_operand.hbm [shape: f32[16,16], index: 7, kind: input, shape index: {}]
  %s8 = inlined_call_operand.hbm [shape: f32[2,3,16,16], index: 8, kind: output, shape index: {}]
  %s9 = sld [smem:[#allocation0]]
  $region93: #{tpu_custom_call.1} parent=0
    _
  %s11 = ssub.s32 1, %s9
  %s12 = scalar_select 0, %s11, %s9
  $region1: #{tpu_custom_call.1} parent=0
    #allocation2 [shape = 'u8[65536]{0}', space=vmem, size = 0x10000, scoped, tag = 'input window, operand 0']
    #allocation3 [shape = 's32[2]{0}', space=sflag, size = 0x8, scoped, tag = 'scoped memory for tpu_custom_call.1']
    #allocation4 [shape = 's32[2]{0}', space=sflag, size = 0x8, scoped, tag = 'scoped memory for tpu_custom_call.1']
    #allocation5 [shape = 's32[2]{0}', space=sflag, size = 0x8, scoped, tag = 'scoped memory for tpu_custom_call.1']
    #allocation6 [shape = 's32[2]{0}', space=sflag, size = 0x8, scoped, tag = 'scoped memory for tpu_custom_call.1']
    #allocation7 [shape = 'u8[2048]{0}', space=smem, size = 0x800, scoped, tag = 'input window, operand 1, single buffered']
    #allocation8 [shape = 'u8[512]{0}', space=smem, size = 0x200, scoped, tag = 'input window, operand 2, single buffered']
    #allocation9 [shape = 'u8[8192]{0}', space=vmem, size = 0x2000, scoped, tag = 'input window, operand 3, single buffered']
    #allocation10 [shape = 's32[1]{0}', space=sflag, size = 0x4, scoped, tag = 'scoped memory for tpu_custom_call.1']
    #allocation11 [shape = 'u8[8192]{0}', space=vmem, size = 0x2000, scoped, tag = 'input window, operand 4, single buffered']
    #allocation12 [shape = 'u8[8192]{0}', space=vmem, size = 0x2000, scoped, tag = 'input window, operand 6, single buffered']
    #allocation13 [shape = 's32[1]{0}', space=sflag, size = 0x4, scoped, tag = 'scoped memory for tpu_custom_call.1']
    #allocation14 [shape = 'u8[8192]{0}', space=vmem, size = 0x2000, scoped, tag = 'input window, operand 7, single buffered']
    #allocation15 [shape = 'u8[49152]{0}', space=vmem, size = 0xc000, scoped, tag = 'output window, operand 0']
    %13 = vsyncpa [#allocation3], 0
    %s14 = scalar_lea.sflag [#allocation3], 1
    %15 = vsyncpa %s14, 0
    %16 = vsyncpa [#allocation5], 0
    %17 = vsyncpa [#allocation6], 0
    %18 = vsyncpa [#allocation10], 0
    %19 = vsyncpa [#allocation13], 0
    %20 = vsyncpa [#allocation4], 0
    %s21 = scalar_lea.sflag [#allocation4], 1
    %22 = vsyncpa %s21, 0
    loop: start=0, step=1, limit=4
    $region2: #{tpu_custom_call.1} parent=1 // loop_pre_header
      _
    $region3: #{tpu_custom_call.1} parent=1 // loop_header
      %s24 = sphi 0, %s28
      %p25 = scmp.ge.s32.totalorder %s24, 4
      %s34 = sphi 0, %s36
      %s37 = sphi 0, %s34
      %s38 = sphi 0, %s37
      %s54 = sphi 0, %s38
      %s58 = sphi 0, %s58
      %s60 = sphi 0, %s58
      %s61 = sphi 0, %s60
      %s75 = sphi 0, %s61
      %s79 = sphi 0, %s79
      %s81 = sphi 0, %s79
      %s82 = sphi 0, %s81
      %s96 = sphi 0, %s82
      %s100 = sphi 0, %s100
      %s102 = sphi 0, %s100
      %s103 = sphi 0, %s102
      %s117 = sphi 0, %s103
      %s121 = sphi 0, %s121
      %s123 = sphi 0, %s121
      %s124 = sphi 0, %s123
      %s138 = sphi 0, %s124
      %s142 = sphi 0, %s142
      %s144 = sphi 0, %s142
      %s145 = sphi 0, %s144
      %s159 = sphi 0, %s145
      %s163 = sphi 0, %s163
      %s165 = sphi 0, %s163
      %s166 = sphi 0, %s165
      %s180 = sphi 0, %s166
      %s184 = sphi 0, %s184
      %s186 = sphi 0, %s184
      %s187 = sphi 0, %s186
      %s201 = sphi 0, %s187
      %s207 = sphi 0, %s209
      %s210 = sphi 0, %s207
      %s211 = sphi 0, %s210
      %s227 = sphi 0, %s211
    $region4: #{tpu_custom_call.1} parent=1 // loop_header_branch
      %27 = sbr.rel (%p25) target = $region8
    $region5: #{tpu_custom_call.1} parent=1 // loop_body
      %s29 = ssub.s32 %s24, 1
      %s30 = ssub.s32 %s24, 2
      %s31 = sadd.s32 %s24, 1
      %s32 = ssub.s32 %s24, %s31
      %p33 = scmp.eq.s32.totalorder %s32, 0
      %s35 = sadd.s32 %s34, 1
      %s36 = scalar_select %p33, %s34, %s35
      %p39 = pneg %p33
      %p40 = scmp.eq.s32.totalorder %s24, 1
      %p41 = por %p39, %p40
      %p42 = scmp.ne.s32.totalorder %s34, %s37
      %p43 = scmp.eq.s32.totalorder %s24, 0
      %p44 = por %p42, %p43
      %p45 = scmp.ne.s32.totalorder %s34, %s37
      %p46 = scmp.eq.s32.totalorder %s29, 1
      %p47 = por %p45, %p46
      %p48 = scmp.ne.s32.totalorder %s37, %s38
      %p49 = scmp.eq.s32.totalorder %s29, 0
      %p50 = por %p48, %p49
      %p51 = scmp.ne.s32.totalorder %s37, %s38
      %p52 = scmp.eq.s32.totalorder %s30, 1
      %p53 = por %p51, %p52
      %p55 = scmp.ne.s32.totalorder %s38, %s54
      %p56 = scmp.eq.s32.totalorder %s30, 0
      %p57 = por %p55, %p56
      %s59 = sadd.s32 %s58, 1
      %p62 = scmp.eq.s32.totalorder %s24, 1
      %p63 = scmp.ne.s32.totalorder %s58, %s60
      %p64 = scmp.eq.s32.totalorder %s24, 0
      %p65 = por %p63, %p64
      %p66 = scmp.ne.s32.totalorder %s58, %s60
      %p67 = scmp.eq.s32.totalorder %s29, 1
      %p68 = por %p66, %p67
      %p69 = scmp.ne.s32.totalorder %s60, %s61
      %p70 = scmp.eq.s32.totalorder %s29, 0
      %p71 = por %p69, %p70
      %p72 = scmp.ne.s32.totalorder %s60, %s61
      %p73 = scmp.eq.s32.totalorder %s30, 1
      %p74 = por %p72, %p73
      %p76 = scmp.ne.s32.totalorder %s61, %s75
      %p77 = scmp.eq.s32.totalorder %s30, 0
      %p78 = por %p76, %p77
      %s80 = sadd.s32 %s79, 1
      %p83 = scmp.eq.s32.totalorder %s24, 1
      %p84 = scmp.ne.s32.totalorder %s79, %s81
      %p85 = scmp.eq.s32.totalorder %s24, 0
      %p86 = por %p84, %p85
      %p87 = scmp.ne.s32.totalorder %s79, %s81
      %p88 = scmp.eq.s32.totalorder %s29, 1
      %p89 = por %p87, %p88
      %p90 = scmp.ne.s32.totalorder %s81, %s82
      %p91 = scmp.eq.s32.totalorder %s29, 0
      %p92 = por %p90, %p91
      %p93 = scmp.ne.s32.totalorder %s81, %s82
      %p94 = scmp.eq.s32.totalorder %s30, 1
      %p95 = por %p93, %p94
      %p97 = scmp.ne.s32.totalorder %s82, %s96
      %p98 = scmp.eq.s32.totalorder %s30, 0
      %p99 = por %p97, %p98
      %s101 = sadd.s32 %s100, 1
      %p104 = scmp.eq.s32.totalorder %s24, 1
      %p105 = scmp.ne.s32.totalorder %s100, %s102
      %p106 = scmp.eq.s32.totalorder %s24, 0
      %p107 = por %p105, %p106
      %p108 = scmp.ne.s32.totalorder %s100, %s102
      %p109 = scmp.eq.s32.totalorder %s29, 1
      %p110 = por %p108, %p109
      %p111 = scmp.ne.s32.totalorder %s102, %s103
      %p112 = scmp.eq.s32.totalorder %s29, 0
      %p113 = por %p111, %p112
      %p114 = scmp.ne.s32.totalorder %s102, %s103
      %p115 = scmp.eq.s32.totalorder %s30, 1
      %p116 = por %p114, %p115
      %p118 = scmp.ne.s32.totalorder %s103, %s117
      %p119 = scmp.eq.s32.totalorder %s30, 0
      %p120 = por %p118, %p119
      %s122 = sadd.s32 %s121, 1
      %p125 = scmp.eq.s32.totalorder %s24, 1
      %p126 = scmp.ne.s32.totalorder %s121, %s123
      %p127 = scmp.eq.s32.totalorder %s24, 0
      %p128 = por %p126, %p127
      %p129 = scmp.ne.s32.totalorder %s121, %s123
      %p130 = scmp.eq.s32.totalorder %s29, 1
      %p131 = por %p129, %p130
      %p132 = scmp.ne.s32.totalorder %s123, %s124
      %p133 = scmp.eq.s32.totalorder %s29, 0
      %p134 = por %p132, %p133
      %p135 = scmp.ne.s32.totalorder %s123, %s124
      %p136 = scmp.eq.s32.totalorder %s30, 1
      %p137 = por %p135, %p136
      %p139 = scmp.ne.s32.totalorder %s124, %s138
      %p140 = scmp.eq.s32.totalorder %s30, 0
      %p141 = por %p139, %p140
      %s143 = sadd.s32 %s142, 1
      %p146 = scmp.eq.s32.totalorder %s24, 1
      %p147 = scmp.ne.s32.totalorder %s142, %s144
      %p148 = scmp.eq.s32.totalorder %s24, 0
      %p149 = por %p147, %p148
      %p150 = scmp.ne.s32.totalorder %s142, %s144
      %p151 = scmp.eq.s32.totalorder %s29, 1
      %p152 = por %p150, %p151
      %p153 = scmp.ne.s32.totalorder %s144, %s145
      %p154 = scmp.eq.s32.totalorder %s29, 0
      %p155 = por %p153, %p154
      %p156 = scmp.ne.s32.totalorder %s144, %s145
      %p157 = scmp.eq.s32.totalorder %s30, 1
      %p158 = por %p156, %p157
      %p160 = scmp.ne.s32.totalorder %s145, %s159
      %p161 = scmp.eq.s32.totalorder %s30, 0
      %p162 = por %p160, %p161
      %s164 = sadd.s32 %s163, 1
      %p167 = scmp.eq.s32.totalorder %s24, 1
      %p168 = scmp.ne.s32.totalorder %s163, %s165
      %p169 = scmp.eq.s32.totalorder %s24, 0
      %p170 = por %p168, %p169
      %p171 = scmp.ne.s32.totalorder %s163, %s165
      %p172 = scmp.eq.s32.totalorder %s29, 1
      %p173 = por %p171, %p172
      %p174 = scmp.ne.s32.totalorder %s165, %s166
      %p175 = scmp.eq.s32.totalorder %s29, 0
      %p176 = por %p174, %p175
      %p177 = scmp.ne.s32.totalorder %s165, %s166
      %p178 = scmp.eq.s32.totalorder %s30, 1
      %p179 = por %p177, %p178
      %p181 = scmp.ne.s32.totalorder %s166, %s180
      %p182 = scmp.eq.s32.totalorder %s30, 0
      %p183 = por %p181, %p182
      %s185 = sadd.s32 %s184, 1
      %p188 = scmp.eq.s32.totalorder %s24, 1
      %p189 = scmp.ne.s32.totalorder %s184, %s186
      %p190 = scmp.eq.s32.totalorder %s24, 0
      %p191 = por %p189, %p190
      %p192 = scmp.ne.s32.totalorder %s184, %s186
      %p193 = scmp.eq.s32.totalorder %s29, 1
      %p194 = por %p192, %p193
      %p195 = scmp.ne.s32.totalorder %s186, %s187
      %p196 = scmp.eq.s32.totalorder %s29, 0
      %p197 = por %p195, %p196
      %p198 = scmp.ne.s32.totalorder %s186, %s187
      %p199 = scmp.eq.s32.totalorder %s30, 1
      %p200 = por %p198, %p199
      %p202 = scmp.ne.s32.totalorder %s187, %s201
      %p203 = scmp.eq.s32.totalorder %s30, 0
      %p204 = por %p202, %p203
      %s205 = ssub.s32 %s24, %s31
      %p206 = scmp.eq.s32.totalorder %s205, 0
      %s208 = sadd.s32 %s207, 1
      %s209 = scalar_select %p206, %s207, %s208
      %p212 = pneg %p206
      %p213 = scmp.eq.s32.totalorder %s24, 1
      %p214 = por %p212, %p213
      %p215 = scmp.ne.s32.totalorder %s207, %s210
      %p216 = scmp.eq.s32.totalorder %s24, 0
      %p217 = por %p215, %p216
      %p218 = scmp.ne.s32.totalorder %s207, %s210
      %p219 = scmp.eq.s32.totalorder %s29, 1
      %p220 = por %p218, %p219
      %p221 = scmp.ne.s32.totalorder %s210, %s211
      %p222 = scmp.eq.s32.totalorder %s29, 0
      %p223 = por %p221, %p222
      %p224 = scmp.ne.s32.totalorder %s210, %s211
      %p225 = scmp.eq.s32.totalorder %s30, 1
      %p226 = por %p224, %p225
      %p228 = scmp.ne.s32.totalorder %s211, %s227
      %p229 = scmp.eq.s32.totalorder %s30, 0
      %p230 = por %p228, %p229
      %p231 = scmp.le.s32.totalorder 1, %s24
      %p232 = scmp.lt.s32.totalorder %s24, 3
      %p233 = pnand %p231, %p232
      %p234 = pneg %p233
      // Predicated region
      $region9: #{tpu_custom_call.1} parent=5 // pred_check
        _
      $region10: #{tpu_custom_call.1} parent=5 // pred_check_branch
        %236 = sbr.rel (%p233) target = $region12
      $region11: #{tpu_custom_call.1} parent=5 // pred_region
        %s237 = ssub.s32 %s24, 1
        // Predicated region
        $region13: #{tpu_custom_call.1} parent=11 // pred_check
          %p238 = pneg %p71
        $region14: #{tpu_custom_call.1} parent=11 // pred_check_branch
          %240 = sbr.rel (%p238) target = $region16
        $region15: #{tpu_custom_call.1} parent=11 // pred_region
          %s242 = ssub.s32 64, 64
          %243 = vsyncadd [#allocation5], %s242
          %246 = dma.hbm_to_smem %s1, 64, [#allocation7], [#allocation5]
        $region16: #{tpu_custom_call.1} parent=11 // pred_fallthru
          _
        // Predicated region
        $region17: #{tpu_custom_call.1} parent=11 // pred_check
          %p247 = pneg %p92
        $region18: #{tpu_custom_call.1} parent=11 // pred_check_branch
          %249 = sbr.rel (%p247) target = $region20
        $region19: #{tpu_custom_call.1} parent=11 // pred_region
          %s251 = ssub.s32 16, 16
          %252 = vsyncadd [#allocation6], %s251
          %s254 = sshll.u32 %s2, 4
          %s255 = int_to_ptr.vmem [resolvable:$true] %s254
          %257 = dma.vmem_to_smem %s255, 16, [#allocation8], [#allocation6]
        $region20: #{tpu_custom_call.1} parent=11 // pred_fallthru
          _
        // Predicated region
        $region21: #{tpu_custom_call.1} parent=11 // pred_check
          %p258 = pneg %p113
        $region22: #{tpu_custom_call.1} parent=11 // pred_check_branch
          %260 = sbr.rel (%p258) target = $region24
        $region23: #{tpu_custom_call.1} parent=11 // pred_region
          %s262 = ssub.s32 256, 256
          %263 = vsyncadd [#allocation10], %s262
          %s264 = sshll.u32 [#allocation9], 4
          %s265 = int_to_ptr.vmem [resolvable:$true] %s264
          %270 = dma.hbm_to_vmem [thread:$0]  %s3, 256, %s265, [#allocation10], 128, 128, 8
        $region24: #{tpu_custom_call.1} parent=11 // pred_fallthru
          _
        // Predicated region
        $region25: #{tpu_custom_call.1} parent=11 // pred_check
          %p271 = pneg %p134
        $region26: #{tpu_custom_call.1} parent=11 // pred_check_branch
          %273 = sbr.rel (%p271) target = $region28
        $region27: #{tpu_custom_call.1} parent=11 // pred_region
          %s275 = ssub.s32 256, 256
          %276 = vsyncadd [#allocation10], %s275
          %s277 = sshll.u32 [#allocation11], 4
          %s278 = int_to_ptr.vmem [resolvable:$true] %s277
          %283 = dma.hbm_to_vmem [thread:$0]  %s4, 256, %s278, [#allocation10], 128, 128, 8
        $region28: #{tpu_custom_call.1} parent=11 // pred_fallthru
          _
        // Predicated region
        $region29: #{tpu_custom_call.1} parent=11 // pred_check
          %p284 = pneg %p155
        $region30: #{tpu_custom_call.1} parent=11 // pred_check_branch
          %286 = sbr.rel (%p284) target = $region32
        $region31: #{tpu_custom_call.1} parent=11 // pred_region
          _
        $region32: #{tpu_custom_call.1} parent=11 // pred_fallthru
          _
        // Predicated region
        $region33: #{tpu_custom_call.1} parent=11 // pred_check
          %p287 = pneg %p176
        $region34: #{tpu_custom_call.1} parent=11 // pred_check_branch
          %289 = sbr.rel (%p287) target = $region36
        $region35: #{tpu_custom_call.1} parent=11 // pred_region
          %s291 = ssub.s32 256, 256
          %292 = vsyncadd [#allocation13], %s291
          %s293 = sshll.u32 [#allocation12], 4
          %s294 = int_to_ptr.vmem [resolvable:$true] %s293
          %299 = dma.hbm_to_vmem [thread:$0]  %s6, 256, %s294, [#allocation13], 128, 128, 8
        $region36: #{tpu_custom_call.1} parent=11 // pred_fallthru
          _
        // Predicated region
        $region37: #{tpu_custom_call.1} parent=11 // pred_check
          %p300 = pneg %p197
        $region38: #{tpu_custom_call.1} parent=11 // pred_check_branch
          %302 = sbr.rel (%p300) target = $region40
        $region39: #{tpu_custom_call.1} parent=11 // pred_region
          %s304 = ssub.s32 256, 256
          %305 = vsyncadd [#allocation13], %s304
          %s306 = sshll.u32 [#allocation14], 4
          %s307 = int_to_ptr.vmem [resolvable:$true] %s306
          %312 = dma.hbm_to_vmem [thread:$0]  %s7, 256, %s307, [#allocation13], 128, 128, 8
        $region40: #{tpu_custom_call.1} parent=11 // pred_fallthru
          _
      $region12: #{tpu_custom_call.1} parent=5 // pred_fallthru
        _
      %p313 = scmp.lt.s32.totalorder %s24, 2
      // Predicated region
      $region41: #{tpu_custom_call.1} parent=5 // pred_check
        %p314 = pneg %p313
      $region42: #{tpu_custom_call.1} parent=5 // pred_check_branch
        %316 = sbr.rel (%p314) target = $region44
      $region43: #{tpu_custom_call.1} parent=5 // pred_region
        // Predicated region
        $region45: #{tpu_custom_call.1} parent=43 // pred_check
          %p317 = pneg %p44
        $region46: #{tpu_custom_call.1} parent=43 // pred_check_branch
          %319 = sbr.rel (%p317) target = $region48
        $region47: #{tpu_custom_call.1} parent=43 // pred_region
          %s320 = sand.u32 %s34, 1
          %s321 = scalar_lea.sflag [#allocation3], %s320
          %s322 = sand.u32 %s34, 1
          %s323 = smul.addr %s322, 64
          %s324 = scalar_lea.vmem [#allocation2], %s323
          %s326 = ssub.s32 1024, 1024
          %327 = vsyncadd %s321, %s326
          %s328 = smul.addr %s24, 8
          %s329 = smul.addr %s328, 128
          %s330 = scalar_lea.hbm %s0, %s329
          %s331 = sshll.u32 %s324, 4
          %s332 = int_to_ptr.vmem [resolvable:$true] %s331
          %337 = dma.hbm_to_vmem [thread:$0]  %s330, 1024, %s332, %s321, 128, 128, 8
        $region48: #{tpu_custom_call.1} parent=43 // pred_fallthru
          _
      $region44: #{tpu_custom_call.1} parent=5 // pred_fallthru
        _
      %p338 = scmp.le.s32.totalorder 1, %s24
      %p339 = scmp.lt.s32.totalorder %s24, 3
      %p340 = pnand %p338, %p339
      %p341 = pneg %p340
      // Predicated region
      $region49: #{tpu_custom_call.1} parent=5 // pred_check
        _
      $region50: #{tpu_custom_call.1} parent=5 // pred_check_branch
        %343 = sbr.rel (%p340) target = $region52
      $region51: #{tpu_custom_call.1} parent=5 // pred_region
        %s344 = ssub.s32 %s24, 1
        %s345 = sand.u32 %s37, 1
        %s346 = scalar_lea.sflag [#allocation3], %s345
        %s347 = sand.u32 %s37, 1
        %s348 = smul.addr %s347, 64
        %s349 = scalar_lea.vmem [#allocation2], %s348
        // Predicated region
        $region53: #{tpu_custom_call.1} parent=51 // pred_check
          %p350 = pneg %p50
        $region54: #{tpu_custom_call.1} parent=51 // pred_check_branch
          %352 = sbr.rel (%p350) target = $region56
        $region55: #{tpu_custom_call.1} parent=51 // pred_region
          %353 = dma.done %s346, 1024
        $region56: #{tpu_custom_call.1} parent=51 // pred_fallthru
          _
        // Predicated region
        $region57: #{tpu_custom_call.1} parent=51 // pred_check
          %p354 = pneg %p71
        $region58: #{tpu_custom_call.1} parent=51 // pred_check_branch
          %356 = sbr.rel (%p354) target = $region60
        $region59: #{tpu_custom_call.1} parent=51 // pred_region
          %357 = dma.done [#allocation5], 64
        $region60: #{tpu_custom_call.1} parent=51 // pred_fallthru
          _
        // Predicated region
        $region61: #{tpu_custom_call.1} parent=51 // pred_check
          %p358 = pneg %p92
        $region62: #{tpu_custom_call.1} parent=51 // pred_check_branch
          %360 = sbr.rel (%p358) target = $region64
        $region63: #{tpu_custom_call.1} parent=51 // pred_region
          %361 = dma.done [#allocation6], 16
        $region64: #{tpu_custom_call.1} parent=51 // pred_fallthru
          _
        // Predicated region
        $region65: #{tpu_custom_call.1} parent=51 // pred_check
          %p362 = pneg %p113
        $region66: #{tpu_custom_call.1} parent=51 // pred_check_branch
          %364 = sbr.rel (%p362) target = $region68
        $region67: #{tpu_custom_call.1} parent=51 // pred_region
          %365 = dma.done [#allocation10], 256
        $region68: #{tpu_custom_call.1} parent=51 // pred_fallthru
          _
        // Predicated region
        $region69: #{tpu_custom_call.1} parent=51 // pred_check
          %p366 = pneg %p134
        $region70: #{tpu_custom_call.1} parent=51 // pred_check_branch
          %368 = sbr.rel (%p366) target = $region72
        $region71: #{tpu_custom_call.1} parent=51 // pred_region
          %369 = dma.done [#allocation10], 256
        $region72: #{tpu_custom_call.1} parent=51 // pred_fallthru
          _
        // Predicated region
        $region73: #{tpu_custom_call.1} parent=51 // pred_check
          %p370 = pneg %p176
        $region74: #{tpu_custom_call.1} parent=51 // pred_check_branch
          %372 = sbr.rel (%p370) target = $region76
        $region75: #{tpu_custom_call.1} parent=51 // pred_region
          %373 = dma.done [#allocation13], 256
        $region76: #{tpu_custom_call.1} parent=51 // pred_fallthru
          _
        // Predicated region
        $region77: #{tpu_custom_call.1} parent=51 // pred_check
          %p374 = pneg %p197
        $region78: #{tpu_custom_call.1} parent=51 // pred_check_branch
          %376 = sbr.rel (%p374) target = $region80
        $region79: #{tpu_custom_call.1} parent=51 // pred_region
          %377 = dma.done [#allocation13], 256
        $region80: #{tpu_custom_call.1} parent=51 // pred_fallthru
          _
        %378 = sfence
        %s379 = sand.u32 %s37, 1
        %s380 = scalar_lea.sflag [#allocation3], %s379
        %s381 = sand.u32 %s37, 1
        %s382 = smul.addr %s381, 64
        %s383 = scalar_lea.vmem [#allocation2], %s382
        %p384 = pneg %p50
        %p385 = pneg %p47
        %p386 = pneg %p71
        %p387 = pneg %p68
        %p388 = pneg %p92
        %p389 = pneg %p89
        %p390 = pneg %p113
        %p391 = pneg %p110
        %p392 = pneg %p134
        %p393 = pneg %p131
        %p394 = pneg %p155
        %p395 = pneg %p152
        %p396 = pneg %p176
        %p397 = pneg %p173
        %p398 = pneg %p197
        %p399 = pneg %p194
        %p400 = pneg %p223
        %p401 = pneg %p220
        %s402 = sand.u32 %s210, 1
        %s403 = scalar_lea.sflag [#allocation4], %s402
        %s404 = sand.u32 %s210, 1
        %s405 = smul.addr %s404, 48
        %s406 = scalar_lea.vmem [#allocation15], %s405
        %v407 = vld [vmem:[#allocation9] sm:$0xff]
        %v408 = vld [vmem:[#allocation9 + $0x8] sm:$0xff]
        %v409 = vld [vmem:[#allocation11] sm:$0xff]
        %v410 = vld [vmem:[#allocation11 + $0x8] sm:$0xff]
        %v411 = vld [vmem:[%s5] sm:$0xff]
        %v412 = vld [vmem:[%s5 + $0x8] sm:$0xff]
        %v413 = vld [vmem:[#allocation12] sm:$0xff]
        %v414 = vld [vmem:[#allocation12 + $0x8] sm:$0xff]
        %v415 = vld [vmem:[#allocation14] sm:$0xff]
        %v416 = vld [vmem:[#allocation14 + $0x8] sm:$0xff]
        %s417 = sld [smem:[#allocation8]]
        %v418 = vstv %s417
        %s419 = sld [smem:[#allocation8 + $0x1]]
        %v420 = vstv %s419
        %s421 = sld [smem:[#allocation8 + $0x2]]
        %v422 = vstv %s421
        %v423 = vld [vmem:[%s349] sm:$0xff]
        %v424 = vld [vmem:[%s349 + $0x8] sm:$0xff]
        %s425 = sld [smem:[#allocation7]]
        %v426 = vstv %s425
        %v427 = vmul.f32 %v426, %v423
        %v428 = vmul.f32 %v426, %v424
        %v429 = vadd.f32 %v418, %v427
        %v430 = vadd.f32 %v418, %v428
        %s431 = sld [smem:[#allocation7 + $0x80]]
        %v432 = vstv %s431
        %v433 = vmul.f32 %v432, %v423
        %v434 = vmul.f32 %v432, %v424
        %v435 = vadd.f32 %v420, %v433
        %v436 = vadd.f32 %v420, %v434
        %s437 = sld [smem:[#allocation7 + $0x100]]
        %v438 = vstv %s437
        %v439 = vmul.f32 %v438, %v423
        %v440 = vmul.f32 %v438, %v424
        %v441 = vadd.f32 %v422, %v439
        %v442 = vadd.f32 %v422, %v440
        %s443 = scalar_lea.vmem %s349, 16 [#allocation2]
        %v444 = vld [vmem:[%s443] sm:$0xff]
        %v445 = vld [vmem:[%s443 + $0x8] sm:$0xff]
        %s446 = sld [smem:[#allocation7 + $0x1]]
        %v447 = vstv %s446
        %v448 = vmul.f32 %v447, %v444
        %v449 = vmul.f32 %v447, %v445
        %v450 = vadd.f32 %v429, %v448
        %v451 = vadd.f32 %v430, %v449
        %s452 = sld [smem:[#allocation7 + $0x81]]
        %v453 = vstv %s452
        %v454 = vmul.f32 %v453, %v444
        %v455 = vmul.f32 %v453, %v445
        %v456 = vadd.f32 %v435, %v454
        %v457 = vadd.f32 %v436, %v455
        %s458 = sld [smem:[#allocation7 + $0x101]]
        %v459 = vstv %s458
        %v460 = vmul.f32 %v459, %v444
        %v461 = vmul.f32 %v459, %v445
        %v462 = vadd.f32 %v441, %v460
        %v463 = vadd.f32 %v442, %v461
        %s464 = scalar_lea.vmem %s349, 32 [#allocation2]
        %v465 = vld [vmem:[%s464] sm:$0xff]
        %v466 = vld [vmem:[%s464 + $0x8] sm:$0xff]
        %s467 = sld [smem:[#allocation7 + $0x2]]
        %v468 = vstv %s467
        %v469 = vmul.f32 %v468, %v465
        %v470 = vmul.f32 %v468, %v466
        %v471 = vadd.f32 %v450, %v469
        %v472 = vadd.f32 %v451, %v470
        %s473 = sld [smem:[#allocation7 + $0x82]]
        %v474 = vstv %s473
        %v475 = vmul.f32 %v474, %v465
        %v476 = vmul.f32 %v474, %v466
        %v477 = vadd.f32 %v456, %v475
        %v478 = vadd.f32 %v457, %v476
        %s479 = sld [smem:[#allocation7 + $0x102]]
        %v480 = vstv %s479
        %v481 = vmul.f32 %v480, %v465
        %v482 = vmul.f32 %v480, %v466
        %v483 = vadd.f32 %v462, %v481
        %v484 = vadd.f32 %v463, %v482
        %s485 = scalar_lea.vmem %s349, 48 [#allocation2]
        %v486 = vld [vmem:[%s485] sm:$0xff]
        %v487 = vld [vmem:[%s485 + $0x8] sm:$0xff]
        %s488 = sld [smem:[#allocation7 + $0x3]]
        %v489 = vstv %s488
        %v490 = vmul.f32 %v489, %v486
        %v491 = vmul.f32 %v489, %v487
        %v492 = vadd.f32 %v471, %v490
        %v493 = vadd.f32 %v472, %v491
        %s494 = sld [smem:[#allocation7 + $0x83]]
        %v495 = vstv %s494
        %v496 = vmul.f32 %v495, %v486
        %v497 = vmul.f32 %v495, %v487
        %v498 = vadd.f32 %v477, %v496
        %v499 = vadd.f32 %v478, %v497
        %s500 = sld [smem:[#allocation7 + $0x103]]
        %v501 = vstv %s500
        %v502 = vmul.f32 %v501, %v486
        %v503 = vmul.f32 %v501, %v487
        %v504 = vadd.f32 %v483, %v502
        %v505 = vadd.f32 %v484, %v503
        %vm506 = vcmask 130048
        %v508 = vsel %vm506, %v407, 0
        %v511 = vsel %vm506, %v408, 0
        %513 = vmatprep.subr.mxu0 0.0
        %514 = vmatpush1.msra.mxu0 %v492
        %515 = vmatprep.subr.mxu0 0.0
        %516 = vmatpush1.msra.mxu0 %v493
        %517 = vmatprep.subr.mxu0 0.0
        %518 = vmatpush1.msra.mxu0 0.0
        %519 = vmatprep.subr.mxu0 0.0
        %520 = vmatpush1.msra.mxu0 0.0
        %521 = vmatprep.subr.mxu0 0.0
        %522 = vmatpush1.msra.mxu0 0.0
        %523 = vmatprep.subr.mxu0 0.0
        %524 = vmatpush1.msra.mxu0 0.0
        %525 = vmatprep.subr.mxu0 0.0
        %526 = vmatpush1.msra.mxu0 0.0
        %527 = vmatprep.subr.mxu0 0.0
        %528 = vmatpush1.msra.mxu0 0.0
        %529 = vmatprep.subr.mxu0 0.0
        %530 = vmatpush1.msra.mxu0 0.0
        %531 = vmatprep.subr.mxu0 0.0
        %532 = vmatpush1.msra.mxu0 0.0
        %533 = vmatprep.subr.mxu0 0.0
        %534 = vmatpush1.msra.mxu0 0.0
        %535 = vmatprep.subr.mxu0 0.0
        %536 = vmatpush1.msra.mxu0 0.0
        %537 = vmatprep.subr.mxu0 0.0
        %538 = vmatpush1.msra.mxu0 0.0
        %539 = vmatprep.subr.mxu0 0.0
        %540 = vmatpush1.msra.mxu0 0.0
        %541 = vmatprep.subr.mxu0 0.0
        %542 = vmatpush1.msra.mxu0 0.0
        %543 = vmatprep.subr.mxu0 0.0
        %544 = vmatpush1.msra.mxu0 0.0
        %545 = vmatprep.subr.mxu0 0.0
        %546 = vmatpush1.msra.mxu0 0.0
        %547 = vmatprep.subr.mxu0 0.0
        %548 = vmatpush1.msra.mxu0 0.0
        %549 = vmatprep.subr.mxu0 0.0
        %550 = vmatpush1.msra.mxu0 0.0
        %551 = vmatprep.subr.mxu0 0.0
        %552 = vmatpush1.msra.mxu0 0.0
        %553 = vmatprep.subr.mxu0 0.0
        %554 = vmatpush1.msra.mxu0 0.0
        %555 = vmatprep.subr.mxu0 0.0
        %556 = vmatpush1.msra.mxu0 0.0
        %557 = vmatprep.subr.mxu0 0.0
        %558 = vmatpush1.msra.mxu0 0.0
        %559 = vmatprep.subr.mxu0 0.0
        %560 = vmatpush1.msra.mxu0 0.0
        %561 = vmatprep.subr.mxu0 0.0
        %562 = vmatpush1.msra.mxu0 0.0
        %563 = vmatprep.subr.mxu0 0.0
        %564 = vmatpush1.msra.mxu0 0.0
        %565 = vmatprep.subr.mxu0 0.0
        %566 = vmatpush1.msra.mxu0 0.0
        %567 = vmatprep.subr.mxu0 0.0
        %568 = vmatpush1.msra.mxu0 0.0
        %569 = vmatprep.subr.mxu0 0.0
        %570 = vmatpush1.msra.mxu0 0.0
        %571 = vmatprep.subr.mxu0 0.0
        %572 = vmatpush1.msra.mxu0 0.0
        %573 = vmatprep.subr.mxu0 0.0
        %574 = vmatpush1.msra.mxu0 0.0
        %575 = vmatprep.subr.mxu0 0.0
        %576 = vmatpush1.msra.mxu0 0.0
        %577 = vmatprep.mubr.f32.mxu0 0.0
        %578 = vmatmul.mubr.f32.gmra.mrb[0].mxu0 %v508
        %v579 = vpop.f32.mrb[0].mxu0
        %v580 = vadd.f32 0.0, %v579
        %v581 = vpop.f32.mrb[0].mxu0
        %582 = vmatprep.mubr.f32.mxu0 0.0
        %583 = vmatmul.mubr.f32.gmra.mrb[0].mxu0 %v511
        %v584 = vpop.f32.mrb[0].mxu0
        %v585 = vadd.f32 0.0, %v584
        %v586 = vpop.f32.mrb[0].mxu0
        %587 = vdwg.mxu0
        %v589 = vsel %vm506, %v409, 0
        %v592 = vsel %vm506, %v410, 0
        %594 = vmatprep.subr.mxu0 0.0
        %595 = vmatpush1.msra.mxu0 %v492
        %596 = vmatprep.subr.mxu0 0.0
        %597 = vmatpush1.msra.mxu0 %v493
        %598 = vmatprep.subr.mxu0 0.0
        %599 = vmatpush1.msra.mxu0 0.0
        %600 = vmatprep.subr.mxu0 0.0
        %601 = vmatpush1.msra.mxu0 0.0
        %602 = vmatprep.subr.mxu0 0.0
        %603 = vmatpush1.msra.mxu0 0.0
        %604 = vmatprep.subr.mxu0 0.0
        %605 = vmatpush1.msra.mxu0 0.0
        %606 = vmatprep.subr.mxu0 0.0
        %607 = vmatpush1.msra.mxu0 0.0
        %608 = vmatprep.subr.mxu0 0.0
        %609 = vmatpush1.msra.mxu0 0.0
        %610 = vmatprep.subr.mxu0 0.0
        %611 = vmatpush1.msra.mxu0 0.0
        %612 = vmatprep.subr.mxu0 0.0
        %613 = vmatpush1.msra.mxu0 0.0
        %614 = vmatprep.subr.mxu0 0.0
        %615 = vmatpush1.msra.mxu0 0.0
        %616 = vmatprep.subr.mxu0 0.0
        %617 = vmatpush1.msra.mxu0 0.0
        %618 = vmatprep.subr.mxu0 0.0
        %619 = vmatpush1.msra.mxu0 0.0
        %620 = vmatprep.subr.mxu0 0.0
        %621 = vmatpush1.msra.mxu0 0.0
        %622 = vmatprep.subr.mxu0 0.0
        %623 = vmatpush1.msra.mxu0 0.0
        %624 = vmatprep.subr.mxu0 0.0
        %625 = vmatpush1.msra.mxu0 0.0
        %626 = vmatprep.subr.mxu0 0.0
        %627 = vmatpush1.msra.mxu0 0.0
        %628 = vmatprep.subr.mxu0 0.0
        %629 = vmatpush1.msra.mxu0 0.0
        %630 = vmatprep.subr.mxu0 0.0
        %631 = vmatpush1.msra.mxu0 0.0
        %632 = vmatprep.subr.mxu0 0.0
        %633 = vmatpush1.msra.mxu0 0.0
        %634 = vmatprep.subr.mxu0 0.0
        %635 = vmatpush1.msra.mxu0 0.0
        %636 = vmatprep.subr.mxu0 0.0
        %637 = vmatpush1.msra.mxu0 0.0
        %638 = vmatprep.subr.mxu0 0.0
        %639 = vmatpush1.msra.mxu0 0.0
        %640 = vmatprep.subr.mxu0 0.0
        %641 = vmatpush1.msra.mxu0 0.0
        %642 = vmatprep.subr.mxu0 0.0
        %643 = vmatpush1.msra.mxu0 0.0
        %644 = vmatprep.subr.mxu0 0.0
        %645 = vmatpush1.msra.mxu0 0.0
        %646 = vmatprep.subr.mxu0 0.0
        %647 = vmatpush1.msra.mxu0 0.0
        %648 = vmatprep.subr.mxu0 0.0
        %649 = vmatpush1.msra.mxu0 0.0
        %650 = vmatprep.subr.mxu0 0.0
        %651 = vmatpush1.msra.mxu0 0.0
        %652 = vmatprep.subr.mxu0 0.0
        %653 = vmatpush1.msra.mxu0 0.0
        %654 = vmatprep.subr.mxu0 0.0
        %655 = vmatpush1.msra.mxu0 0.0
        %656 = vmatprep.subr.mxu0 0.0
        %657 = vmatpush1.msra.mxu0 0.0
        %658 = vmatprep.mubr.f32.mxu0 0.0
        %659 = vmatmul.mubr.f32.gmra.mrb[0].mxu0 %v589
        %v660 = vpop.f32.mrb[0].mxu0
        %v661 = vadd.f32 0.0, %v660
        %v662 = vpop.f32.mrb[0].mxu0
        %663 = vmatprep.mubr.f32.mxu0 0.0
        %664 = vmatmul.mubr.f32.gmra.mrb[0].mxu0 %v592
        %v665 = vpop.f32.mrb[0].mxu0
        %v666 = vadd.f32 0.0, %v665
        %v667 = vpop.f32.mrb[0].mxu0
        %668 = vdwg.mxu0
        %v670 = vsel %vm506, %v580, 0
        %v673 = vsel %vm506, %v585, 0
        %675 = vmatprep.subr.mxu0 0.0
        %676 = vmatpush1.msra.mxu0 %v411
        %677 = vmatprep.subr.mxu0 0.0
        %678 = vmatpush1.msra.mxu0 %v412
        %679 = vmatprep.subr.mxu0 0.0
        %680 = vmatpush1.msra.mxu0 0.0
        %681 = vmatprep.subr.mxu0 0.0
        %682 = vmatpush1.msra.mxu0 0.0
        %683 = vmatprep.subr.mxu0 0.0
        %684 = vmatpush1.msra.mxu0 0.0
        %685 = vmatprep.subr.mxu0 0.0
        %686 = vmatpush1.msra.mxu0 0.0
        %687 = vmatprep.subr.mxu0 0.0
        %688 = vmatpush1.msra.mxu0 0.0
        %689 = vmatprep.subr.mxu0 0.0
        %690 = vmatpush1.msra.mxu0 0.0
        %691 = vmatprep.subr.mxu0 0.0
        %692 = vmatpush1.msra.mxu0 0.0
        %693 = vmatprep.subr.mxu0 0.0
        %694 = vmatpush1.msra.mxu0 0.0
        %695 = vmatprep.subr.mxu0 0.0
        %696 = vmatpush1.msra.mxu0 0.0
        %697 = vmatprep.subr.mxu0 0.0
        %698 = vmatpush1.msra.mxu0 0.0
        %699 = vmatprep.subr.mxu0 0.0
        %700 = vmatpush1.msra.mxu0 0.0
        %701 = vmatprep.subr.mxu0 0.0
        %702 = vmatpush1.msra.mxu0 0.0
        %703 = vmatprep.subr.mxu0 0.0
        %704 = vmatpush1.msra.mxu0 0.0
        %705 = vmatprep.subr.mxu0 0.0
        %706 = vmatpush1.msra.mxu0 0.0
        %707 = vmatprep.subr.mxu0 0.0
        %708 = vmatpush1.msra.mxu0 0.0
        %709 = vmatprep.subr.mxu0 0.0
        %710 = vmatpush1.msra.mxu0 0.0
        %711 = vmatprep.subr.mxu0 0.0
        %712 = vmatpush1.msra.mxu0 0.0
        %713 = vmatprep.subr.mxu0 0.0
        %714 = vmatpush1.msra.mxu0 0.0
        %715 = vmatprep.subr.mxu0 0.0
        %716 = vmatpush1.msra.mxu0 0.0
        %717 = vmatprep.subr.mxu0 0.0
        %718 = vmatpush1.msra.mxu0 0.0
        %719 = vmatprep.subr.mxu0 0.0
        %720 = vmatpush1.msra.mxu0 0.0
        %721 = vmatprep.subr.mxu0 0.0
        %722 = vmatpush1.msra.mxu0 0.0
        %723 = vmatprep.subr.mxu0 0.0
        %724 = vmatpush1.msra.mxu0 0.0
        %725 = vmatprep.subr.mxu0 0.0
        %726 = vmatpush1.msra.mxu0 0.0
        %727 = vmatprep.subr.mxu0 0.0
        %728 = vmatpush1.msra.mxu0 0.0
        %729 = vmatprep.subr.mxu0 0.0
        %730 = vmatpush1.msra.mxu0 0.0
        %731 = vmatprep.subr.mxu0 0.0
        %732 = vmatpush1.msra.mxu0 0.0
        %733 = vmatprep.subr.mxu0 0.0
        %734 = vmatpush1.msra.mxu0 0.0
        %735 = vmatprep.subr.mxu0 0.0
        %736 = vmatpush1.msra.mxu0 0.0
        %737 = vmatprep.subr.mxu0 0.0
        %738 = vmatpush1.msra.mxu0 0.0
        %739 = vmatprep.mubr.f32.mxu0 0.0
        %740 = vmatmul.mubr.f32.gmra.mrb[0].mxu0 %v670
        %v741 = vpop.f32.mrb[0].mxu0
        %v742 = vadd.f32 0.0, %v741
        %v743 = vpop.f32.mrb[0].mxu0
        %744 = vmatprep.mubr.f32.mxu0 0.0
        %745 = vmatmul.mubr.f32.gmra.mrb[0].mxu0 %v673
        %v746 = vpop.f32.mrb[0].mxu0
        %v747 = vadd.f32 0.0, %v746
        %v748 = vpop.f32.mrb[0].mxu0
        %749 = vdwg.mxu0
        %v751 = vsel %vm506, %v661, 0
        %v754 = vsel %vm506, %v666, 0
        %756 = vmatprep.subr.mxu0 0.0
        %757 = vmatpush1.msra.mxu0 %v413
        %758 = vmatprep.subr.mxu0 0.0
        %759 = vmatpush1.msra.mxu0 %v414
        %760 = vmatprep.subr.mxu0 0.0
        %761 = vmatpush1.msra.mxu0 0.0
        %762 = vmatprep.subr.mxu0 0.0
        %763 = vmatpush1.msra.mxu0 0.0
        %764 = vmatprep.subr.mxu0 0.0
        %765 = vmatpush1.msra.mxu0 0.0
        %766 = vmatprep.subr.mxu0 0.0
        %767 = vmatpush1.msra.mxu0 0.0
        %768 = vmatprep.subr.mxu0 0.0
        %769 = vmatpush1.msra.mxu0 0.0
        %770 = vmatprep.subr.mxu0 0.0
        %771 = vmatpush1.msra.mxu0 0.0
        %772 = vmatprep.subr.mxu0 0.0
        %773 = vmatpush1.msra.mxu0 0.0
        %774 = vmatprep.subr.mxu0 0.0
        %775 = vmatpush1.msra.mxu0 0.0
        %776 = vmatprep.subr.mxu0 0.0
        %777 = vmatpush1.msra.mxu0 0.0
        %778 = vmatprep.subr.mxu0 0.0
        %779 = vmatpush1.msra.mxu0 0.0
        %780 = vmatprep.subr.mxu0 0.0
        %781 = vmatpush1.msra.mxu0 0.0
        %782 = vmatprep.subr.mxu0 0.0
        %783 = vmatpush1.msra.mxu0 0.0
        %784 = vmatprep.subr.mxu0 0.0
        %785 = vmatpush1.msra.mxu0 0.0
        %786 = vmatprep.subr.mxu0 0.0
        %787 = vmatpush1.msra.mxu0 0.0
        %788 = vmatprep.subr.mxu0 0.0
        %789 = vmatpush1.msra.mxu0 0.0
        %790 = vmatprep.subr.mxu0 0.0
        %791 = vmatpush1.msra.mxu0 0.0
        %792 = vmatprep.subr.mxu0 0.0
        %793 = vmatpush1.msra.mxu0 0.0
        %794 = vmatprep.subr.mxu0 0.0
        %795 = vmatpush1.msra.mxu0 0.0
        %796 = vmatprep.subr.mxu0 0.0
        %797 = vmatpush1.msra.mxu0 0.0
        %798 = vmatprep.subr.mxu0 0.0
        %799 = vmatpush1.msra.mxu0 0.0
        %800 = vmatprep.subr.mxu0 0.0
        %801 = vmatpush1.msra.mxu0 0.0
        %802 = vmatprep.subr.mxu0 0.0
        %803 = vmatpush1.msra.mxu0 0.0
        %804 = vmatprep.subr.mxu0 0.0
        %805 = vmatpush1.msra.mxu0 0.0
        %806 = vmatprep.subr.mxu0 0.0
        %807 = vmatpush1.msra.mxu0 0.0
        %808 = vmatprep.subr.mxu0 0.0
        %809 = vmatpush1.msra.mxu0 0.0
        %810 = vmatprep.subr.mxu0 0.0
        %811 = vmatpush1.msra.mxu0 0.0
        %812 = vmatprep.subr.mxu0 0.0
        %813 = vmatpush1.msra.mxu0 0.0
        %814 = vmatprep.subr.mxu0 0.0
        %815 = vmatpush1.msra.mxu0 0.0
        %816 = vmatprep.subr.mxu0 0.0
        %817 = vmatpush1.msra.mxu0 0.0
        %818 = vmatprep.subr.mxu0 0.0
        %819 = vmatpush1.msra.mxu0 0.0
        %820 = vmatprep.mubr.f32.mxu0 0.0
        %821 = vmatmul.mubr.f32.gmra.mrb[0].mxu0 %v751
        %v822 = vpop.f32.mrb[0].mxu0
        %v823 = vadd.f32 0.0, %v822
        %v824 = vpop.f32.mrb[0].mxu0
        %825 = vmatprep.mubr.f32.mxu0 0.0
        %826 = vmatmul.mubr.f32.gmra.mrb[0].mxu0 %v754
        %v827 = vpop.f32.mrb[0].mxu0
        %v828 = vadd.f32 0.0, %v827
        %v829 = vpop.f32.mrb[0].mxu0
        %830 = vdwg.mxu0
        %v831 = vsub.f32 %v742, %v823
        %v832 = vsub.f32 %v747, %v828
        %833 = vmatprep.subr.mxu0 0.0
        %834 = vmatpush1.msra.mxu0 %v411
        %835 = vmatprep.subr.mxu0 0.0
        %836 = vmatpush1.msra.mxu0 %v412
        %837 = vmatprep.subr.mxu0 0.0
        %838 = vmatpush1.msra.mxu0 0.0
        %839 = vmatprep.subr.mxu0 0.0
        %840 = vmatpush1.msra.mxu0 0.0
        %841 = vmatprep.subr.mxu0 0.0
        %842 = vmatpush1.msra.mxu0 0.0
        %843 = vmatprep.subr.mxu0 0.0
        %844 = vmatpush1.msra.mxu0 0.0
        %845 = vmatprep.subr.mxu0 0.0
        %846 = vmatpush1.msra.mxu0 0.0
        %847 = vmatprep.subr.mxu0 0.0
        %848 = vmatpush1.msra.mxu0 0.0
        %849 = vmatprep.subr.mxu0 0.0
        %850 = vmatpush1.msra.mxu0 0.0
        %851 = vmatprep.subr.mxu0 0.0
        %852 = vmatpush1.msra.mxu0 0.0
        %853 = vmatprep.subr.mxu0 0.0
        %854 = vmatpush1.msra.mxu0 0.0
        %855 = vmatprep.subr.mxu0 0.0
        %856 = vmatpush1.msra.mxu0 0.0
        %857 = vmatprep.subr.mxu0 0.0
        %858 = vmatpush1.msra.mxu0 0.0
        %859 = vmatprep.subr.mxu0 0.0
        %860 = vmatpush1.msra.mxu0 0.0
        %861 = vmatprep.subr.mxu0 0.0
        %862 = vmatpush1.msra.mxu0 0.0
        %863 = vmatprep.subr.mxu0 0.0
        %864 = vmatpush1.msra.mxu0 0.0
        %865 = vmatprep.subr.mxu0 0.0
        %866 = vmatpush1.msra.mxu0 0.0
        %867 = vmatprep.subr.mxu0 0.0
        %868 = vmatpush1.msra.mxu0 0.0
        %869 = vmatprep.subr.mxu0 0.0
        %870 = vmatpush1.msra.mxu0 0.0
        %871 = vmatprep.subr.mxu0 0.0
        %872 = vmatpush1.msra.mxu0 0.0
        %873 = vmatprep.subr.mxu0 0.0
        %874 = vmatpush1.msra.mxu0 0.0
        %875 = vmatprep.subr.mxu0 0.0
        %876 = vmatpush1.msra.mxu0 0.0
        %877 = vmatprep.subr.mxu0 0.0
        %878 = vmatpush1.msra.mxu0 0.0
        %879 = vmatprep.subr.mxu0 0.0
        %880 = vmatpush1.msra.mxu0 0.0
        %881 = vmatprep.subr.mxu0 0.0
        %882 = vmatpush1.msra.mxu0 0.0
        %883 = vmatprep.subr.mxu0 0.0
        %884 = vmatpush1.msra.mxu0 0.0
        %885 = vmatprep.subr.mxu0 0.0
        %886 = vmatpush1.msra.mxu0 0.0
        %887 = vmatprep.subr.mxu0 0.0
        %888 = vmatpush1.msra.mxu0 0.0
        %889 = vmatprep.subr.mxu0 0.0
        %890 = vmatpush1.msra.mxu0 0.0
        %891 = vmatprep.subr.mxu0 0.0
        %892 = vmatpush1.msra.mxu0 0.0
        %893 = vmatprep.subr.mxu0 0.0
        %894 = vmatpush1.msra.mxu0 0.0
        %895 = vmatprep.subr.mxu0 0.0
        %896 = vmatpush1.msra.mxu0 0.0
        %897 = vmatprep.mubr.f32.mxu0 0.0
        %898 = vmatmul.mubr.f32.gmra.mrb[0].mxu0 %v751
        %v899 = vpop.f32.mrb[0].mxu0
        %v900 = vadd.f32 0.0, %v899
        %v901 = vpop.f32.mrb[0].mxu0
        %902 = vmatprep.mubr.f32.mxu0 0.0
        %903 = vmatmul.mubr.f32.gmra.mrb[0].mxu0 %v754
        %v904 = vpop.f32.mrb[0].mxu0
        %v905 = vadd.f32 0.0, %v904
        %v906 = vpop.f32.mrb[0].mxu0
        %907 = vdwg.mxu0
        %908 = vmatprep.subr.mxu0 0.0
        %909 = vmatpush1.msra.mxu0 %v413
        %910 = vmatprep.subr.mxu0 0.0
        %911 = vmatpush1.msra.mxu0 %v414
        %912 = vmatprep.subr.mxu0 0.0
        %913 = vmatpush1.msra.mxu0 0.0
        %914 = vmatprep.subr.mxu0 0.0
        %915 = vmatpush1.msra.mxu0 0.0
        %916 = vmatprep.subr.mxu0 0.0
        %917 = vmatpush1.msra.mxu0 0.0
        %918 = vmatprep.subr.mxu0 0.0
        %919 = vmatpush1.msra.mxu0 0.0
        %920 = vmatprep.subr.mxu0 0.0
        %921 = vmatpush1.msra.mxu0 0.0
        %922 = vmatprep.subr.mxu0 0.0
        %923 = vmatpush1.msra.mxu0 0.0
        %924 = vmatprep.subr.mxu0 0.0
        %925 = vmatpush1.msra.mxu0 0.0
        %926 = vmatprep.subr.mxu0 0.0
        %927 = vmatpush1.msra.mxu0 0.0
        %928 = vmatprep.subr.mxu0 0.0
        %929 = vmatpush1.msra.mxu0 0.0
        %930 = vmatprep.subr.mxu0 0.0
        %931 = vmatpush1.msra.mxu0 0.0
        %932 = vmatprep.subr.mxu0 0.0
        %933 = vmatpush1.msra.mxu0 0.0
        %934 = vmatprep.subr.mxu0 0.0
        %935 = vmatpush1.msra.mxu0 0.0
        %936 = vmatprep.subr.mxu0 0.0
        %937 = vmatpush1.msra.mxu0 0.0
        %938 = vmatprep.subr.mxu0 0.0
        %939 = vmatpush1.msra.mxu0 0.0
        %940 = vmatprep.subr.mxu0 0.0
        %941 = vmatpush1.msra.mxu0 0.0
        %942 = vmatprep.subr.mxu0 0.0
        %943 = vmatpush1.msra.mxu0 0.0
        %944 = vmatprep.subr.mxu0 0.0
        %945 = vmatpush1.msra.mxu0 0.0
        %946 = vmatprep.subr.mxu0 0.0
        %947 = vmatpush1.msra.mxu0 0.0
        %948 = vmatprep.subr.mxu0 0.0
        %949 = vmatpush1.msra.mxu0 0.0
        %950 = vmatprep.subr.mxu0 0.0
        %951 = vmatpush1.msra.mxu0 0.0
        %952 = vmatprep.subr.mxu0 0.0
        %953 = vmatpush1.msra.mxu0 0.0
        %954 = vmatprep.subr.mxu0 0.0
        %955 = vmatpush1.msra.mxu0 0.0
        %956 = vmatprep.subr.mxu0 0.0
        %957 = vmatpush1.msra.mxu0 0.0
        %958 = vmatprep.subr.mxu0 0.0
        %959 = vmatpush1.msra.mxu0 0.0
        %960 = vmatprep.subr.mxu0 0.0
        %961 = vmatpush1.msra.mxu0 0.0
        %962 = vmatprep.subr.mxu0 0.0
        %963 = vmatpush1.msra.mxu0 0.0
        %964 = vmatprep.subr.mxu0 0.0
        %965 = vmatpush1.msra.mxu0 0.0
        %966 = vmatprep.subr.mxu0 0.0
        %967 = vmatpush1.msra.mxu0 0.0
        %968 = vmatprep.subr.mxu0 0.0
        %969 = vmatpush1.msra.mxu0 0.0
        %970 = vmatprep.subr.mxu0 0.0
        %971 = vmatpush1.msra.mxu0 0.0
        %972 = vmatprep.mubr.f32.mxu0 0.0
        %973 = vmatmul.mubr.f32.gmra.mrb[0].mxu0 %v670
        %v974 = vpop.f32.mrb[0].mxu0
        %v975 = vadd.f32 %v900, %v974
        %v976 = vpop.f32.mrb[0].mxu0
        %977 = vmatprep.mubr.f32.mxu0 0.0
        %978 = vmatmul.mubr.f32.gmra.mrb[0].mxu0 %v673
        %v979 = vpop.f32.mrb[0].mxu0
        %v980 = vadd.f32 %v905, %v979
        %v981 = vpop.f32.mrb[0].mxu0
        %982 = vdwg.mxu0
        %v983 = vsub.f32 0.0, %v975
        %v984 = vsub.f32 0.0, %v980
        %v985 = vmul.f32 %v831, %v415
        %v986 = vmul.f32 %v832, %v416
        %v987 = vmul.f32 %v983, %v415
        %v988 = vmul.f32 %v984, %v416
        %989 = vmatprep.subr.mxu0 0.0
        %990 = vmatpush1.msra.mxu0 %v985
        %991 = vmatprep.subr.mxu0 0.0
        %992 = vmatpush1.msra.mxu0 %v986
        %993 = vmatprep.subr.mxu0 0.0
        %994 = vmatpush1.msra.mxu0 0.0
        %995 = vmatprep.subr.mxu0 0.0
        %996 = vmatpush1.msra.mxu0 0.0
        %997 = vmatprep.subr.mxu0 0.0
        %998 = vmatpush1.msra.mxu0 0.0
        %999 = vmatprep.subr.mxu0 0.0
        %1000 = vmatpush1.msra.mxu0 0.0
        %1001 = vmatprep.subr.mxu0 0.0
        %1002 = vmatpush1.msra.mxu0 0.0
        %1003 = vmatprep.subr.mxu0 0.0
        %1004 = vmatpush1.msra.mxu0 0.0
        %1005 = vmatprep.subr.mxu0 0.0
        %1006 = vmatpush1.msra.mxu0 0.0
        %1007 = vmatprep.subr.mxu0 0.0
        %1008 = vmatpush1.msra.mxu0 0.0
        %1009 = vmatprep.subr.mxu0 0.0
        %1010 = vmatpush1.msra.mxu0 0.0
        %1011 = vmatprep.subr.mxu0 0.0
        %1012 = vmatpush1.msra.mxu0 0.0
        %1013 = vmatprep.subr.mxu0 0.0
        %1014 = vmatpush1.msra.mxu0 0.0
        %1015 = vmatprep.subr.mxu0 0.0
        %1016 = vmatpush1.msra.mxu0 0.0
        %1017 = vmatprep.subr.mxu0 0.0
        %1018 = vmatpush1.msra.mxu0 0.0
        %1019 = vmatprep.subr.mxu0 0.0
        %1020 = vmatpush1.msra.mxu0 0.0
        %1021 = vmatprep.subr.mxu0 0.0
        %1022 = vmatpush1.msra.mxu0 0.0
        %1023 = vmatprep.subr.mxu0 0.0
        %1024 = vmatpush1.msra.mxu0 0.0
        %1025 = vmatprep.subr.mxu0 0.0
        %1026 = vmatpush1.msra.mxu0 0.0
        %1027 = vmatprep.subr.mxu0 0.0
        %1028 = vmatpush1.msra.mxu0 0.0
        %1029 = vmatprep.subr.mxu0 0.0
        %1030 = vmatpush1.msra.mxu0 0.0
        %1031 = vmatprep.subr.mxu0 0.0
        %1032 = vmatpush1.msra.mxu0 0.0
        %1033 = vmatprep.subr.mxu0 0.0
        %1034 = vmatpush1.msra.mxu0 0.0
        %1035 = vmatprep.subr.mxu0 0.0
        %1036 = vmatpush1.msra.mxu0 0.0
        %1037 = vmatprep.subr.mxu0 0.0
        %1038 = vmatpush1.msra.mxu0 0.0
        %1039 = vmatprep.subr.mxu0 0.0
        %1040 = vmatpush1.msra.mxu0 0.0
        %1041 = vmatprep.subr.mxu0 0.0
        %1042 = vmatpush1.msra.mxu0 0.0
        %1043 = vmatprep.subr.mxu0 0.0
        %1044 = vmatpush1.msra.mxu0 0.0
        %1045 = vmatprep.subr.mxu0 0.0
        %1046 = vmatpush1.msra.mxu0 0.0
        %1047 = vmatprep.subr.mxu0 0.0
        %1048 = vmatpush1.msra.mxu0 0.0
        %1049 = vmatprep.subr.mxu0 0.0
        %1050 = vmatpush1.msra.mxu0 0.0
        %1051 = vmatprep.subr.mxu0 0.0
        %1052 = vmatpush1.msra.mxu0 0.0
        %1053 = vmatprep.mubr.f32.mxu0 0.0
        %1054 = vmatmul.mubr.f32.gmra.mrb[0].mxu0 %v508
        %v1055 = vpop.f32.mrb[0].mxu0
        %v1056 = vadd.f32 0.0, %v1055
        %v1057 = vpop.f32.mrb[0].mxu0
        %1058 = vmatprep.mubr.f32.mxu0 0.0
        %1059 = vmatmul.mubr.f32.gmra.mrb[0].mxu0 %v511
        %v1060 = vpop.f32.mrb[0].mxu0
        %v1061 = vadd.f32 0.0, %v1060
        %v1062 = vpop.f32.mrb[0].mxu0
        %1063 = vdwg.mxu0
        %1064 = vmatprep.subr.mxu0 0.0
        %1065 = vmatpush1.msra.mxu0 %v987
        %1066 = vmatprep.subr.mxu0 0.0
        %1067 = vmatpush1.msra.mxu0 %v988
        %1068 = vmatprep.subr.mxu0 0.0
        %1069 = vmatpush1.msra.mxu0 0.0
        %1070 = vmatprep.subr.mxu0 0.0
        %1071 = vmatpush1.msra.mxu0 0.0
        %1072 = vmatprep.subr.mxu0 0.0
        %1073 = vmatpush1.msra.mxu0 0.0
        %1074 = vmatprep.subr.mxu0 0.0
        %1075 = vmatpush1.msra.mxu0 0.0
        %1076 = vmatprep.subr.mxu0 0.0
        %1077 = vmatpush1.msra.mxu0 0.0
        %1078 = vmatprep.subr.mxu0 0.0
        %1079 = vmatpush1.msra.mxu0 0.0
        %1080 = vmatprep.subr.mxu0 0.0
        %1081 = vmatpush1.msra.mxu0 0.0
        %1082 = vmatprep.subr.mxu0 0.0
        %1083 = vmatpush1.msra.mxu0 0.0
        %1084 = vmatprep.subr.mxu0 0.0
        %1085 = vmatpush1.msra.mxu0 0.0
        %1086 = vmatprep.subr.mxu0 0.0
        %1087 = vmatpush1.msra.mxu0 0.0
        %1088 = vmatprep.subr.mxu0 0.0
        %1089 = vmatpush1.msra.mxu0 0.0
        %1090 = vmatprep.subr.mxu0 0.0
        %1091 = vmatpush1.msra.mxu0 0.0
        %1092 = vmatprep.subr.mxu0 0.0
        %1093 = vmatpush1.msra.mxu0 0.0
        %1094 = vmatprep.subr.mxu0 0.0
        %1095 = vmatpush1.msra.mxu0 0.0
        %1096 = vmatprep.subr.mxu0 0.0
        %1097 = vmatpush1.msra.mxu0 0.0
        %1098 = vmatprep.subr.mxu0 0.0
        %1099 = vmatpush1.msra.mxu0 0.0
        %1100 = vmatprep.subr.mxu0 0.0
        %1101 = vmatpush1.msra.mxu0 0.0
        %1102 = vmatprep.subr.mxu0 0.0
        %1103 = vmatpush1.msra.mxu0 0.0
        %1104 = vmatprep.subr.mxu0 0.0
        %1105 = vmatpush1.msra.mxu0 0.0
        %1106 = vmatprep.subr.mxu0 0.0
        %1107 = vmatpush1.msra.mxu0 0.0
        %1108 = vmatprep.subr.mxu0 0.0
        %1109 = vmatpush1.msra.mxu0 0.0
        %1110 = vmatprep.subr.mxu0 0.0
        %1111 = vmatpush1.msra.mxu0 0.0
        %1112 = vmatprep.subr.mxu0 0.0
        %1113 = vmatpush1.msra.mxu0 0.0
        %1114 = vmatprep.subr.mxu0 0.0
        %1115 = vmatpush1.msra.mxu0 0.0
        %1116 = vmatprep.subr.mxu0 0.0
        %1117 = vmatpush1.msra.mxu0 0.0
        %1118 = vmatprep.subr.mxu0 0.0
        %1119 = vmatpush1.msra.mxu0 0.0
        %1120 = vmatprep.subr.mxu0 0.0
        %1121 = vmatpush1.msra.mxu0 0.0
        %1122 = vmatprep.subr.mxu0 0.0
        %1123 = vmatpush1.msra.mxu0 0.0
        %1124 = vmatprep.subr.mxu0 0.0
        %1125 = vmatpush1.msra.mxu0 0.0
        %1126 = vmatprep.subr.mxu0 0.0
        %1127 = vmatpush1.msra.mxu0 0.0
        %1128 = vmatprep.mubr.f32.mxu0 0.0
        %1129 = vmatmul.mubr.f32.gmra.mrb[0].mxu0 %v589
        %v1130 = vpop.f32.mrb[0].mxu0
        %v1131 = vadd.f32 0.0, %v1130
        %v1132 = vpop.f32.mrb[0].mxu0
        %1133 = vmatprep.mubr.f32.mxu0 0.0
        %1134 = vmatmul.mubr.f32.gmra.mrb[0].mxu0 %v592
        %v1135 = vpop.f32.mrb[0].mxu0
        %v1136 = vadd.f32 0.0, %v1135
        %v1137 = vpop.f32.mrb[0].mxu0
        %1138 = vdwg.mxu0
        %v1139 = vsub.f32 %v1056, %v1131
        %v1140 = vsub.f32 %v1061, %v1136
        %1141 = vmatprep.subr.mxu0 0.0
        %1142 = vmatpush1.msra.mxu0 %v985
        %1143 = vmatprep.subr.mxu0 0.0
        %1144 = vmatpush1.msra.mxu0 %v986
        %1145 = vmatprep.subr.mxu0 0.0
        %1146 = vmatpush1.msra.mxu0 0.0
        %1147 = vmatprep.subr.mxu0 0.0
        %1148 = vmatpush1.msra.mxu0 0.0
        %1149 = vmatprep.subr.mxu0 0.0
        %1150 = vmatpush1.msra.mxu0 0.0
        %1151 = vmatprep.subr.mxu0 0.0
        %1152 = vmatpush1.msra.mxu0 0.0
        %1153 = vmatprep.subr.mxu0 0.0
        %1154 = vmatpush1.msra.mxu0 0.0
        %1155 = vmatprep.subr.mxu0 0.0
        %1156 = vmatpush1.msra.mxu0 0.0
        %1157 = vmatprep.subr.mxu0 0.0
        %1158 = vmatpush1.msra.mxu0 0.0
        %1159 = vmatprep.subr.mxu0 0.0
        %1160 = vmatpush1.msra.mxu0 0.0
        %1161 = vmatprep.subr.mxu0 0.0
        %1162 = vmatpush1.msra.mxu0 0.0
        %1163 = vmatprep.subr.mxu0 0.0
        %1164 = vmatpush1.msra.mxu0 0.0
        %1165 = vmatprep.subr.mxu0 0.0
        %1166 = vmatpush1.msra.mxu0 0.0
        %1167 = vmatprep.subr.mxu0 0.0
        %1168 = vmatpush1.msra.mxu0 0.0
        %1169 = vmatprep.subr.mxu0 0.0
        %1170 = vmatpush1.msra.mxu0 0.0
        %1171 = vmatprep.subr.mxu0 0.0
        %1172 = vmatpush1.msra.mxu0 0.0
        %1173 = vmatprep.subr.mxu0 0.0
        %1174 = vmatpush1.msra.mxu0 0.0
        %1175 = vmatprep.subr.mxu0 0.0
        %1176 = vmatpush1.msra.mxu0 0.0
        %1177 = vmatprep.subr.mxu0 0.0
        %1178 = vmatpush1.msra.mxu0 0.0
        %1179 = vmatprep.subr.mxu0 0.0
        %1180 = vmatpush1.msra.mxu0 0.0
        %1181 = vmatprep.subr.mxu0 0.0
        %1182 = vmatpush1.msra.mxu0 0.0
        %1183 = vmatprep.subr.mxu0 0.0
        %1184 = vmatpush1.msra.mxu0 0.0
        %1185 = vmatprep.subr.mxu0 0.0
        %1186 = vmatpush1.msra.mxu0 0.0
        %1187 = vmatprep.subr.mxu0 0.0
        %1188 = vmatpush1.msra.mxu0 0.0
        %1189 = vmatprep.subr.mxu0 0.0
        %1190 = vmatpush1.msra.mxu0 0.0
        %1191 = vmatprep.subr.mxu0 0.0
        %1192 = vmatpush1.msra.mxu0 0.0
        %1193 = vmatprep.subr.mxu0 0.0
        %1194 = vmatpush1.msra.mxu0 0.0
        %1195 = vmatprep.subr.mxu0 0.0
        %1196 = vmatpush1.msra.mxu0 0.0
        %1197 = vmatprep.subr.mxu0 0.0
        %1198 = vmatpush1.msra.mxu0 0.0
        %1199 = vmatprep.subr.mxu0 0.0
        %1200 = vmatpush1.msra.mxu0 0.0
        %1201 = vmatprep.subr.mxu0 0.0
        %1202 = vmatpush1.msra.mxu0 0.0
        %1203 = vmatprep.subr.mxu0 0.0
        %1204 = vmatpush1.msra.mxu0 0.0
        %1205 = vmatprep.mubr.f32.mxu0 0.0
        %1206 = vmatmul.mubr.f32.gmra.mrb[0].mxu0 %v589
        %v1207 = vpop.f32.mrb[0].mxu0
        %v1208 = vadd.f32 0.0, %v1207
        %v1209 = vpop.f32.mrb[0].mxu0
        %1210 = vmatprep.mubr.f32.mxu0 0.0
        %1211 = vmatmul.mubr.f32.gmra.mrb[0].mxu0 %v592
        %v1212 = vpop.f32.mrb[0].mxu0
        %v1213 = vadd.f32 0.0, %v1212
        %v1214 = vpop.f32.mrb[0].mxu0
        %1215 = vdwg.mxu0
        %1216 = vmatprep.subr.mxu0 0.0
        %1217 = vmatpush1.msra.mxu0 %v987
        %1218 = vmatprep.subr.mxu0 0.0
        %1219 = vmatpush1.msra.mxu0 %v988
        %1220 = vmatprep.subr.mxu0 0.0
        %1221 = vmatpush1.msra.mxu0 0.0
        %1222 = vmatprep.subr.mxu0 0.0
        %1223 = vmatpush1.msra.mxu0 0.0
        %1224 = vmatprep.subr.mxu0 0.0
        %1225 = vmatpush1.msra.mxu0 0.0
        %1226 = vmatprep.subr.mxu0 0.0
        %1227 = vmatpush1.msra.mxu0 0.0
        %1228 = vmatprep.subr.mxu0 0.0
        %1229 = vmatpush1.msra.mxu0 0.0
        %1230 = vmatprep.subr.mxu0 0.0
        %1231 = vmatpush1.msra.mxu0 0.0
        %1232 = vmatprep.subr.mxu0 0.0
        %1233 = vmatpush1.msra.mxu0 0.0
        %1234 = vmatprep.subr.mxu0 0.0
        %1235 = vmatpush1.msra.mxu0 0.0
        %1236 = vmatprep.subr.mxu0 0.0
        %1237 = vmatpush1.msra.mxu0 0.0
        %1238 = vmatprep.subr.mxu0 0.0
        %1239 = vmatpush1.msra.mxu0 0.0
        %1240 = vmatprep.subr.mxu0 0.0
        %1241 = vmatpush1.msra.mxu0 0.0
        %1242 = vmatprep.subr.mxu0 0.0
        %1243 = vmatpush1.msra.mxu0 0.0
        %1244 = vmatprep.subr.mxu0 0.0
        %1245 = vmatpush1.msra.mxu0 0.0
        %1246 = vmatprep.subr.mxu0 0.0
        %1247 = vmatpush1.msra.mxu0 0.0
        %1248 = vmatprep.subr.mxu0 0.0
        %1249 = vmatpush1.msra.mxu0 0.0
        %1250 = vmatprep.subr.mxu0 0.0
        %1251 = vmatpush1.msra.mxu0 0.0
        %1252 = vmatprep.subr.mxu0 0.0
        %1253 = vmatpush1.msra.mxu0 0.0
        %1254 = vmatprep.subr.mxu0 0.0
        %1255 = vmatpush1.msra.mxu0 0.0
        %1256 = vmatprep.subr.mxu0 0.0
        %1257 = vmatpush1.msra.mxu0 0.0
        %1258 = vmatprep.subr.mxu0 0.0
        %1259 = vmatpush1.msra.mxu0 0.0
        %1260 = vmatprep.subr.mxu0 0.0
        %1261 = vmatpush1.msra.mxu0 0.0
        %1262 = vmatprep.subr.mxu0 0.0
        %1263 = vmatpush1.msra.mxu0 0.0
        %1264 = vmatprep.subr.mxu0 0.0
        %1265 = vmatpush1.msra.mxu0 0.0
        %1266 = vmatprep.subr.mxu0 0.0
        %1267 = vmatpush1.msra.mxu0 0.0
        %1268 = vmatprep.subr.mxu0 0.0
        %1269 = vmatpush1.msra.mxu0 0.0
        %1270 = vmatprep.subr.mxu0 0.0
        %1271 = vmatpush1.msra.mxu0 0.0
        %1272 = vmatprep.subr.mxu0 0.0
        %1273 = vmatpush1.msra.mxu0 0.0
        %1274 = vmatprep.subr.mxu0 0.0
        %1275 = vmatpush1.msra.mxu0 0.0
        %1276 = vmatprep.subr.mxu0 0.0
        %1277 = vmatpush1.msra.mxu0 0.0
        %1278 = vmatprep.subr.mxu0 0.0
        %1279 = vmatpush1.msra.mxu0 0.0
        %1280 = vmatprep.mubr.f32.mxu0 0.0
        %1281 = vmatmul.mubr.f32.gmra.mrb[0].mxu0 %v508
        %v1282 = vpop.f32.mrb[0].mxu0
        %v1283 = vadd.f32 %v1208, %v1282
        %v1284 = vpop.f32.mrb[0].mxu0
        %1285 = vmatprep.mubr.f32.mxu0 0.0
        %1286 = vmatmul.mubr.f32.gmra.mrb[0].mxu0 %v511
        %v1287 = vpop.f32.mrb[0].mxu0
        %v1288 = vadd.f32 %v1213, %v1287
        %v1289 = vpop.f32.mrb[0].mxu0
        %1290 = vdwg.mxu0
        %v1292 = vsel %vm506, %v1139, 0
        %v1295 = vsel %vm506, %v1140, 0
        %1297 = vmatprep.subr.mxu0 0.0
        %1298 = vmatpush1.msra.mxu0 %v411
        %1299 = vmatprep.subr.mxu0 0.0
        %1300 = vmatpush1.msra.mxu0 %v412
        %1301 = vmatprep.subr.mxu0 0.0
        %1302 = vmatpush1.msra.mxu0 0.0
        %1303 = vmatprep.subr.mxu0 0.0
        %1304 = vmatpush1.msra.mxu0 0.0
        %1305 = vmatprep.subr.mxu0 0.0
        %1306 = vmatpush1.msra.mxu0 0.0
        %1307 = vmatprep.subr.mxu0 0.0
        %1308 = vmatpush1.msra.mxu0 0.0
        %1309 = vmatprep.subr.mxu0 0.0
        %1310 = vmatpush1.msra.mxu0 0.0
        %1311 = vmatprep.subr.mxu0 0.0
        %1312 = vmatpush1.msra.mxu0 0.0
        %1313 = vmatprep.subr.mxu0 0.0
        %1314 = vmatpush1.msra.mxu0 0.0
        %1315 = vmatprep.subr.mxu0 0.0
        %1316 = vmatpush1.msra.mxu0 0.0
        %1317 = vmatprep.subr.mxu0 0.0
        %1318 = vmatpush1.msra.mxu0 0.0
        %1319 = vmatprep.subr.mxu0 0.0
        %1320 = vmatpush1.msra.mxu0 0.0
        %1321 = vmatprep.subr.mxu0 0.0
        %1322 = vmatpush1.msra.mxu0 0.0
        %1323 = vmatprep.subr.mxu0 0.0
        %1324 = vmatpush1.msra.mxu0 0.0
        %1325 = vmatprep.subr.mxu0 0.0
        %1326 = vmatpush1.msra.mxu0 0.0
        %1327 = vmatprep.subr.mxu0 0.0
        %1328 = vmatpush1.msra.mxu0 0.0
        %1329 = vmatprep.subr.mxu0 0.0
        %1330 = vmatpush1.msra.mxu0 0.0
        %1331 = vmatprep.subr.mxu0 0.0
        %1332 = vmatpush1.msra.mxu0 0.0
        %1333 = vmatprep.subr.mxu0 0.0
        %1334 = vmatpush1.msra.mxu0 0.0
        %1335 = vmatprep.subr.mxu0 0.0
        %1336 = vmatpush1.msra.mxu0 0.0
        %1337 = vmatprep.subr.mxu0 0.0
        %1338 = vmatpush1.msra.mxu0 0.0
        %1339 = vmatprep.subr.mxu0 0.0
        %1340 = vmatpush1.msra.mxu0 0.0
        %1341 = vmatprep.subr.mxu0 0.0
        %1342 = vmatpush1.msra.mxu0 0.0
        %1343 = vmatprep.subr.mxu0 0.0
        %1344 = vmatpush1.msra.mxu0 0.0
        %1345 = vmatprep.subr.mxu0 0.0
        %1346 = vmatpush1.msra.mxu0 0.0
        %1347 = vmatprep.subr.mxu0 0.0
        %1348 = vmatpush1.msra.mxu0 0.0
        %1349 = vmatprep.subr.mxu0 0.0
        %1350 = vmatpush1.msra.mxu0 0.0
        %1351 = vmatprep.subr.mxu0 0.0
        %1352 = vmatpush1.msra.mxu0 0.0
        %1353 = vmatprep.subr.mxu0 0.0
        %1354 = vmatpush1.msra.mxu0 0.0
        %1355 = vmatprep.subr.mxu0 0.0
        %1356 = vmatpush1.msra.mxu0 0.0
        %1357 = vmatprep.subr.mxu0 0.0
        %1358 = vmatpush1.msra.mxu0 0.0
        %1359 = vmatprep.subr.mxu0 0.0
        %1360 = vmatpush1.msra.mxu0 0.0
        %1361 = vmatprep.mubr.f32.mxu0 0.0
        %1362 = vmatmul.mubr.f32.gmra.mrb[0].mxu0 %v1292
        %v1363 = vpop.f32.mrb[0].mxu0
        %v1364 = vadd.f32 0.0, %v1363
        %v1365 = vpop.f32.mrb[0].mxu0
        %1366 = vmatprep.mubr.f32.mxu0 0.0
        %1367 = vmatmul.mubr.f32.gmra.mrb[0].mxu0 %v1295
        %v1368 = vpop.f32.mrb[0].mxu0
        %v1369 = vadd.f32 0.0, %v1368
        %v1370 = vpop.f32.mrb[0].mxu0
        %1371 = vdwg.mxu0
        %v1373 = vsel %vm506, %v1283, 0
        %v1376 = vsel %vm506, %v1288, 0
        %1378 = vmatprep.subr.mxu0 0.0
        %1379 = vmatpush1.msra.mxu0 %v413
        %1380 = vmatprep.subr.mxu0 0.0
        %1381 = vmatpush1.msra.mxu0 %v414
        %1382 = vmatprep.subr.mxu0 0.0
        %1383 = vmatpush1.msra.mxu0 0.0
        %1384 = vmatprep.subr.mxu0 0.0
        %1385 = vmatpush1.msra.mxu0 0.0
        %1386 = vmatprep.subr.mxu0 0.0
        %1387 = vmatpush1.msra.mxu0 0.0
        %1388 = vmatprep.subr.mxu0 0.0
        %1389 = vmatpush1.msra.mxu0 0.0
        %1390 = vmatprep.subr.mxu0 0.0
        %1391 = vmatpush1.msra.mxu0 0.0
        %1392 = vmatprep.subr.mxu0 0.0
        %1393 = vmatpush1.msra.mxu0 0.0
        %1394 = vmatprep.subr.mxu0 0.0
        %1395 = vmatpush1.msra.mxu0 0.0
        %1396 = vmatprep.subr.mxu0 0.0
        %1397 = vmatpush1.msra.mxu0 0.0
        %1398 = vmatprep.subr.mxu0 0.0
        %1399 = vmatpush1.msra.mxu0 0.0
        %1400 = vmatprep.subr.mxu0 0.0
        %1401 = vmatpush1.msra.mxu0 0.0
        %1402 = vmatprep.subr.mxu0 0.0
        %1403 = vmatpush1.msra.mxu0 0.0
        %1404 = vmatprep.subr.mxu0 0.0
        %1405 = vmatpush1.msra.mxu0 0.0
        %1406 = vmatprep.subr.mxu0 0.0
        %1407 = vmatpush1.msra.mxu0 0.0
        %1408 = vmatprep.subr.mxu0 0.0
        %1409 = vmatpush1.msra.mxu0 0.0
        %1410 = vmatprep.subr.mxu0 0.0
        %1411 = vmatpush1.msra.mxu0 0.0
        %1412 = vmatprep.subr.mxu0 0.0
        %1413 = vmatpush1.msra.mxu0 0.0
        %1414 = vmatprep.subr.mxu0 0.0
        %1415 = vmatpush1.msra.mxu0 0.0
        %1416 = vmatprep.subr.mxu0 0.0
        %1417 = vmatpush1.msra.mxu0 0.0
        %1418 = vmatprep.subr.mxu0 0.0
        %1419 = vmatpush1.msra.mxu0 0.0
        %1420 = vmatprep.subr.mxu0 0.0
        %1421 = vmatpush1.msra.mxu0 0.0
        %1422 = vmatprep.subr.mxu0 0.0
        %1423 = vmatpush1.msra.mxu0 0.0
        %1424 = vmatprep.subr.mxu0 0.0
        %1425 = vmatpush1.msra.mxu0 0.0
        %1426 = vmatprep.subr.mxu0 0.0
        %1427 = vmatpush1.msra.mxu0 0.0
        %1428 = vmatprep.subr.mxu0 0.0
        %1429 = vmatpush1.msra.mxu0 0.0
        %1430 = vmatprep.subr.mxu0 0.0
        %1431 = vmatpush1.msra.mxu0 0.0
        %1432 = vmatprep.subr.mxu0 0.0
        %1433 = vmatpush1.msra.mxu0 0.0
        %1434 = vmatprep.subr.mxu0 0.0
        %1435 = vmatpush1.msra.mxu0 0.0
        %1436 = vmatprep.subr.mxu0 0.0
        %1437 = vmatpush1.msra.mxu0 0.0
        %1438 = vmatprep.subr.mxu0 0.0
        %1439 = vmatpush1.msra.mxu0 0.0
        %1440 = vmatprep.subr.mxu0 0.0
        %1441 = vmatpush1.msra.mxu0 0.0
        %1442 = vmatprep.mubr.f32.mxu0 0.0
        %1443 = vmatmul.mubr.f32.gmra.mrb[0].mxu0 %v1373
        %v1444 = vpop.f32.mrb[0].mxu0
        %v1445 = vadd.f32 0.0, %v1444
        %v1446 = vpop.f32.mrb[0].mxu0
        %1447 = vmatprep.mubr.f32.mxu0 0.0
        %1448 = vmatmul.mubr.f32.gmra.mrb[0].mxu0 %v1376
        %v1449 = vpop.f32.mrb[0].mxu0
        %v1450 = vadd.f32 0.0, %v1449
        %v1451 = vpop.f32.mrb[0].mxu0
        %1452 = vdwg.mxu0
        %v1453 = vsub.f32 %v1364, %v1445
        %v1454 = vsub.f32 %v1369, %v1450
        %v1455 = vmul.f32 %v1453, 0.00390625
        %v1456 = vmul.f32 %v1454, 0.00390625
        %1457 = vst.msk [vmem:[%s406] sm:$0xff] %vm506, %v1455
        %1458 = vst.msk [vmem:[%s406 + $0x8] sm:$0xff] %vm506, %v1456
        %1459 = vmatprep.subr.mxu0 0.0
        %1460 = vmatpush1.msra.mxu0 %v498
        %1461 = vmatprep.subr.mxu0 0.0
        %1462 = vmatpush1.msra.mxu0 %v499
        %1463 = vmatprep.subr.mxu0 0.0
        %1464 = vmatpush1.msra.mxu0 0.0
        %1465 = vmatprep.subr.mxu0 0.0
        %1466 = vmatpush1.msra.mxu0 0.0
        %1467 = vmatprep.subr.mxu0 0.0
        %1468 = vmatpush1.msra.mxu0 0.0
        %1469 = vmatprep.subr.mxu0 0.0
        %1470 = vmatpush1.msra.mxu0 0.0
        %1471 = vmatprep.subr.mxu0 0.0
        %1472 = vmatpush1.msra.mxu0 0.0
        %1473 = vmatprep.subr.mxu0 0.0
        %1474 = vmatpush1.msra.mxu0 0.0
        %1475 = vmatprep.subr.mxu0 0.0
        %1476 = vmatpush1.msra.mxu0 0.0
        %1477 = vmatprep.subr.mxu0 0.0
        %1478 = vmatpush1.msra.mxu0 0.0
        %1479 = vmatprep.subr.mxu0 0.0
        %1480 = vmatpush1.msra.mxu0 0.0
        %1481 = vmatprep.subr.mxu0 0.0
        %1482 = vmatpush1.msra.mxu0 0.0
        %1483 = vmatprep.subr.mxu0 0.0
        %1484 = vmatpush1.msra.mxu0 0.0
        %1485 = vmatprep.subr.mxu0 0.0
        %1486 = vmatpush1.msra.mxu0 0.0
        %1487 = vmatprep.subr.mxu0 0.0
        %1488 = vmatpush1.msra.mxu0 0.0
        %1489 = vmatprep.subr.mxu0 0.0
        %1490 = vmatpush1.msra.mxu0 0.0
        %1491 = vmatprep.subr.mxu0 0.0
        %1492 = vmatpush1.msra.mxu0 0.0
        %1493 = vmatprep.subr.mxu0 0.0
        %1494 = vmatpush1.msra.mxu0 0.0
        %1495 = vmatprep.subr.mxu0 0.0
        %1496 = vmatpush1.msra.mxu0 0.0
        %1497 = vmatprep.subr.mxu0 0.0
        %1498 = vmatpush1.msra.mxu0 0.0
        %1499 = vmatprep.subr.mxu0 0.0
        %1500 = vmatpush1.msra.mxu0 0.0
        %1501 = vmatprep.subr.mxu0 0.0
        %1502 = vmatpush1.msra.mxu0 0.0
        %1503 = vmatprep.subr.mxu0 0.0
        %1504 = vmatpush1.msra.mxu0 0.0
        %1505 = vmatprep.subr.mxu0 0.0
        %1506 = vmatpush1.msra.mxu0 0.0
        %1507 = vmatprep.subr.mxu0 0.0
        %1508 = vmatpush1.msra.mxu0 0.0
        %1509 = vmatprep.subr.mxu0 0.0
        %1510 = vmatpush1.msra.mxu0 0.0
        %1511 = vmatprep.subr.mxu0 0.0
        %1512 = vmatpush1.msra.mxu0 0.0
        %1513 = vmatprep.subr.mxu0 0.0
        %1514 = vmatpush1.msra.mxu0 0.0
        %1515 = vmatprep.subr.mxu0 0.0
        %1516 = vmatpush1.msra.mxu0 0.0
        %1517 = vmatprep.subr.mxu0 0.0
        %1518 = vmatpush1.msra.mxu0 0.0
        %1519 = vmatprep.subr.mxu0 0.0
        %1520 = vmatpush1.msra.mxu0 0.0
        %1521 = vmatprep.subr.mxu0 0.0
        %1522 = vmatpush1.msra.mxu0 0.0
        %1523 = vmatprep.mubr.f32.mxu0 0.0
        %1524 = vmatmul.mubr.f32.gmra.mrb[0].mxu0 %v508
        %v1525 = vpop.f32.mrb[0].mxu0
        %v1526 = vadd.f32 0.0, %v1525
        %v1527 = vpop.f32.mrb[0].mxu0
        %1528 = vmatprep.mubr.f32.mxu0 0.0
        %1529 = vmatmul.mubr.f32.gmra.mrb[0].mxu0 %v511
        %v1530 = vpop.f32.mrb[0].mxu0
        %v1531 = vadd.f32 0.0, %v1530
        %v1532 = vpop.f32.mrb[0].mxu0
        %1533 = vdwg.mxu0
        %1534 = vmatprep.subr.mxu0 0.0
        %1535 = vmatpush1.msra.mxu0 %v498
        %1536 = vmatprep.subr.mxu0 0.0
        %1537 = vmatpush1.msra.mxu0 %v499
        %1538 = vmatprep.subr.mxu0 0.0
        %1539 = vmatpush1.msra.mxu0 0.0
        %1540 = vmatprep.subr.mxu0 0.0
        %1541 = vmatpush1.msra.mxu0 0.0
        %1542 = vmatprep.subr.mxu0 0.0
        %1543 = vmatpush1.msra.mxu0 0.0
        %1544 = vmatprep.subr.mxu0 0.0
        %1545 = vmatpush1.msra.mxu0 0.0
        %1546 = vmatprep.subr.mxu0 0.0
        %1547 = vmatpush1.msra.mxu0 0.0
        %1548 = vmatprep.subr.mxu0 0.0
        %1549 = vmatpush1.msra.mxu0 0.0
        %1550 = vmatprep.subr.mxu0 0.0
        %1551 = vmatpush1.msra.mxu0 0.0
        %1552 = vmatprep.subr.mxu0 0.0
        %1553 = vmatpush1.msra.mxu0 0.0
        %1554 = vmatprep.subr.mxu0 0.0
        %1555 = vmatpush1.msra.mxu0 0.0
        %1556 = vmatprep.subr.mxu0 0.0
        %1557 = vmatpush1.msra.mxu0 0.0
        %1558 = vmatprep.subr.mxu0 0.0
        %1559 = vmatpush1.msra.mxu0 0.0
        %1560 = vmatprep.subr.mxu0 0.0
        %1561 = vmatpush1.msra.mxu0 0.0
        %1562 = vmatprep.subr.mxu0 0.0
        %1563 = vmatpush1.msra.mxu0 0.0
        %1564 = vmatprep.subr.mxu0 0.0
        %1565 = vmatpush1.msra.mxu0 0.0
        %1566 = vmatprep.subr.mxu0 0.0
        %1567 = vmatpush1.msra.mxu0 0.0
        %1568 = vmatprep.subr.mxu0 0.0
        %1569 = vmatpush1.msra.mxu0 0.0
        %1570 = vmatprep.subr.mxu0 0.0
        %1571 = vmatpush1.msra.mxu0 0.0
        %1572 = vmatprep.subr.mxu0 0.0
        %1573 = vmatpush1.msra.mxu0 0.0
        %1574 = vmatprep.subr.mxu0 0.0
        %1575 = vmatpush1.msra.mxu0 0.0
        %1576 = vmatprep.subr.mxu0 0.0
        %1577 = vmatpush1.msra.mxu0 0.0
        %1578 = vmatprep.subr.mxu0 0.0
        %1579 = vmatpush1.msra.mxu0 0.0
        %1580 = vmatprep.subr.mxu0 0.0
        %1581 = vmatpush1.msra.mxu0 0.0
        %1582 = vmatprep.subr.mxu0 0.0
        %1583 = vmatpush1.msra.mxu0 0.0
        %1584 = vmatprep.subr.mxu0 0.0
        %1585 = vmatpush1.msra.mxu0 0.0
        %1586 = vmatprep.subr.mxu0 0.0
        %1587 = vmatpush1.msra.mxu0 0.0
        %1588 = vmatprep.subr.mxu0 0.0
        %1589 = vmatpush1.msra.mxu0 0.0
        %1590 = vmatprep.subr.mxu0 0.0
        %1591 = vmatpush1.msra.mxu0 0.0
        %1592 = vmatprep.subr.mxu0 0.0
        %1593 = vmatpush1.msra.mxu0 0.0
        %1594 = vmatprep.subr.mxu0 0.0
        %1595 = vmatpush1.msra.mxu0 0.0
        %1596 = vmatprep.subr.mxu0 0.0
        %1597 = vmatpush1.msra.mxu0 0.0
        %1598 = vmatprep.mubr.f32.mxu0 0.0
        %1599 = vmatmul.mubr.f32.gmra.mrb[0].mxu0 %v589
        %v1600 = vpop.f32.mrb[0].mxu0
        %v1601 = vadd.f32 0.0, %v1600
        %v1602 = vpop.f32.mrb[0].mxu0
        %1603 = vmatprep.mubr.f32.mxu0 0.0
        %1604 = vmatmul.mubr.f32.gmra.mrb[0].mxu0 %v592
        %v1605 = vpop.f32.mrb[0].mxu0
        %v1606 = vadd.f32 0.0, %v1605
        %v1607 = vpop.f32.mrb[0].mxu0
        %1608 = vdwg.mxu0
        %v1610 = vsel %vm506, %v1526, 0
        %v1613 = vsel %vm506, %v1531, 0
        %1615 = vmatprep.subr.mxu0 0.0
        %1616 = vmatpush1.msra.mxu0 %v411
        %1617 = vmatprep.subr.mxu0 0.0
        %1618 = vmatpush1.msra.mxu0 %v412
        %1619 = vmatprep.subr.mxu0 0.0
        %1620 = vmatpush1.msra.mxu0 0.0
        %1621 = vmatprep.subr.mxu0 0.0
        %1622 = vmatpush1.msra.mxu0 0.0
        %1623 = vmatprep.subr.mxu0 0.0
        %1624 = vmatpush1.msra.mxu0 0.0
        %1625 = vmatprep.subr.mxu0 0.0
        %1626 = vmatpush1.msra.mxu0 0.0
        %1627 = vmatprep.subr.mxu0 0.0
        %1628 = vmatpush1.msra.mxu0 0.0
        %1629 = vmatprep.subr.mxu0 0.0
        %1630 = vmatpush1.msra.mxu0 0.0
        %1631 = vmatprep.subr.mxu0 0.0
        %1632 = vmatpush1.msra.mxu0 0.0
        %1633 = vmatprep.subr.mxu0 0.0
        %1634 = vmatpush1.msra.mxu0 0.0
        %1635 = vmatprep.subr.mxu0 0.0
        %1636 = vmatpush1.msra.mxu0 0.0
        %1637 = vmatprep.subr.mxu0 0.0
        %1638 = vmatpush1.msra.mxu0 0.0
        %1639 = vmatprep.subr.mxu0 0.0
        %1640 = vmatpush1.msra.mxu0 0.0
        %1641 = vmatprep.subr.mxu0 0.0
        %1642 = vmatpush1.msra.mxu0 0.0
        %1643 = vmatprep.subr.mxu0 0.0
        %1644 = vmatpush1.msra.mxu0 0.0
        %1645 = vmatprep.subr.mxu0 0.0
        %1646 = vmatpush1.msra.mxu0 0.0
        %1647 = vmatprep.subr.mxu0 0.0
        %1648 = vmatpush1.msra.mxu0 0.0
        %1649 = vmatprep.subr.mxu0 0.0
        %1650 = vmatpush1.msra.mxu0 0.0
        %1651 = vmatprep.subr.mxu0 0.0
        %1652 = vmatpush1.msra.mxu0 0.0
        %1653 = vmatprep.subr.mxu0 0.0
        %1654 = vmatpush1.msra.mxu0 0.0
        %1655 = vmatprep.subr.mxu0 0.0
        %1656 = vmatpush1.msra.mxu0 0.0
        %1657 = vmatprep.subr.mxu0 0.0
        %1658 = vmatpush1.msra.mxu0 0.0
        %1659 = vmatprep.subr.mxu0 0.0
        %1660 = vmatpush1.msra.mxu0 0.0
        %1661 = vmatprep.subr.mxu0 0.0
        %1662 = vmatpush1.msra.mxu0 0.0
        %1663 = vmatprep.subr.mxu0 0.0
        %1664 = vmatpush1.msra.mxu0 0.0
        %1665 = vmatprep.subr.mxu0 0.0
        %1666 = vmatpush1.msra.mxu0 0.0
        %1667 = vmatprep.subr.mxu0 0.0
        %1668 = vmatpush1.msra.mxu0 0.0
        %1669 = vmatprep.subr.mxu0 0.0
        %1670 = vmatpush1.msra.mxu0 0.0
        %1671 = vmatprep.subr.mxu0 0.0
        %1672 = vmatpush1.msra.mxu0 0.0
        %1673 = vmatprep.subr.mxu0 0.0
        %1674 = vmatpush1.msra.mxu0 0.0
        %1675 = vmatprep.subr.mxu0 0.0
        %1676 = vmatpush1.msra.mxu0 0.0
        %1677 = vmatprep.subr.mxu0 0.0
        %1678 = vmatpush1.msra.mxu0 0.0
        %1679 = vmatprep.mubr.f32.mxu0 0.0
        %1680 = vmatmul.mubr.f32.gmra.mrb[0].mxu0 %v1610
        %v1681 = vpop.f32.mrb[0].mxu0
        %v1682 = vadd.f32 0.0, %v1681
        %v1683 = vpop.f32.mrb[0].mxu0
        %1684 = vmatprep.mubr.f32.mxu0 0.0
        %1685 = vmatmul.mubr.f32.gmra.mrb[0].mxu0 %v1613
        %v1686 = vpop.f32.mrb[0].mxu0
        %v1687 = vadd.f32 0.0, %v1686
        %v1688 = vpop.f32.mrb[0].mxu0
        %1689 = vdwg.mxu0
        %v1691 = vsel %vm506, %v1601, 0
        %v1694 = vsel %vm506, %v1606, 0
        %1696 = vmatprep.subr.mxu0 0.0
        %1697 = vmatpush1.msra.mxu0 %v413
        %1698 = vmatprep.subr.mxu0 0.0
        %1699 = vmatpush1.msra.mxu0 %v414
        %1700 = vmatprep.subr.mxu0 0.0
        %1701 = vmatpush1.msra.mxu0 0.0
        %1702 = vmatprep.subr.mxu0 0.0
        %1703 = vmatpush1.msra.mxu0 0.0
        %1704 = vmatprep.subr.mxu0 0.0
        %1705 = vmatpush1.msra.mxu0 0.0
        %1706 = vmatprep.subr.mxu0 0.0
        %1707 = vmatpush1.msra.mxu0 0.0
        %1708 = vmatprep.subr.mxu0 0.0
        %1709 = vmatpush1.msra.mxu0 0.0
        %1710 = vmatprep.subr.mxu0 0.0
        %1711 = vmatpush1.msra.mxu0 0.0
        %1712 = vmatprep.subr.mxu0 0.0
        %1713 = vmatpush1.msra.mxu0 0.0
        %1714 = vmatprep.subr.mxu0 0.0
        %1715 = vmatpush1.msra.mxu0 0.0
        %1716 = vmatprep.subr.mxu0 0.0
        %1717 = vmatpush1.msra.mxu0 0.0
        %1718 = vmatprep.subr.mxu0 0.0
        %1719 = vmatpush1.msra.mxu0 0.0
        %1720 = vmatprep.subr.mxu0 0.0
        %1721 = vmatpush1.msra.mxu0 0.0
        %1722 = vmatprep.subr.mxu0 0.0
        %1723 = vmatpush1.msra.mxu0 0.0
        %1724 = vmatprep.subr.mxu0 0.0
        %1725 = vmatpush1.msra.mxu0 0.0
        %1726 = vmatprep.subr.mxu0 0.0
        %1727 = vmatpush1.msra.mxu0 0.0
        %1728 = vmatprep.subr.mxu0 0.0
        %1729 = vmatpush1.msra.mxu0 0.0
        %1730 = vmatprep.subr.mxu0 0.0
        %1731 = vmatpush1.msra.mxu0 0.0
        %1732 = vmatprep.subr.mxu0 0.0
        %1733 = vmatpush1.msra.mxu0 0.0
        %1734 = vmatprep.subr.mxu0 0.0
        %1735 = vmatpush1.msra.mxu0 0.0
        %1736 = vmatprep.subr.mxu0 0.0
        %1737 = vmatpush1.msra.mxu0 0.0
        %1738 = vmatprep.subr.mxu0 0.0
        %1739 = vmatpush1.msra.mxu0 0.0
        %1740 = vmatprep.subr.mxu0 0.0
        %1741 = vmatpush1.msra.mxu0 0.0
        %1742 = vmatprep.subr.mxu0 0.0
        %1743 = vmatpush1.msra.mxu0 0.0
        %1744 = vmatprep.subr.mxu0 0.0
        %1745 = vmatpush1.msra.mxu0 0.0
        %1746 = vmatprep.subr.mxu0 0.0
        %1747 = vmatpush1.msra.mxu0 0.0
        %1748 = vmatprep.subr.mxu0 0.0
        %1749 = vmatpush1.msra.mxu0 0.0
        %1750 = vmatprep.subr.mxu0 0.0
        %1751 = vmatpush1.msra.mxu0 0.0
        %1752 = vmatprep.subr.mxu0 0.0
        %1753 = vmatpush1.msra.mxu0 0.0
        %1754 = vmatprep.subr.mxu0 0.0
        %1755 = vmatpush1.msra.mxu0 0.0
        %1756 = vmatprep.subr.mxu0 0.0
        %1757 = vmatpush1.msra.mxu0 0.0
        %1758 = vmatprep.subr.mxu0 0.0
        %1759 = vmatpush1.msra.mxu0 0.0
        %1760 = vmatprep.mubr.f32.mxu0 0.0
        %1761 = vmatmul.mubr.f32.gmra.mrb[0].mxu0 %v1691
        %v1762 = vpop.f32.mrb[0].mxu0
        %v1763 = vadd.f32 0.0, %v1762
        %v1764 = vpop.f32.mrb[0].mxu0
        %1765 = vmatprep.mubr.f32.mxu0 0.0
        %1766 = vmatmul.mubr.f32.gmra.mrb[0].mxu0 %v1694
        %v1767 = vpop.f32.mrb[0].mxu0
        %v1768 = vadd.f32 0.0, %v1767
        %v1769 = vpop.f32.mrb[0].mxu0
        %1770 = vdwg.mxu0
        %v1771 = vsub.f32 %v1682, %v1763
        %v1772 = vsub.f32 %v1687, %v1768
        %1773 = vmatprep.subr.mxu0 0.0
        %1774 = vmatpush1.msra.mxu0 %v411
        %1775 = vmatprep.subr.mxu0 0.0
        %1776 = vmatpush1.msra.mxu0 %v412
        %1777 = vmatprep.subr.mxu0 0.0
        %1778 = vmatpush1.msra.mxu0 0.0
        %1779 = vmatprep.subr.mxu0 0.0
        %1780 = vmatpush1.msra.mxu0 0.0
        %1781 = vmatprep.subr.mxu0 0.0
        %1782 = vmatpush1.msra.mxu0 0.0
        %1783 = vmatprep.subr.mxu0 0.0
        %1784 = vmatpush1.msra.mxu0 0.0
        %1785 = vmatprep.subr.mxu0 0.0
        %1786 = vmatpush1.msra.mxu0 0.0
        %1787 = vmatprep.subr.mxu0 0.0
        %1788 = vmatpush1.msra.mxu0 0.0
        %1789 = vmatprep.subr.mxu0 0.0
        %1790 = vmatpush1.msra.mxu0 0.0
        %1791 = vmatprep.subr.mxu0 0.0
        %1792 = vmatpush1.msra.mxu0 0.0
        %1793 = vmatprep.subr.mxu0 0.0
        %1794 = vmatpush1.msra.mxu0 0.0
        %1795 = vmatprep.subr.mxu0 0.0
        %1796 = vmatpush1.msra.mxu0 0.0
        %1797 = vmatprep.subr.mxu0 0.0
        %1798 = vmatpush1.msra.mxu0 0.0
        %1799 = vmatprep.subr.mxu0 0.0
        %1800 = vmatpush1.msra.mxu0 0.0
        %1801 = vmatprep.subr.mxu0 0.0
        %1802 = vmatpush1.msra.mxu0 0.0
        %1803 = vmatprep.subr.mxu0 0.0
        %1804 = vmatpush1.msra.mxu0 0.0
        %1805 = vmatprep.subr.mxu0 0.0
        %1806 = vmatpush1.msra.mxu0 0.0
        %1807 = vmatprep.subr.mxu0 0.0
        %1808 = vmatpush1.msra.mxu0 0.0
        %1809 = vmatprep.subr.mxu0 0.0
        %1810 = vmatpush1.msra.mxu0 0.0
        %1811 = vmatprep.subr.mxu0 0.0
        %1812 = vmatpush1.msra.mxu0 0.0
        %1813 = vmatprep.subr.mxu0 0.0
        %1814 = vmatpush1.msra.mxu0 0.0
        %1815 = vmatprep.subr.mxu0 0.0
        %1816 = vmatpush1.msra.mxu0 0.0
        %1817 = vmatprep.subr.mxu0 0.0
        %1818 = vmatpush1.msra.mxu0 0.0
        %1819 = vmatprep.subr.mxu0 0.0
        %1820 = vmatpush1.msra.mxu0 0.0
        %1821 = vmatprep.subr.mxu0 0.0
        %1822 = vmatpush1.msra.mxu0 0.0
        %1823 = vmatprep.subr.mxu0 0.0
        %1824 = vmatpush1.msra.mxu0 0.0
        %1825 = vmatprep.subr.mxu0 0.0
        %1826 = vmatpush1.msra.mxu0 0.0
        %1827 = vmatprep.subr.mxu0 0.0
        %1828 = vmatpush1.msra.mxu0 0.0
        %1829 = vmatprep.subr.mxu0 0.0
        %1830 = vmatpush1.msra.mxu0 0.0
        %1831 = vmatprep.subr.mxu0 0.0
        %1832 = vmatpush1.msra.mxu0 0.0
        %1833 = vmatprep.subr.mxu0 0.0
        %1834 = vmatpush1.msra.mxu0 0.0
        %1835 = vmatprep.subr.mxu0 0.0
        %1836 = vmatpush1.msra.mxu0 0.0
        %1837 = vmatprep.mubr.f32.mxu0 0.0
        %1838 = vmatmul.mubr.f32.gmra.mrb[0].mxu0 %v1691
        %v1839 = vpop.f32.mrb[0].mxu0
        %v1840 = vadd.f32 0.0, %v1839
        %v1841 = vpop.f32.mrb[0].mxu0
        %1842 = vmatprep.mubr.f32.mxu0 0.0
        %1843 = vmatmul.mubr.f32.gmra.mrb[0].mxu0 %v1694
        %v1844 = vpop.f32.mrb[0].mxu0
        %v1845 = vadd.f32 0.0, %v1844
        %v1846 = vpop.f32.mrb[0].mxu0
        %1847 = vdwg.mxu0
        %1848 = vmatprep.subr.mxu0 0.0
        %1849 = vmatpush1.msra.mxu0 %v413
        %1850 = vmatprep.subr.mxu0 0.0
        %1851 = vmatpush1.msra.mxu0 %v414
        %1852 = vmatprep.subr.mxu0 0.0
        %1853 = vmatpush1.msra.mxu0 0.0
        %1854 = vmatprep.subr.mxu0 0.0
        %1855 = vmatpush1.msra.mxu0 0.0
        %1856 = vmatprep.subr.mxu0 0.0
        %1857 = vmatpush1.msra.mxu0 0.0
        %1858 = vmatprep.subr.mxu0 0.0
        %1859 = vmatpush1.msra.mxu0 0.0
        %1860 = vmatprep.subr.mxu0 0.0
        %1861 = vmatpush1.msra.mxu0 0.0
        %1862 = vmatprep.subr.mxu0 0.0
        %1863 = vmatpush1.msra.mxu0 0.0
        %1864 = vmatprep.subr.mxu0 0.0
        %1865 = vmatpush1.msra.mxu0 0.0
        %1866 = vmatprep.subr.mxu0 0.0
        %1867 = vmatpush1.msra.mxu0 0.0
        %1868 = vmatprep.subr.mxu0 0.0
        %1869 = vmatpush1.msra.mxu0 0.0
        %1870 = vmatprep.subr.mxu0 0.0
        %1871 = vmatpush1.msra.mxu0 0.0
        %1872 = vmatprep.subr.mxu0 0.0
        %1873 = vmatpush1.msra.mxu0 0.0
        %1874 = vmatprep.subr.mxu0 0.0
        %1875 = vmatpush1.msra.mxu0 0.0
        %1876 = vmatprep.subr.mxu0 0.0
        %1877 = vmatpush1.msra.mxu0 0.0
        %1878 = vmatprep.subr.mxu0 0.0
        %1879 = vmatpush1.msra.mxu0 0.0
        %1880 = vmatprep.subr.mxu0 0.0
        %1881 = vmatpush1.msra.mxu0 0.0
        %1882 = vmatprep.subr.mxu0 0.0
        %1883 = vmatpush1.msra.mxu0 0.0
        %1884 = vmatprep.subr.mxu0 0.0
        %1885 = vmatpush1.msra.mxu0 0.0
        %1886 = vmatprep.subr.mxu0 0.0
        %1887 = vmatpush1.msra.mxu0 0.0
        %1888 = vmatprep.subr.mxu0 0.0
        %1889 = vmatpush1.msra.mxu0 0.0
        %1890 = vmatprep.subr.mxu0 0.0
        %1891 = vmatpush1.msra.mxu0 0.0
        %1892 = vmatprep.subr.mxu0 0.0
        %1893 = vmatpush1.msra.mxu0 0.0
        %1894 = vmatprep.subr.mxu0 0.0
        %1895 = vmatpush1.msra.mxu0 0.0
        %1896 = vmatprep.subr.mxu0 0.0
        %1897 = vmatpush1.msra.mxu0 0.0
        %1898 = vmatprep.subr.mxu0 0.0
        %1899 = vmatpush1.msra.mxu0 0.0
        %1900 = vmatprep.subr.mxu0 0.0
        %1901 = vmatpush1.msra.mxu0 0.0
        %1902 = vmatprep.subr.mxu0 0.0
        %1903 = vmatpush1.msra.mxu0 0.0
        %1904 = vmatprep.subr.mxu0 0.0
        %1905 = vmatpush1.msra.mxu0 0.0
        %1906 = vmatprep.subr.mxu0 0.0
        %1907 = vmatpush1.msra.mxu0 0.0
        %1908 = vmatprep.subr.mxu0 0.0
        %1909 = vmatpush1.msra.mxu0 0.0
        %1910 = vmatprep.subr.mxu0 0.0
        %1911 = vmatpush1.msra.mxu0 0.0
        %1912 = vmatprep.mubr.f32.mxu0 0.0
        %1913 = vmatmul.mubr.f32.gmra.mrb[0].mxu0 %v1610
        %v1914 = vpop.f32.mrb[0].mxu0
        %v1915 = vadd.f32 %v1840, %v1914
        %v1916 = vpop.f32.mrb[0].mxu0
        %1917 = vmatprep.mubr.f32.mxu0 0.0
        %1918 = vmatmul.mubr.f32.gmra.mrb[0].mxu0 %v1613
        %v1919 = vpop.f32.mrb[0].mxu0
        %v1920 = vadd.f32 %v1845, %v1919
        %v1921 = vpop.f32.mrb[0].mxu0
        %1922 = vdwg.mxu0
        %v1923 = vsub.f32 0.0, %v1915
        %v1924 = vsub.f32 0.0, %v1920
        %v1925 = vmul.f32 %v1771, %v415
        %v1926 = vmul.f32 %v1772, %v416
        %v1927 = vmul.f32 %v1923, %v415
        %v1928 = vmul.f32 %v1924, %v416
        %1929 = vmatprep.subr.mxu0 0.0
        %1930 = vmatpush1.msra.mxu0 %v1925
        %1931 = vmatprep.subr.mxu0 0.0
        %1932 = vmatpush1.msra.mxu0 %v1926
        %1933 = vmatprep.subr.mxu0 0.0
        %1934 = vmatpush1.msra.mxu0 0.0
        %1935 = vmatprep.subr.mxu0 0.0
        %1936 = vmatpush1.msra.mxu0 0.0
        %1937 = vmatprep.subr.mxu0 0.0
        %1938 = vmatpush1.msra.mxu0 0.0
        %1939 = vmatprep.subr.mxu0 0.0
        %1940 = vmatpush1.msra.mxu0 0.0
        %1941 = vmatprep.subr.mxu0 0.0
        %1942 = vmatpush1.msra.mxu0 0.0
        %1943 = vmatprep.subr.mxu0 0.0
        %1944 = vmatpush1.msra.mxu0 0.0
        %1945 = vmatprep.subr.mxu0 0.0
        %1946 = vmatpush1.msra.mxu0 0.0
        %1947 = vmatprep.subr.mxu0 0.0
        %1948 = vmatpush1.msra.mxu0 0.0
        %1949 = vmatprep.subr.mxu0 0.0
        %1950 = vmatpush1.msra.mxu0 0.0
        %1951 = vmatprep.subr.mxu0 0.0
        %1952 = vmatpush1.msra.mxu0 0.0
        %1953 = vmatprep.subr.mxu0 0.0
        %1954 = vmatpush1.msra.mxu0 0.0
        %1955 = vmatprep.subr.mxu0 0.0
        %1956 = vmatpush1.msra.mxu0 0.0
        %1957 = vmatprep.subr.mxu0 0.0
        %1958 = vmatpush1.msra.mxu0 0.0
        %1959 = vmatprep.subr.mxu0 0.0
        %1960 = vmatpush1.msra.mxu0 0.0
        %1961 = vmatprep.subr.mxu0 0.0
        %1962 = vmatpush1.msra.mxu0 0.0
        %1963 = vmatprep.subr.mxu0 0.0
        %1964 = vmatpush1.msra.mxu0 0.0
        %1965 = vmatprep.subr.mxu0 0.0
        %1966 = vmatpush1.msra.mxu0 0.0
        %1967 = vmatprep.subr.mxu0 0.0
        %1968 = vmatpush1.msra.mxu0 0.0
        %1969 = vmatprep.subr.mxu0 0.0
        %1970 = vmatpush1.msra.mxu0 0.0
        %1971 = vmatprep.subr.mxu0 0.0
        %1972 = vmatpush1.msra.mxu0 0.0
        %1973 = vmatprep.subr.mxu0 0.0
        %1974 = vmatpush1.msra.mxu0 0.0
        %1975 = vmatprep.subr.mxu0 0.0
        %1976 = vmatpush1.msra.mxu0 0.0
        %1977 = vmatprep.subr.mxu0 0.0
        %1978 = vmatpush1.msra.mxu0 0.0
        %1979 = vmatprep.subr.mxu0 0.0
        %1980 = vmatpush1.msra.mxu0 0.0
        %1981 = vmatprep.subr.mxu0 0.0
        %1982 = vmatpush1.msra.mxu0 0.0
        %1983 = vmatprep.subr.mxu0 0.0
        %1984 = vmatpush1.msra.mxu0 0.0
        %1985 = vmatprep.subr.mxu0 0.0
        %1986 = vmatpush1.msra.mxu0 0.0
        %1987 = vmatprep.subr.mxu0 0.0
        %1988 = vmatpush1.msra.mxu0 0.0
        %1989 = vmatprep.subr.mxu0 0.0
        %1990 = vmatpush1.msra.mxu0 0.0
        %1991 = vmatprep.subr.mxu0 0.0
        %1992 = vmatpush1.msra.mxu0 0.0
        %1993 = vmatprep.mubr.f32.mxu0 0.0
        %1994 = vmatmul.mubr.f32.gmra.mrb[0].mxu0 %v508
        %v1995 = vpop.f32.mrb[0].mxu0
        %v1996 = vadd.f32 0.0, %v1995
        %v1997 = vpop.f32.mrb[0].mxu0
        %1998 = vmatprep.mubr.f32.mxu0 0.0
        %1999 = vmatmul.mubr.f32.gmra.mrb[0].mxu0 %v511
        %v2000 = vpop.f32.mrb[0].mxu0
        %v2001 = vadd.f32 0.0, %v2000
        %v2002 = vpop.f32.mrb[0].mxu0
        %2003 = vdwg.mxu0
        %2004 = vmatprep.subr.mxu0 0.0
        %2005 = vmatpush1.msra.mxu0 %v1927
        %2006 = vmatprep.subr.mxu0 0.0
        %2007 = vmatpush1.msra.mxu0 %v1928
        %2008 = vmatprep.subr.mxu0 0.0
        %2009 = vmatpush1.msra.mxu0 0.0
        %2010 = vmatprep.subr.mxu0 0.0
        %2011 = vmatpush1.msra.mxu0 0.0
        %2012 = vmatprep.subr.mxu0 0.0
        %2013 = vmatpush1.msra.mxu0 0.0
        %2014 = vmatprep.subr.mxu0 0.0
        %2015 = vmatpush1.msra.mxu0 0.0
        %2016 = vmatprep.subr.mxu0 0.0
        %2017 = vmatpush1.msra.mxu0 0.0
        %2018 = vmatprep.subr.mxu0 0.0
        %2019 = vmatpush1.msra.mxu0 0.0
        %2020 = vmatprep.subr.mxu0 0.0
        %2021 = vmatpush1.msra.mxu0 0.0
        %2022 = vmatprep.subr.mxu0 0.0
        %2023 = vmatpush1.msra.mxu0 0.0
        %2024 = vmatprep.subr.mxu0 0.0
        %2025 = vmatpush1.msra.mxu0 0.0
        %2026 = vmatprep.subr.mxu0 0.0
        %2027 = vmatpush1.msra.mxu0 0.0
        %2028 = vmatprep.subr.mxu0 0.0
        %2029 = vmatpush1.msra.mxu0 0.0
        %2030 = vmatprep.subr.mxu0 0.0
        %2031 = vmatpush1.msra.mxu0 0.0
        %2032 = vmatprep.subr.mxu0 0.0
        %2033 = vmatpush1.msra.mxu0 0.0
        %2034 = vmatprep.subr.mxu0 0.0
        %2035 = vmatpush1.msra.mxu0 0.0
        %2036 = vmatprep.subr.mxu0 0.0
        %2037 = vmatpush1.msra.mxu0 0.0
        %2038 = vmatprep.subr.mxu0 0.0
        %2039 = vmatpush1.msra.mxu0 0.0
        %2040 = vmatprep.subr.mxu0 0.0
        %2041 = vmatpush1.msra.mxu0 0.0
        %2042 = vmatprep.subr.mxu0 0.0
        %2043 = vmatpush1.msra.mxu0 0.0
        %2044 = vmatprep.subr.mxu0 0.0
        %2045 = vmatpush1.msra.mxu0 0.0
        %2046 = vmatprep.subr.mxu0 0.0
        %2047 = vmatpush1.msra.mxu0 0.0
        %2048 = vmatprep.subr.mxu0 0.0
        %2049 = vmatpush1.msra.mxu0 0.0
        %2050 = vmatprep.subr.mxu0 0.0
        %2051 = vmatpush1.msra.mxu0 0.0
        %2052 = vmatprep.subr.mxu0 0.0
        %2053 = vmatpush1.msra.mxu0 0.0
        %2054 = vmatprep.subr.mxu0 0.0
        %2055 = vmatpush1.msra.mxu0 0.0
        %2056 = vmatprep.subr.mxu0 0.0
        %2057 = vmatpush1.msra.mxu0 0.0
        %2058 = vmatprep.subr.mxu0 0.0
        %2059 = vmatpush1.msra.mxu0 0.0
        %2060 = vmatprep.subr.mxu0 0.0
        %2061 = vmatpush1.msra.mxu0 0.0
        %2062 = vmatprep.subr.mxu0 0.0
        %2063 = vmatpush1.msra.mxu0 0.0
        %2064 = vmatprep.subr.mxu0 0.0
        %2065 = vmatpush1.msra.mxu0 0.0
        %2066 = vmatprep.subr.mxu0 0.0
        %2067 = vmatpush1.msra.mxu0 0.0
        %2068 = vmatprep.mubr.f32.mxu0 0.0
        %2069 = vmatmul.mubr.f32.gmra.mrb[0].mxu0 %v589
        %v2070 = vpop.f32.mrb[0].mxu0
        %v2071 = vadd.f32 0.0, %v2070
        %v2072 = vpop.f32.mrb[0].mxu0
        %2073 = vmatprep.mubr.f32.mxu0 0.0
        %2074 = vmatmul.mubr.f32.gmra.mrb[0].mxu0 %v592
        %v2075 = vpop.f32.mrb[0].mxu0
        %v2076 = vadd.f32 0.0, %v2075
        %v2077 = vpop.f32.mrb[0].mxu0
        %2078 = vdwg.mxu0
        %v2079 = vsub.f32 %v1996, %v2071
        %v2080 = vsub.f32 %v2001, %v2076
        %2081 = vmatprep.subr.mxu0 0.0
        %2082 = vmatpush1.msra.mxu0 %v1925
        %2083 = vmatprep.subr.mxu0 0.0
        %2084 = vmatpush1.msra.mxu0 %v1926
        %2085 = vmatprep.subr.mxu0 0.0
        %2086 = vmatpush1.msra.mxu0 0.0
        %2087 = vmatprep.subr.mxu0 0.0
        %2088 = vmatpush1.msra.mxu0 0.0
        %2089 = vmatprep.subr.mxu0 0.0
        %2090 = vmatpush1.msra.mxu0 0.0
        %2091 = vmatprep.subr.mxu0 0.0
        %2092 = vmatpush1.msra.mxu0 0.0
        %2093 = vmatprep.subr.mxu0 0.0
        %2094 = vmatpush1.msra.mxu0 0.0
        %2095 = vmatprep.subr.mxu0 0.0
        %2096 = vmatpush1.msra.mxu0 0.0
        %2097 = vmatprep.subr.mxu0 0.0
        %2098 = vmatpush1.msra.mxu0 0.0
        %2099 = vmatprep.subr.mxu0 0.0
        %2100 = vmatpush1.msra.mxu0 0.0
        %2101 = vmatprep.subr.mxu0 0.0
        %2102 = vmatpush1.msra.mxu0 0.0
        %2103 = vmatprep.subr.mxu0 0.0
        %2104 = vmatpush1.msra.mxu0 0.0
        %2105 = vmatprep.subr.mxu0 0.0
        %2106 = vmatpush1.msra.mxu0 0.0
        %2107 = vmatprep.subr.mxu0 0.0
        %2108 = vmatpush1.msra.mxu0 0.0
        %2109 = vmatprep.subr.mxu0 0.0
        %2110 = vmatpush1.msra.mxu0 0.0
        %2111 = vmatprep.subr.mxu0 0.0
        %2112 = vmatpush1.msra.mxu0 0.0
        %2113 = vmatprep.subr.mxu0 0.0
        %2114 = vmatpush1.msra.mxu0 0.0
        %2115 = vmatprep.subr.mxu0 0.0
        %2116 = vmatpush1.msra.mxu0 0.0
        %2117 = vmatprep.subr.mxu0 0.0
        %2118 = vmatpush1.msra.mxu0 0.0
        %2119 = vmatprep.subr.mxu0 0.0
        %2120 = vmatpush1.msra.mxu0 0.0
        %2121 = vmatprep.subr.mxu0 0.0
        %2122 = vmatpush1.msra.mxu0 0.0
        %2123 = vmatprep.subr.mxu0 0.0
        %2124 = vmatpush1.msra.mxu0 0.0
        %2125 = vmatprep.subr.mxu0 0.0
        %2126 = vmatpush1.msra.mxu0 0.0
        %2127 = vmatprep.subr.mxu0 0.0
        %2128 = vmatpush1.msra.mxu0 0.0
        %2129 = vmatprep.subr.mxu0 0.0
        %2130 = vmatpush1.msra.mxu0 0.0
        %2131 = vmatprep.subr.mxu0 0.0
        %2132 = vmatpush1.msra.mxu0 0.0
        %2133 = vmatprep.subr.mxu0 0.0
        %2134 = vmatpush1.msra.mxu0 0.0
        %2135 = vmatprep.subr.mxu0 0.0
        %2136 = vmatpush1.msra.mxu0 0.0
        %2137 = vmatprep.subr.mxu0 0.0
        %2138 = vmatpush1.msra.mxu0 0.0
        %2139 = vmatprep.subr.mxu0 0.0
        %2140 = vmatpush1.msra.mxu0 0.0
        %2141 = vmatprep.subr.mxu0 0.0
        %2142 = vmatpush1.msra.mxu0 0.0
        %2143 = vmatprep.subr.mxu0 0.0
        %2144 = vmatpush1.msra.mxu0 0.0
        %2145 = vmatprep.mubr.f32.mxu0 0.0
        %2146 = vmatmul.mubr.f32.gmra.mrb[0].mxu0 %v589
        %v2147 = vpop.f32.mrb[0].mxu0
        %v2148 = vadd.f32 0.0, %v2147
        %v2149 = vpop.f32.mrb[0].mxu0
        %2150 = vmatprep.mubr.f32.mxu0 0.0
        %2151 = vmatmul.mubr.f32.gmra.mrb[0].mxu0 %v592
        %v2152 = vpop.f32.mrb[0].mxu0
        %v2153 = vadd.f32 0.0, %v2152
        %v2154 = vpop.f32.mrb[0].mxu0
        %2155 = vdwg.mxu0
        %2156 = vmatprep.subr.mxu0 0.0
        %2157 = vmatpush1.msra.mxu0 %v1927
        %2158 = vmatprep.subr.mxu0 0.0
        %2159 = vmatpush1.msra.mxu0 %v1928
        %2160 = vmatprep.subr.mxu0 0.0
        %2161 = vmatpush1.msra.mxu0 0.0
        %2162 = vmatprep.subr.mxu0 0.0
        %2163 = vmatpush1.msra.mxu0 0.0
        %2164 = vmatprep.subr.mxu0 0.0
        %2165 = vmatpush1.msra.mxu0 0.0
        %2166 = vmatprep.subr.mxu0 0.0
        %2167 = vmatpush1.msra.mxu0 0.0
        %2168 = vmatprep.subr.mxu0 0.0
        %2169 = vmatpush1.msra.mxu0 0.0
        %2170 = vmatprep.subr.mxu0 0.0
        %2171 = vmatpush1.msra.mxu0 0.0
        %2172 = vmatprep.subr.mxu0 0.0
        %2173 = vmatpush1.msra.mxu0 0.0
        %2174 = vmatprep.subr.mxu0 0.0
        %2175 = vmatpush1.msra.mxu0 0.0
        %2176 = vmatprep.subr.mxu0 0.0
        %2177 = vmatpush1.msra.mxu0 0.0
        %2178 = vmatprep.subr.mxu0 0.0
        %2179 = vmatpush1.msra.mxu0 0.0
        %2180 = vmatprep.subr.mxu0 0.0
        %2181 = vmatpush1.msra.mxu0 0.0
        %2182 = vmatprep.subr.mxu0 0.0
        %2183 = vmatpush1.msra.mxu0 0.0
        %2184 = vmatprep.subr.mxu0 0.0
        %2185 = vmatpush1.msra.mxu0 0.0
        %2186 = vmatprep.subr.mxu0 0.0
        %2187 = vmatpush1.msra.mxu0 0.0
        %2188 = vmatprep.subr.mxu0 0.0
        %2189 = vmatpush1.msra.mxu0 0.0
        %2190 = vmatprep.subr.mxu0 0.0
        %2191 = vmatpush1.msra.mxu0 0.0
        %2192 = vmatprep.subr.mxu0 0.0
        %2193 = vmatpush1.msra.mxu0 0.0
        %2194 = vmatprep.subr.mxu0 0.0
        %2195 = vmatpush1.msra.mxu0 0.0
        %2196 = vmatprep.subr.mxu0 0.0
        %2197 = vmatpush1.msra.mxu0 0.0
        %2198 = vmatprep.subr.mxu0 0.0
        %2199 = vmatpush1.msra.mxu0 0.0
        %2200 = vmatprep.subr.mxu0 0.0
        %2201 = vmatpush1.msra.mxu0 0.0
        %2202 = vmatprep.subr.mxu0 0.0
        %2203 = vmatpush1.msra.mxu0 0.0
        %2204 = vmatprep.subr.mxu0 0.0
        %2205 = vmatpush1.msra.mxu0 0.0
        %2206 = vmatprep.subr.mxu0 0.0
        %2207 = vmatpush1.msra.mxu0 0.0
        %2208 = vmatprep.subr.mxu0 0.0
        %2209 = vmatpush1.msra.mxu0 0.0
        %2210 = vmatprep.subr.mxu0 0.0
        %2211 = vmatpush1.msra.mxu0 0.0
        %2212 = vmatprep.subr.mxu0 0.0
        %2213 = vmatpush1.msra.mxu0 0.0
        %2214 = vmatprep.subr.mxu0 0.0
        %2215 = vmatpush1.msra.mxu0 0.0
        %2216 = vmatprep.subr.mxu0 0.0
        %2217 = vmatpush1.msra.mxu0 0.0
        %2218 = vmatprep.subr.mxu0 0.0
        %2219 = vmatpush1.msra.mxu0 0.0
        %2220 = vmatprep.mubr.f32.mxu0 0.0
        %2221 = vmatmul.mubr.f32.gmra.mrb[0].mxu0 %v508
        %v2222 = vpop.f32.mrb[0].mxu0
        %v2223 = vadd.f32 %v2148, %v2222
        %v2224 = vpop.f32.mrb[0].mxu0
        %2225 = vmatprep.mubr.f32.mxu0 0.0
        %2226 = vmatmul.mubr.f32.gmra.mrb[0].mxu0 %v511
        %v2227 = vpop.f32.mrb[0].mxu0
        %v2228 = vadd.f32 %v2153, %v2227
        %v2229 = vpop.f32.mrb[0].mxu0
        %2230 = vdwg.mxu0
        %v2232 = vsel %vm506, %v2079, 0
        %v2235 = vsel %vm506, %v2080, 0
        %2237 = vmatprep.subr.mxu0 0.0
        %2238 = vmatpush1.msra.mxu0 %v411
        %2239 = vmatprep.subr.mxu0 0.0
        %2240 = vmatpush1.msra.mxu0 %v412
        %2241 = vmatprep.subr.mxu0 0.0
        %2242 = vmatpush1.msra.mxu0 0.0
        %2243 = vmatprep.subr.mxu0 0.0
        %2244 = vmatpush1.msra.mxu0 0.0
        %2245 = vmatprep.subr.mxu0 0.0
        %2246 = vmatpush1.msra.mxu0 0.0
        %2247 = vmatprep.subr.mxu0 0.0
        %2248 = vmatpush1.msra.mxu0 0.0
        %2249 = vmatprep.subr.mxu0 0.0
        %2250 = vmatpush1.msra.mxu0 0.0
        %2251 = vmatprep.subr.mxu0 0.0
        %2252 = vmatpush1.msra.mxu0 0.0
        %2253 = vmatprep.subr.mxu0 0.0
        %2254 = vmatpush1.msra.mxu0 0.0
        %2255 = vmatprep.subr.mxu0 0.0
        %2256 = vmatpush1.msra.mxu0 0.0
        %2257 = vmatprep.subr.mxu0 0.0
        %2258 = vmatpush1.msra.mxu0 0.0
        %2259 = vmatprep.subr.mxu0 0.0
        %2260 = vmatpush1.msra.mxu0 0.0
        %2261 = vmatprep.subr.mxu0 0.0
        %2262 = vmatpush1.msra.mxu0 0.0
        %2263 = vmatprep.subr.mxu0 0.0
        %2264 = vmatpush1.msra.mxu0 0.0
        %2265 = vmatprep.subr.mxu0 0.0
        %2266 = vmatpush1.msra.mxu0 0.0
        %2267 = vmatprep.subr.mxu0 0.0
        %2268 = vmatpush1.msra.mxu0 0.0
        %2269 = vmatprep.subr.mxu0 0.0
        %2270 = vmatpush1.msra.mxu0 0.0
        %2271 = vmatprep.subr.mxu0 0.0
        %2272 = vmatpush1.msra.mxu0 0.0
        %2273 = vmatprep.subr.mxu0 0.0
        %2274 = vmatpush1.msra.mxu0 0.0
        %2275 = vmatprep.subr.mxu0 0.0
        %2276 = vmatpush1.msra.mxu0 0.0
        %2277 = vmatprep.subr.mxu0 0.0
        %2278 = vmatpush1.msra.mxu0 0.0
        %2279 = vmatprep.subr.mxu0 0.0
        %2280 = vmatpush1.msra.mxu0 0.0
        %2281 = vmatprep.subr.mxu0 0.0
        %2282 = vmatpush1.msra.mxu0 0.0
        %2283 = vmatprep.subr.mxu0 0.0
        %2284 = vmatpush1.msra.mxu0 0.0
        %2285 = vmatprep.subr.mxu0 0.0
        %2286 = vmatpush1.msra.mxu0 0.0
        %2287 = vmatprep.subr.mxu0 0.0
        %2288 = vmatpush1.msra.mxu0 0.0
        %2289 = vmatprep.subr.mxu0 0.0
        %2290 = vmatpush1.msra.mxu0 0.0
        %2291 = vmatprep.subr.mxu0 0.0
        %2292 = vmatpush1.msra.mxu0 0.0
        %2293 = vmatprep.subr.mxu0 0.0
        %2294 = vmatpush1.msra.mxu0 0.0
        %2295 = vmatprep.subr.mxu0 0.0
        %2296 = vmatpush1.msra.mxu0 0.0
        %2297 = vmatprep.subr.mxu0 0.0
        %2298 = vmatpush1.msra.mxu0 0.0
        %2299 = vmatprep.subr.mxu0 0.0
        %2300 = vmatpush1.msra.mxu0 0.0
        %2301 = vmatprep.mubr.f32.mxu0 0.0
        %2302 = vmatmul.mubr.f32.gmra.mrb[0].mxu0 %v2232
        %v2303 = vpop.f32.mrb[0].mxu0
        %v2304 = vadd.f32 0.0, %v2303
        %v2305 = vpop.f32.mrb[0].mxu0
        %2306 = vmatprep.mubr.f32.mxu0 0.0
        %2307 = vmatmul.mubr.f32.gmra.mrb[0].mxu0 %v2235
        %v2308 = vpop.f32.mrb[0].mxu0
        %v2309 = vadd.f32 0.0, %v2308
        %v2310 = vpop.f32.mrb[0].mxu0
        %2311 = vdwg.mxu0
        %v2313 = vsel %vm506, %v2223, 0
        %v2316 = vsel %vm506, %v2228, 0
        %2318 = vmatprep.subr.mxu0 0.0
        %2319 = vmatpush1.msra.mxu0 %v413
        %2320 = vmatprep.subr.mxu0 0.0
        %2321 = vmatpush1.msra.mxu0 %v414
        %2322 = vmatprep.subr.mxu0 0.0
        %2323 = vmatpush1.msra.mxu0 0.0
        %2324 = vmatprep.subr.mxu0 0.0
        %2325 = vmatpush1.msra.mxu0 0.0
        %2326 = vmatprep.subr.mxu0 0.0
        %2327 = vmatpush1.msra.mxu0 0.0
        %2328 = vmatprep.subr.mxu0 0.0
        %2329 = vmatpush1.msra.mxu0 0.0
        %2330 = vmatprep.subr.mxu0 0.0
        %2331 = vmatpush1.msra.mxu0 0.0
        %2332 = vmatprep.subr.mxu0 0.0
        %2333 = vmatpush1.msra.mxu0 0.0
        %2334 = vmatprep.subr.mxu0 0.0
        %2335 = vmatpush1.msra.mxu0 0.0
        %2336 = vmatprep.subr.mxu0 0.0
        %2337 = vmatpush1.msra.mxu0 0.0
        %2338 = vmatprep.subr.mxu0 0.0
        %2339 = vmatpush1.msra.mxu0 0.0
        %2340 = vmatprep.subr.mxu0 0.0
        %2341 = vmatpush1.msra.mxu0 0.0
        %2342 = vmatprep.subr.mxu0 0.0
        %2343 = vmatpush1.msra.mxu0 0.0
        %2344 = vmatprep.subr.mxu0 0.0
        %2345 = vmatpush1.msra.mxu0 0.0
        %2346 = vmatprep.subr.mxu0 0.0
        %2347 = vmatpush1.msra.mxu0 0.0
        %2348 = vmatprep.subr.mxu0 0.0
        %2349 = vmatpush1.msra.mxu0 0.0
        %2350 = vmatprep.subr.mxu0 0.0
        %2351 = vmatpush1.msra.mxu0 0.0
        %2352 = vmatprep.subr.mxu0 0.0
        %2353 = vmatpush1.msra.mxu0 0.0
        %2354 = vmatprep.subr.mxu0 0.0
        %2355 = vmatpush1.msra.mxu0 0.0
        %2356 = vmatprep.subr.mxu0 0.0
        %2357 = vmatpush1.msra.mxu0 0.0
        %2358 = vmatprep.subr.mxu0 0.0
        %2359 = vmatpush1.msra.mxu0 0.0
        %2360 = vmatprep.subr.mxu0 0.0
        %2361 = vmatpush1.msra.mxu0 0.0
        %2362 = vmatprep.subr.mxu0 0.0
        %2363 = vmatpush1.msra.mxu0 0.0
        %2364 = vmatprep.subr.mxu0 0.0
        %2365 = vmatpush1.msra.mxu0 0.0
        %2366 = vmatprep.subr.mxu0 0.0
        %2367 = vmatpush1.msra.mxu0 0.0
        %2368 = vmatprep.subr.mxu0 0.0
        %2369 = vmatpush1.msra.mxu0 0.0
        %2370 = vmatprep.subr.mxu0 0.0
        %2371 = vmatpush1.msra.mxu0 0.0
        %2372 = vmatprep.subr.mxu0 0.0
        %2373 = vmatpush1.msra.mxu0 0.0
        %2374 = vmatprep.subr.mxu0 0.0
        %2375 = vmatpush1.msra.mxu0 0.0
        %2376 = vmatprep.subr.mxu0 0.0
        %2377 = vmatpush1.msra.mxu0 0.0
        %2378 = vmatprep.subr.mxu0 0.0
        %2379 = vmatpush1.msra.mxu0 0.0
        %2380 = vmatprep.subr.mxu0 0.0
        %2381 = vmatpush1.msra.mxu0 0.0
        %2382 = vmatprep.mubr.f32.mxu0 0.0
        %2383 = vmatmul.mubr.f32.gmra.mrb[0].mxu0 %v2313
        %v2384 = vpop.f32.mrb[0].mxu0
        %v2385 = vadd.f32 0.0, %v2384
        %v2386 = vpop.f32.mrb[0].mxu0
        %2387 = vmatprep.mubr.f32.mxu0 0.0
        %2388 = vmatmul.mubr.f32.gmra.mrb[0].mxu0 %v2316
        %v2389 = vpop.f32.mrb[0].mxu0
        %v2390 = vadd.f32 0.0, %v2389
        %v2391 = vpop.f32.mrb[0].mxu0
        %2392 = vdwg.mxu0
        %v2393 = vsub.f32 %v2304, %v2385
        %v2394 = vsub.f32 %v2309, %v2390
        %v2395 = vmul.f32 %v2393, 0.00390625
        %v2396 = vmul.f32 %v2394, 0.00390625
        %s2397 = scalar_lea.vmem %s406, 16 [#allocation15]
        %2398 = vst.msk [vmem:[%s2397] sm:$0xff] %vm506, %v2395
        %2399 = vst.msk [vmem:[%s2397 + $0x8] sm:$0xff] %vm506, %v2396
        %2400 = vmatprep.subr.mxu0 0.0
        %2401 = vmatpush1.msra.mxu0 %v504
        %2402 = vmatprep.subr.mxu0 0.0
        %2403 = vmatpush1.msra.mxu0 %v505
        %2404 = vmatprep.subr.mxu0 0.0
        %2405 = vmatpush1.msra.mxu0 0.0
        %2406 = vmatprep.subr.mxu0 0.0
        %2407 = vmatpush1.msra.mxu0 0.0
        %2408 = vmatprep.subr.mxu0 0.0
        %2409 = vmatpush1.msra.mxu0 0.0
        %2410 = vmatprep.subr.mxu0 0.0
        %2411 = vmatpush1.msra.mxu0 0.0
        %2412 = vmatprep.subr.mxu0 0.0
        %2413 = vmatpush1.msra.mxu0 0.0
        %2414 = vmatprep.subr.mxu0 0.0
        %2415 = vmatpush1.msra.mxu0 0.0
        %2416 = vmatprep.subr.mxu0 0.0
        %2417 = vmatpush1.msra.mxu0 0.0
        %2418 = vmatprep.subr.mxu0 0.0
        %2419 = vmatpush1.msra.mxu0 0.0
        %2420 = vmatprep.subr.mxu0 0.0
        %2421 = vmatpush1.msra.mxu0 0.0
        %2422 = vmatprep.subr.mxu0 0.0
        %2423 = vmatpush1.msra.mxu0 0.0
        %2424 = vmatprep.subr.mxu0 0.0
        %2425 = vmatpush1.msra.mxu0 0.0
        %2426 = vmatprep.subr.mxu0 0.0
        %2427 = vmatpush1.msra.mxu0 0.0
        %2428 = vmatprep.subr.mxu0 0.0
        %2429 = vmatpush1.msra.mxu0 0.0
        %2430 = vmatprep.subr.mxu0 0.0
        %2431 = vmatpush1.msra.mxu0 0.0
        %2432 = vmatprep.subr.mxu0 0.0
        %2433 = vmatpush1.msra.mxu0 0.0
        %2434 = vmatprep.subr.mxu0 0.0
        %2435 = vmatpush1.msra.mxu0 0.0
        %2436 = vmatprep.subr.mxu0 0.0
        %2437 = vmatpush1.msra.mxu0 0.0
        %2438 = vmatprep.subr.mxu0 0.0
        %2439 = vmatpush1.msra.mxu0 0.0
        %2440 = vmatprep.subr.mxu0 0.0
        %2441 = vmatpush1.msra.mxu0 0.0
        %2442 = vmatprep.subr.mxu0 0.0
        %2443 = vmatpush1.msra.mxu0 0.0
        %2444 = vmatprep.subr.mxu0 0.0
        %2445 = vmatpush1.msra.mxu0 0.0
        %2446 = vmatprep.subr.mxu0 0.0
        %2447 = vmatpush1.msra.mxu0 0.0
        %2448 = vmatprep.subr.mxu0 0.0
        %2449 = vmatpush1.msra.mxu0 0.0
        %2450 = vmatprep.subr.mxu0 0.0
        %2451 = vmatpush1.msra.mxu0 0.0
        %2452 = vmatprep.subr.mxu0 0.0
        %2453 = vmatpush1.msra.mxu0 0.0
        %2454 = vmatprep.subr.mxu0 0.0
        %2455 = vmatpush1.msra.mxu0 0.0
        %2456 = vmatprep.subr.mxu0 0.0
        %2457 = vmatpush1.msra.mxu0 0.0
        %2458 = vmatprep.subr.mxu0 0.0
        %2459 = vmatpush1.msra.mxu0 0.0
        %2460 = vmatprep.subr.mxu0 0.0
        %2461 = vmatpush1.msra.mxu0 0.0
        %2462 = vmatprep.subr.mxu0 0.0
        %2463 = vmatpush1.msra.mxu0 0.0
        %2464 = vmatprep.mubr.f32.mxu0 0.0
        %2465 = vmatmul.mubr.f32.gmra.mrb[0].mxu0 %v508
        %v2466 = vpop.f32.mrb[0].mxu0
        %v2467 = vadd.f32 0.0, %v2466
        %v2468 = vpop.f32.mrb[0].mxu0
        %2469 = vmatprep.mubr.f32.mxu0 0.0
        %2470 = vmatmul.mubr.f32.gmra.mrb[0].mxu0 %v511
        %v2471 = vpop.f32.mrb[0].mxu0
        %v2472 = vadd.f32 0.0, %v2471
        %v2473 = vpop.f32.mrb[0].mxu0
        %2474 = vdwg.mxu0
        %2475 = vmatprep.subr.mxu0 0.0
        %2476 = vmatpush1.msra.mxu0 %v504
        %2477 = vmatprep.subr.mxu0 0.0
        %2478 = vmatpush1.msra.mxu0 %v505
        %2479 = vmatprep.subr.mxu0 0.0
        %2480 = vmatpush1.msra.mxu0 0.0
        %2481 = vmatprep.subr.mxu0 0.0
        %2482 = vmatpush1.msra.mxu0 0.0
        %2483 = vmatprep.subr.mxu0 0.0
        %2484 = vmatpush1.msra.mxu0 0.0
        %2485 = vmatprep.subr.mxu0 0.0
        %2486 = vmatpush1.msra.mxu0 0.0
        %2487 = vmatprep.subr.mxu0 0.0
        %2488 = vmatpush1.msra.mxu0 0.0
        %2489 = vmatprep.subr.mxu0 0.0
        %2490 = vmatpush1.msra.mxu0 0.0
        %2491 = vmatprep.subr.mxu0 0.0
        %2492 = vmatpush1.msra.mxu0 0.0
        %2493 = vmatprep.subr.mxu0 0.0
        %2494 = vmatpush1.msra.mxu0 0.0
        %2495 = vmatprep.subr.mxu0 0.0
        %2496 = vmatpush1.msra.mxu0 0.0
        %2497 = vmatprep.subr.mxu0 0.0
        %2498 = vmatpush1.msra.mxu0 0.0
        %2499 = vmatprep.subr.mxu0 0.0
        %2500 = vmatpush1.msra.mxu0 0.0
        %2501 = vmatprep.subr.mxu0 0.0
        %2502 = vmatpush1.msra.mxu0 0.0
        %2503 = vmatprep.subr.mxu0 0.0
        %2504 = vmatpush1.msra.mxu0 0.0
        %2505 = vmatprep.subr.mxu0 0.0
        %2506 = vmatpush1.msra.mxu0 0.0
        %2507 = vmatprep.subr.mxu0 0.0
        %2508 = vmatpush1.msra.mxu0 0.0
        %2509 = vmatprep.subr.mxu0 0.0
        %2510 = vmatpush1.msra.mxu0 0.0
        %2511 = vmatprep.subr.mxu0 0.0
        %2512 = vmatpush1.msra.mxu0 0.0
        %2513 = vmatprep.subr.mxu0 0.0
        %2514 = vmatpush1.msra.mxu0 0.0
        %2515 = vmatprep.subr.mxu0 0.0
        %2516 = vmatpush1.msra.mxu0 0.0
        %2517 = vmatprep.subr.mxu0 0.0
        %2518 = vmatpush1.msra.mxu0 0.0
        %2519 = vmatprep.subr.mxu0 0.0
        %2520 = vmatpush1.msra.mxu0 0.0
        %2521 = vmatprep.subr.mxu0 0.0
        %2522 = vmatpush1.msra.mxu0 0.0
        %2523 = vmatprep.subr.mxu0 0.0
        %2524 = vmatpush1.msra.mxu0 0.0
        %2525 = vmatprep.subr.mxu0 0.0
        %2526 = vmatpush1.msra.mxu0 0.0
        %2527 = vmatprep.subr.mxu0 0.0
        %2528 = vmatpush1.msra.mxu0 0.0
        %2529 = vmatprep.subr.mxu0 0.0
        %2530 = vmatpush1.msra.mxu0 0.0
        %2531 = vmatprep.subr.mxu0 0.0
        %2532 = vmatpush1.msra.mxu0 0.0
        %2533 = vmatprep.subr.mxu0 0.0
        %2534 = vmatpush1.msra.mxu0 0.0
        %2535 = vmatprep.subr.mxu0 0.0
        %2536 = vmatpush1.msra.mxu0 0.0
        %2537 = vmatprep.subr.mxu0 0.0
        %2538 = vmatpush1.msra.mxu0 0.0
        %2539 = vmatprep.mubr.f32.mxu0 0.0
        %2540 = vmatmul.mubr.f32.gmra.mrb[0].mxu0 %v589
        %v2541 = vpop.f32.mrb[0].mxu0
        %v2542 = vadd.f32 0.0, %v2541
        %v2543 = vpop.f32.mrb[0].mxu0
        %2544 = vmatprep.mubr.f32.mxu0 0.0
        %2545 = vmatmul.mubr.f32.gmra.mrb[0].mxu0 %v592
        %v2546 = vpop.f32.mrb[0].mxu0
        %v2547 = vadd.f32 0.0, %v2546
        %v2548 = vpop.f32.mrb[0].mxu0
        %2549 = vdwg.mxu0
        %v2551 = vsel %vm506, %v2467, 0
        %v2554 = vsel %vm506, %v2472, 0
        %2556 = vmatprep.subr.mxu0 0.0
        %2557 = vmatpush1.msra.mxu0 %v411
        %2558 = vmatprep.subr.mxu0 0.0
        %2559 = vmatpush1.msra.mxu0 %v412
        %2560 = vmatprep.subr.mxu0 0.0
        %2561 = vmatpush1.msra.mxu0 0.0
        %2562 = vmatprep.subr.mxu0 0.0
        %2563 = vmatpush1.msra.mxu0 0.0
        %2564 = vmatprep.subr.mxu0 0.0
        %2565 = vmatpush1.msra.mxu0 0.0
        %2566 = vmatprep.subr.mxu0 0.0
        %2567 = vmatpush1.msra.mxu0 0.0
        %2568 = vmatprep.subr.mxu0 0.0
        %2569 = vmatpush1.msra.mxu0 0.0
        %2570 = vmatprep.subr.mxu0 0.0
        %2571 = vmatpush1.msra.mxu0 0.0
        %2572 = vmatprep.subr.mxu0 0.0
        %2573 = vmatpush1.msra.mxu0 0.0
        %2574 = vmatprep.subr.mxu0 0.0
        %2575 = vmatpush1.msra.mxu0 0.0
        %2576 = vmatprep.subr.mxu0 0.0
        %2577 = vmatpush1.msra.mxu0 0.0
        %2578 = vmatprep.subr.mxu0 0.0
        %2579 = vmatpush1.msra.mxu0 0.0
        %2580 = vmatprep.subr.mxu0 0.0
        %2581 = vmatpush1.msra.mxu0 0.0
        %2582 = vmatprep.subr.mxu0 0.0
        %2583 = vmatpush1.msra.mxu0 0.0
        %2584 = vmatprep.subr.mxu0 0.0
        %2585 = vmatpush1.msra.mxu0 0.0
        %2586 = vmatprep.subr.mxu0 0.0
        %2587 = vmatpush1.msra.mxu0 0.0
        %2588 = vmatprep.subr.mxu0 0.0
        %2589 = vmatpush1.msra.mxu0 0.0
        %2590 = vmatprep.subr.mxu0 0.0
        %2591 = vmatpush1.msra.mxu0 0.0
        %2592 = vmatprep.subr.mxu0 0.0
        %2593 = vmatpush1.msra.mxu0 0.0
        %2594 = vmatprep.subr.mxu0 0.0
        %2595 = vmatpush1.msra.mxu0 0.0
        %2596 = vmatprep.subr.mxu0 0.0
        %2597 = vmatpush1.msra.mxu0 0.0
        %2598 = vmatprep.subr.mxu0 0.0
        %2599 = vmatpush1.msra.mxu0 0.0
        %2600 = vmatprep.subr.mxu0 0.0
        %2601 = vmatpush1.msra.mxu0 0.0
        %2602 = vmatprep.subr.mxu0 0.0
        %2603 = vmatpush1.msra.mxu0 0.0
        %2604 = vmatprep.subr.mxu0 0.0
        %2605 = vmatpush1.msra.mxu0 0.0
        %2606 = vmatprep.subr.mxu0 0.0
        %2607 = vmatpush1.msra.mxu0 0.0
        %2608 = vmatprep.subr.mxu0 0.0
        %2609 = vmatpush1.msra.mxu0 0.0
        %2610 = vmatprep.subr.mxu0 0.0
        %2611 = vmatpush1.msra.mxu0 0.0
        %2612 = vmatprep.subr.mxu0 0.0
        %2613 = vmatpush1.msra.mxu0 0.0
        %2614 = vmatprep.subr.mxu0 0.0
        %2615 = vmatpush1.msra.mxu0 0.0
        %2616 = vmatprep.subr.mxu0 0.0
        %2617 = vmatpush1.msra.mxu0 0.0
        %2618 = vmatprep.subr.mxu0 0.0
        %2619 = vmatpush1.msra.mxu0 0.0
        %2620 = vmatprep.mubr.f32.mxu0 0.0
        %2621 = vmatmul.mubr.f32.gmra.mrb[0].mxu0 %v2551
        %v2622 = vpop.f32.mrb[0].mxu0
        %v2623 = vadd.f32 0.0, %v2622
        %v2624 = vpop.f32.mrb[0].mxu0
        %2625 = vmatprep.mubr.f32.mxu0 0.0
        %2626 = vmatmul.mubr.f32.gmra.mrb[0].mxu0 %v2554
        %v2627 = vpop.f32.mrb[0].mxu0
        %v2628 = vadd.f32 0.0, %v2627
        %v2629 = vpop.f32.mrb[0].mxu0
        %2630 = vdwg.mxu0
        %v2632 = vsel %vm506, %v2542, 0
        %v2635 = vsel %vm506, %v2547, 0
        %2637 = vmatprep.subr.mxu0 0.0
        %2638 = vmatpush1.msra.mxu0 %v413
        %2639 = vmatprep.subr.mxu0 0.0
        %2640 = vmatpush1.msra.mxu0 %v414
        %2641 = vmatprep.subr.mxu0 0.0
        %2642 = vmatpush1.msra.mxu0 0.0
        %2643 = vmatprep.subr.mxu0 0.0
        %2644 = vmatpush1.msra.mxu0 0.0
        %2645 = vmatprep.subr.mxu0 0.0
        %2646 = vmatpush1.msra.mxu0 0.0
        %2647 = vmatprep.subr.mxu0 0.0
        %2648 = vmatpush1.msra.mxu0 0.0
        %2649 = vmatprep.subr.mxu0 0.0
        %2650 = vmatpush1.msra.mxu0 0.0
        %2651 = vmatprep.subr.mxu0 0.0
        %2652 = vmatpush1.msra.mxu0 0.0
        %2653 = vmatprep.subr.mxu0 0.0
        %2654 = vmatpush1.msra.mxu0 0.0
        %2655 = vmatprep.subr.mxu0 0.0
        %2656 = vmatpush1.msra.mxu0 0.0
        %2657 = vmatprep.subr.mxu0 0.0
        %2658 = vmatpush1.msra.mxu0 0.0
        %2659 = vmatprep.subr.mxu0 0.0
        %2660 = vmatpush1.msra.mxu0 0.0
        %2661 = vmatprep.subr.mxu0 0.0
        %2662 = vmatpush1.msra.mxu0 0.0
        %2663 = vmatprep.subr.mxu0 0.0
        %2664 = vmatpush1.msra.mxu0 0.0
        %2665 = vmatprep.subr.mxu0 0.0
        %2666 = vmatpush1.msra.mxu0 0.0
        %2667 = vmatprep.subr.mxu0 0.0
        %2668 = vmatpush1.msra.mxu0 0.0
        %2669 = vmatprep.subr.mxu0 0.0
        %2670 = vmatpush1.msra.mxu0 0.0
        %2671 = vmatprep.subr.mxu0 0.0
        %2672 = vmatpush1.msra.mxu0 0.0
        %2673 = vmatprep.subr.mxu0 0.0
        %2674 = vmatpush1.msra.mxu0 0.0
        %2675 = vmatprep.subr.mxu0 0.0
        %2676 = vmatpush1.msra.mxu0 0.0
        %2677 = vmatprep.subr.mxu0 0.0
        %2678 = vmatpush1.msra.mxu0 0.0
        %2679 = vmatprep.subr.mxu0 0.0
        %2680 = vmatpush1.msra.mxu0 0.0
        %2681 = vmatprep.subr.mxu0 0.0
        %2682 = vmatpush1.msra.mxu0 0.0
        %2683 = vmatprep.subr.mxu0 0.0
        %2684 = vmatpush1.msra.mxu0 0.0
        %2685 = vmatprep.subr.mxu0 0.0
        %2686 = vmatpush1.msra.mxu0 0.0
        %2687 = vmatprep.subr.mxu0 0.0
        %2688 = vmatpush1.msra.mxu0 0.0
        %2689 = vmatprep.subr.mxu0 0.0
        %2690 = vmatpush1.msra.mxu0 0.0
        %2691 = vmatprep.subr.mxu0 0.0
        %2692 = vmatpush1.msra.mxu0 0.0
        %2693 = vmatprep.subr.mxu0 0.0
        %2694 = vmatpush1.msra.mxu0 0.0
        %2695 = vmatprep.subr.mxu0 0.0
        %2696 = vmatpush1.msra.mxu0 0.0
        %2697 = vmatprep.subr.mxu0 0.0
        %2698 = vmatpush1.msra.mxu0 0.0
        %2699 = vmatprep.subr.mxu0 0.0
        %2700 = vmatpush1.msra.mxu0 0.0
        %2701 = vmatprep.mubr.f32.mxu0 0.0
        %2702 = vmatmul.mubr.f32.gmra.mrb[0].mxu0 %v2632
        %v2703 = vpop.f32.mrb[0].mxu0
        %v2704 = vadd.f32 0.0, %v2703
        %v2705 = vpop.f32.mrb[0].mxu0
        %2706 = vmatprep.mubr.f32.mxu0 0.0
        %2707 = vmatmul.mubr.f32.gmra.mrb[0].mxu0 %v2635
        %v2708 = vpop.f32.mrb[0].mxu0
        %v2709 = vadd.f32 0.0, %v2708
        %v2710 = vpop.f32.mrb[0].mxu0
        %2711 = vdwg.mxu0
        %v2712 = vsub.f32 %v2623, %v2704
        %v2713 = vsub.f32 %v2628, %v2709
        %2714 = vmatprep.subr.mxu0 0.0
        %2715 = vmatpush1.msra.mxu0 %v411
        %2716 = vmatprep.subr.mxu0 0.0
        %2717 = vmatpush1.msra.mxu0 %v412
        %2718 = vmatprep.subr.mxu0 0.0
        %2719 = vmatpush1.msra.mxu0 0.0
        %2720 = vmatprep.subr.mxu0 0.0
        %2721 = vmatpush1.msra.mxu0 0.0
        %2722 = vmatprep.subr.mxu0 0.0
        %2723 = vmatpush1.msra.mxu0 0.0
        %2724 = vmatprep.subr.mxu0 0.0
        %2725 = vmatpush1.msra.mxu0 0.0
        %2726 = vmatprep.subr.mxu0 0.0
        %2727 = vmatpush1.msra.mxu0 0.0
        %2728 = vmatprep.subr.mxu0 0.0
        %2729 = vmatpush1.msra.mxu0 0.0
        %2730 = vmatprep.subr.mxu0 0.0
        %2731 = vmatpush1.msra.mxu0 0.0
        %2732 = vmatprep.subr.mxu0 0.0
        %2733 = vmatpush1.msra.mxu0 0.0
        %2734 = vmatprep.subr.mxu0 0.0
        %2735 = vmatpush1.msra.mxu0 0.0
        %2736 = vmatprep.subr.mxu0 0.0
        %2737 = vmatpush1.msra.mxu0 0.0
        %2738 = vmatprep.subr.mxu0 0.0
        %2739 = vmatpush1.msra.mxu0 0.0
        %2740 = vmatprep.subr.mxu0 0.0
        %2741 = vmatpush1.msra.mxu0 0.0
        %2742 = vmatprep.subr.mxu0 0.0
        %2743 = vmatpush1.msra.mxu0 0.0
        %2744 = vmatprep.subr.mxu0 0.0
        %2745 = vmatpush1.msra.mxu0 0.0
        %2746 = vmatprep.subr.mxu0 0.0
        %2747 = vmatpush1.msra.mxu0 0.0
        %2748 = vmatprep.subr.mxu0 0.0
        %2749 = vmatpush1.msra.mxu0 0.0
        %2750 = vmatprep.subr.mxu0 0.0
        %2751 = vmatpush1.msra.mxu0 0.0
        %2752 = vmatprep.subr.mxu0 0.0
        %2753 = vmatpush1.msra.mxu0 0.0
        %2754 = vmatprep.subr.mxu0 0.0
        %2755 = vmatpush1.msra.mxu0 0.0
        %2756 = vmatprep.subr.mxu0 0.0
        %2757 = vmatpush1.msra.mxu0 0.0
        %2758 = vmatprep.subr.mxu0 0.0
        %2759 = vmatpush1.msra.mxu0 0.0
        %2760 = vmatprep.subr.mxu0 0.0
        %2761 = vmatpush1.msra.mxu0 0.0
        %2762 = vmatprep.subr.mxu0 0.0
        %2763 = vmatpush1.msra.mxu0 0.0
        %2764 = vmatprep.subr.mxu0 0.0
        %2765 = vmatpush1.msra.mxu0 0.0
        %2766 = vmatprep.subr.mxu0 0.0
        %2767 = vmatpush1.msra.mxu0 0.0
        %2768 = vmatprep.subr.mxu0 0.0
        %2769 = vmatpush1.msra.mxu0 0.0
        %2770 = vmatprep.subr.mxu0 0.0
        %2771 = vmatpush1.msra.mxu0 0.0
        %2772 = vmatprep.subr.mxu0 0.0
        %2773 = vmatpush1.msra.mxu0 0.0
        %2774 = vmatprep.subr.mxu0 0.0
        %2775 = vmatpush1.msra.mxu0 0.0
        %2776 = vmatprep.subr.mxu0 0.0
        %2777 = vmatpush1.msra.mxu0 0.0
        %2778 = vmatprep.mubr.f32.mxu0 0.0
        %2779 = vmatmul.mubr.f32.gmra.mrb[0].mxu0 %v2632
        %v2780 = vpop.f32.mrb[0].mxu0
        %v2781 = vadd.f32 0.0, %v2780
        %v2782 = vpop.f32.mrb[0].mxu0
        %2783 = vmatprep.mubr.f32.mxu0 0.0
        %2784 = vmatmul.mubr.f32.gmra.mrb[0].mxu0 %v2635
        %v2785 = vpop.f32.mrb[0].mxu0
        %v2786 = vadd.f32 0.0, %v2785
        %v2787 = vpop.f32.mrb[0].mxu0
        %2788 = vdwg.mxu0
        %2789 = vmatprep.subr.mxu0 0.0
        %2790 = vmatpush1.msra.mxu0 %v413
        %2791 = vmatprep.subr.mxu0 0.0
        %2792 = vmatpush1.msra.mxu0 %v414
        %2793 = vmatprep.subr.mxu0 0.0
        %2794 = vmatpush1.msra.mxu0 0.0
        %2795 = vmatprep.subr.mxu0 0.0
        %2796 = vmatpush1.msra.mxu0 0.0
        %2797 = vmatprep.subr.mxu0 0.0
        %2798 = vmatpush1.msra.mxu0 0.0
        %2799 = vmatprep.subr.mxu0 0.0
        %2800 = vmatpush1.msra.mxu0 0.0
        %2801 = vmatprep.subr.mxu0 0.0
        %2802 = vmatpush1.msra.mxu0 0.0
        %2803 = vmatprep.subr.mxu0 0.0
        %2804 = vmatpush1.msra.mxu0 0.0
        %2805 = vmatprep.subr.mxu0 0.0
        %2806 = vmatpush1.msra.mxu0 0.0
        %2807 = vmatprep.subr.mxu0 0.0
        %2808 = vmatpush1.msra.mxu0 0.0
        %2809 = vmatprep.subr.mxu0 0.0
        %2810 = vmatpush1.msra.mxu0 0.0
        %2811 = vmatprep.subr.mxu0 0.0
        %2812 = vmatpush1.msra.mxu0 0.0
        %2813 = vmatprep.subr.mxu0 0.0
        %2814 = vmatpush1.msra.mxu0 0.0
        %2815 = vmatprep.subr.mxu0 0.0
        %2816 = vmatpush1.msra.mxu0 0.0
        %2817 = vmatprep.subr.mxu0 0.0
        %2818 = vmatpush1.msra.mxu0 0.0
        %2819 = vmatprep.subr.mxu0 0.0
        %2820 = vmatpush1.msra.mxu0 0.0
        %2821 = vmatprep.subr.mxu0 0.0
        %2822 = vmatpush1.msra.mxu0 0.0
        %2823 = vmatprep.subr.mxu0 0.0
        %2824 = vmatpush1.msra.mxu0 0.0
        %2825 = vmatprep.subr.mxu0 0.0
        %2826 = vmatpush1.msra.mxu0 0.0
        %2827 = vmatprep.subr.mxu0 0.0
        %2828 = vmatpush1.msra.mxu0 0.0
        %2829 = vmatprep.subr.mxu0 0.0
        %2830 = vmatpush1.msra.mxu0 0.0
        %2831 = vmatprep.subr.mxu0 0.0
        %2832 = vmatpush1.msra.mxu0 0.0
        %2833 = vmatprep.subr.mxu0 0.0
        %2834 = vmatpush1.msra.mxu0 0.0
        %2835 = vmatprep.subr.mxu0 0.0
        %2836 = vmatpush1.msra.mxu0 0.0
        %2837 = vmatprep.subr.mxu0 0.0
        %2838 = vmatpush1.msra.mxu0 0.0
        %2839 = vmatprep.subr.mxu0 0.0
        %2840 = vmatpush1.msra.mxu0 0.0
        %2841 = vmatprep.subr.mxu0 0.0
        %2842 = vmatpush1.msra.mxu0 0.0
        %2843 = vmatprep.subr.mxu0 0.0
        %2844 = vmatpush1.msra.mxu0 0.0
        %2845 = vmatprep.subr.mxu0 0.0
        %2846 = vmatpush1.msra.mxu0 0.0
        %2847 = vmatprep.subr.mxu0 0.0
        %2848 = vmatpush1.msra.mxu0 0.0
        %2849 = vmatprep.subr.mxu0 0.0
        %2850 = vmatpush1.msra.mxu0 0.0
        %2851 = vmatprep.subr.mxu0 0.0
        %2852 = vmatpush1.msra.mxu0 0.0
        %2853 = vmatprep.mubr.f32.mxu0 0.0
        %2854 = vmatmul.mubr.f32.gmra.mrb[0].mxu0 %v2551
        %v2855 = vpop.f32.mrb[0].mxu0
        %v2856 = vadd.f32 %v2781, %v2855
        %v2857 = vpop.f32.mrb[0].mxu0
        %2858 = vmatprep.mubr.f32.mxu0 0.0
        %2859 = vmatmul.mubr.f32.gmra.mrb[0].mxu0 %v2554
        %v2860 = vpop.f32.mrb[0].mxu0
        %v2861 = vadd.f32 %v2786, %v2860
        %v2862 = vpop.f32.mrb[0].mxu0
        %2863 = vdwg.mxu0
        %v2864 = vsub.f32 0.0, %v2856
        %v2865 = vsub.f32 0.0, %v2861
        %v2866 = vmul.f32 %v2712, %v415
        %v2867 = vmul.f32 %v2713, %v416
        %v2868 = vmul.f32 %v2864, %v415
        %v2869 = vmul.f32 %v2865, %v416
        %2870 = vmatprep.subr.mxu0 0.0
        %2871 = vmatpush1.msra.mxu0 %v2866
        %2872 = vmatprep.subr.mxu0 0.0
        %2873 = vmatpush1.msra.mxu0 %v2867
        %2874 = vmatprep.subr.mxu0 0.0
        %2875 = vmatpush1.msra.mxu0 0.0
        %2876 = vmatprep.subr.mxu0 0.0
        %2877 = vmatpush1.msra.mxu0 0.0
        %2878 = vmatprep.subr.mxu0 0.0
        %2879 = vmatpush1.msra.mxu0 0.0
        %2880 = vmatprep.subr.mxu0 0.0
        %2881 = vmatpush1.msra.mxu0 0.0
        %2882 = vmatprep.subr.mxu0 0.0
        %2883 = vmatpush1.msra.mxu0 0.0
        %2884 = vmatprep.subr.mxu0 0.0
        %2885 = vmatpush1.msra.mxu0 0.0
        %2886 = vmatprep.subr.mxu0 0.0
        %2887 = vmatpush1.msra.mxu0 0.0
        %2888 = vmatprep.subr.mxu0 0.0
        %2889 = vmatpush1.msra.mxu0 0.0
        %2890 = vmatprep.subr.mxu0 0.0
        %2891 = vmatpush1.msra.mxu0 0.0
        %2892 = vmatprep.subr.mxu0 0.0
        %2893 = vmatpush1.msra.mxu0 0.0
        %2894 = vmatprep.subr.mxu0 0.0
        %2895 = vmatpush1.msra.mxu0 0.0
        %2896 = vmatprep.subr.mxu0 0.0
        %2897 = vmatpush1.msra.mxu0 0.0
        %2898 = vmatprep.subr.mxu0 0.0
        %2899 = vmatpush1.msra.mxu0 0.0
        %2900 = vmatprep.subr.mxu0 0.0
        %2901 = vmatpush1.msra.mxu0 0.0
        %2902 = vmatprep.subr.mxu0 0.0
        %2903 = vmatpush1.msra.mxu0 0.0
        %2904 = vmatprep.subr.mxu0 0.0
        %2905 = vmatpush1.msra.mxu0 0.0
        %2906 = vmatprep.subr.mxu0 0.0
        %2907 = vmatpush1.msra.mxu0 0.0
        %2908 = vmatprep.subr.mxu0 0.0
        %2909 = vmatpush1.msra.mxu0 0.0
        %2910 = vmatprep.subr.mxu0 0.0
        %2911 = vmatpush1.msra.mxu0 0.0
        %2912 = vmatprep.subr.mxu0 0.0
        %2913 = vmatpush1.msra.mxu0 0.0
        %2914 = vmatprep.subr.mxu0 0.0
        %2915 = vmatpush1.msra.mxu0 0.0
        %2916 = vmatprep.subr.mxu0 0.0
        %2917 = vmatpush1.msra.mxu0 0.0
        %2918 = vmatprep.subr.mxu0 0.0
        %2919 = vmatpush1.msra.mxu0 0.0
        %2920 = vmatprep.subr.mxu0 0.0
        %2921 = vmatpush1.msra.mxu0 0.0
        %2922 = vmatprep.subr.mxu0 0.0
        %2923 = vmatpush1.msra.mxu0 0.0
        %2924 = vmatprep.subr.mxu0 0.0
        %2925 = vmatpush1.msra.mxu0 0.0
        %2926 = vmatprep.subr.mxu0 0.0
        %2927 = vmatpush1.msra.mxu0 0.0
        %2928 = vmatprep.subr.mxu0 0.0
        %2929 = vmatpush1.msra.mxu0 0.0
        %2930 = vmatprep.subr.mxu0 0.0
        %2931 = vmatpush1.msra.mxu0 0.0
        %2932 = vmatprep.subr.mxu0 0.0
        %2933 = vmatpush1.msra.mxu0 0.0
        %2934 = vmatprep.mubr.f32.mxu0 0.0
        %2935 = vmatmul.mubr.f32.gmra.mrb[0].mxu0 %v508
        %v2936 = vpop.f32.mrb[0].mxu0
        %v2937 = vadd.f32 0.0, %v2936
        %v2938 = vpop.f32.mrb[0].mxu0
        %2939 = vmatprep.mubr.f32.mxu0 0.0
        %2940 = vmatmul.mubr.f32.gmra.mrb[0].mxu0 %v511
        %v2941 = vpop.f32.mrb[0].mxu0
        %v2942 = vadd.f32 0.0, %v2941
        %v2943 = vpop.f32.mrb[0].mxu0
        %2944 = vdwg.mxu0
        %2945 = vmatprep.subr.mxu0 0.0
        %2946 = vmatpush1.msra.mxu0 %v2868
        %2947 = vmatprep.subr.mxu0 0.0
        %2948 = vmatpush1.msra.mxu0 %v2869
        %2949 = vmatprep.subr.mxu0 0.0
        %2950 = vmatpush1.msra.mxu0 0.0
        %2951 = vmatprep.subr.mxu0 0.0
        %2952 = vmatpush1.msra.mxu0 0.0
        %2953 = vmatprep.subr.mxu0 0.0
        %2954 = vmatpush1.msra.mxu0 0.0
        %2955 = vmatprep.subr.mxu0 0.0
        %2956 = vmatpush1.msra.mxu0 0.0
        %2957 = vmatprep.subr.mxu0 0.0
        %2958 = vmatpush1.msra.mxu0 0.0
        %2959 = vmatprep.subr.mxu0 0.0
        %2960 = vmatpush1.msra.mxu0 0.0
        %2961 = vmatprep.subr.mxu0 0.0
        %2962 = vmatpush1.msra.mxu0 0.0
        %2963 = vmatprep.subr.mxu0 0.0
        %2964 = vmatpush1.msra.mxu0 0.0
        %2965 = vmatprep.subr.mxu0 0.0
        %2966 = vmatpush1.msra.mxu0 0.0
        %2967 = vmatprep.subr.mxu0 0.0
        %2968 = vmatpush1.msra.mxu0 0.0
        %2969 = vmatprep.subr.mxu0 0.0
        %2970 = vmatpush1.msra.mxu0 0.0
        %2971 = vmatprep.subr.mxu0 0.0
        %2972 = vmatpush1.msra.mxu0 0.0
        %2973 = vmatprep.subr.mxu0 0.0
        %2974 = vmatpush1.msra.mxu0 0.0
        %2975 = vmatprep.subr.mxu0 0.0
        %2976 = vmatpush1.msra.mxu0 0.0
        %2977 = vmatprep.subr.mxu0 0.0
        %2978 = vmatpush1.msra.mxu0 0.0
        %2979 = vmatprep.subr.mxu0 0.0
        %2980 = vmatpush1.msra.mxu0 0.0
        %2981 = vmatprep.subr.mxu0 0.0
        %2982 = vmatpush1.msra.mxu0 0.0
        %2983 = vmatprep.subr.mxu0 0.0
        %2984 = vmatpush1.msra.mxu0 0.0
        %2985 = vmatprep.subr.mxu0 0.0
        %2986 = vmatpush1.msra.mxu0 0.0
        %2987 = vmatprep.subr.mxu0 0.0
        %2988 = vmatpush1.msra.mxu0 0.0
        %2989 = vmatprep.subr.mxu0 0.0
        %2990 = vmatpush1.msra.mxu0 0.0
        %2991 = vmatprep.subr.mxu0 0.0
        %2992 = vmatpush1.msra.mxu0 0.0
        %2993 = vmatprep.subr.mxu0 0.0
        %2994 = vmatpush1.msra.mxu0 0.0
        %2995 = vmatprep.subr.mxu0 0.0
        %2996 = vmatpush1.msra.mxu0 0.0
        %2997 = vmatprep.subr.mxu0 0.0
        %2998 = vmatpush1.msra.mxu0 0.0
        %2999 = vmatprep.subr.mxu0 0.0
        %3000 = vmatpush1.msra.mxu0 0.0
        %3001 = vmatprep.subr.mxu0 0.0
        %3002 = vmatpush1.msra.mxu0 0.0
        %3003 = vmatprep.subr.mxu0 0.0
        %3004 = vmatpush1.msra.mxu0 0.0
        %3005 = vmatprep.subr.mxu0 0.0
        %3006 = vmatpush1.msra.mxu0 0.0
        %3007 = vmatprep.subr.mxu0 0.0
        %3008 = vmatpush1.msra.mxu0 0.0
        %3009 = vmatprep.mubr.f32.mxu0 0.0
        %3010 = vmatmul.mubr.f32.gmra.mrb[0].mxu0 %v589
        %v3011 = vpop.f32.mrb[0].mxu0
        %v3012 = vadd.f32 0.0, %v3011
        %v3013 = vpop.f32.mrb[0].mxu0
        %3014 = vmatprep.mubr.f32.mxu0 0.0
        %3015 = vmatmul.mubr.f32.gmra.mrb[0].mxu0 %v592
        %v3016 = vpop.f32.mrb[0].mxu0
        %v3017 = vadd.f32 0.0, %v3016
        %v3018 = vpop.f32.mrb[0].mxu0
        %3019 = vdwg.mxu0
        %v3020 = vsub.f32 %v2937, %v3012
        %v3021 = vsub.f32 %v2942, %v3017
        %3022 = vmatprep.subr.mxu0 0.0
        %3023 = vmatpush1.msra.mxu0 %v2866
        %3024 = vmatprep.subr.mxu0 0.0
        %3025 = vmatpush1.msra.mxu0 %v2867
        %3026 = vmatprep.subr.mxu0 0.0
        %3027 = vmatpush1.msra.mxu0 0.0
        %3028 = vmatprep.subr.mxu0 0.0
        %3029 = vmatpush1.msra.mxu0 0.0
        %3030 = vmatprep.subr.mxu0 0.0
        %3031 = vmatpush1.msra.mxu0 0.0
        %3032 = vmatprep.subr.mxu0 0.0
        %3033 = vmatpush1.msra.mxu0 0.0
        %3034 = vmatprep.subr.mxu0 0.0
        %3035 = vmatpush1.msra.mxu0 0.0
        %3036 = vmatprep.subr.mxu0 0.0
        %3037 = vmatpush1.msra.mxu0 0.0
        %3038 = vmatprep.subr.mxu0 0.0
        %3039 = vmatpush1.msra.mxu0 0.0
        %3040 = vmatprep.subr.mxu0 0.0
        %3041 = vmatpush1.msra.mxu0 0.0
        %3042 = vmatprep.subr.mxu0 0.0
        %3043 = vmatpush1.msra.mxu0 0.0
        %3044 = vmatprep.subr.mxu0 0.0
        %3045 = vmatpush1.msra.mxu0 0.0
        %3046 = vmatprep.subr.mxu0 0.0
        %3047 = vmatpush1.msra.mxu0 0.0
        %3048 = vmatprep.subr.mxu0 0.0
        %3049 = vmatpush1.msra.mxu0 0.0
        %3050 = vmatprep.subr.mxu0 0.0
        %3051 = vmatpush1.msra.mxu0 0.0
        %3052 = vmatprep.subr.mxu0 0.0
        %3053 = vmatpush1.msra.mxu0 0.0
        %3054 = vmatprep.subr.mxu0 0.0
        %3055 = vmatpush1.msra.mxu0 0.0
        %3056 = vmatprep.subr.mxu0 0.0
        %3057 = vmatpush1.msra.mxu0 0.0
        %3058 = vmatprep.subr.mxu0 0.0
        %3059 = vmatpush1.msra.mxu0 0.0
        %3060 = vmatprep.subr.mxu0 0.0
        %3061 = vmatpush1.msra.mxu0 0.0
        %3062 = vmatprep.subr.mxu0 0.0
        %3063 = vmatpush1.msra.mxu0 0.0
        %3064 = vmatprep.subr.mxu0 0.0
        %3065 = vmatpush1.msra.mxu0 0.0
        %3066 = vmatprep.subr.mxu0 0.0
        %3067 = vmatpush1.msra.mxu0 0.0
        %3068 = vmatprep.subr.mxu0 0.0
        %3069 = vmatpush1.msra.mxu0 0.0
        %3070 = vmatprep.subr.mxu0 0.0
        %3071 = vmatpush1.msra.mxu0 0.0
        %3072 = vmatprep.subr.mxu0 0.0
        %3073 = vmatpush1.msra.mxu0 0.0
        %3074 = vmatprep.subr.mxu0 0.0
        %3075 = vmatpush1.msra.mxu0 0.0
        %3076 = vmatprep.subr.mxu0 0.0
        %3077 = vmatpush1.msra.mxu0 0.0
        %3078 = vmatprep.subr.mxu0 0.0
        %3079 = vmatpush1.msra.mxu0 0.0
        %3080 = vmatprep.subr.mxu0 0.0
        %3081 = vmatpush1.msra.mxu0 0.0
        %3082 = vmatprep.subr.mxu0 0.0
        %3083 = vmatpush1.msra.mxu0 0.0
        %3084 = vmatprep.subr.mxu0 0.0
        %3085 = vmatpush1.msra.mxu0 0.0
        %3086 = vmatprep.mubr.f32.mxu0 0.0
        %3087 = vmatmul.mubr.f32.gmra.mrb[0].mxu0 %v589
        %v3088 = vpop.f32.mrb[0].mxu0
        %v3089 = vadd.f32 0.0, %v3088
        %v3090 = vpop.f32.mrb[0].mxu0
        %3091 = vmatprep.mubr.f32.mxu0 0.0
        %3092 = vmatmul.mubr.f32.gmra.mrb[0].mxu0 %v592
        %v3093 = vpop.f32.mrb[0].mxu0
        %v3094 = vadd.f32 0.0, %v3093
        %v3095 = vpop.f32.mrb[0].mxu0
        %3096 = vdwg.mxu0
        %3097 = vmatprep.subr.mxu0 0.0
        %3098 = vmatpush1.msra.mxu0 %v2868
        %3099 = vmatprep.subr.mxu0 0.0
        %3100 = vmatpush1.msra.mxu0 %v2869
        %3101 = vmatprep.subr.mxu0 0.0
        %3102 = vmatpush1.msra.mxu0 0.0
        %3103 = vmatprep.subr.mxu0 0.0
        %3104 = vmatpush1.msra.mxu0 0.0
        %3105 = vmatprep.subr.mxu0 0.0
        %3106 = vmatpush1.msra.mxu0 0.0
        %3107 = vmatprep.subr.mxu0 0.0
        %3108 = vmatpush1.msra.mxu0 0.0
        %3109 = vmatprep.subr.mxu0 0.0
        %3110 = vmatpush1.msra.mxu0 0.0
        %3111 = vmatprep.subr.mxu0 0.0
        %3112 = vmatpush1.msra.mxu0 0.0
        %3113 = vmatprep.subr.mxu0 0.0
        %3114 = vmatpush1.msra.mxu0 0.0
        %3115 = vmatprep.subr.mxu0 0.0
        %3116 = vmatpush1.msra.mxu0 0.0
        %3117 = vmatprep.subr.mxu0 0.0
        %3118 = vmatpush1.msra.mxu0 0.0
        %3119 = vmatprep.subr.mxu0 0.0
        %3120 = vmatpush1.msra.mxu0 0.0
        %3121 = vmatprep.subr.mxu0 0.0
        %3122 = vmatpush1.msra.mxu0 0.0
        %3123 = vmatprep.subr.mxu0 0.0
        %3124 = vmatpush1.msra.mxu0 0.0
        %3125 = vmatprep.subr.mxu0 0.0
        %3126 = vmatpush1.msra.mxu0 0.0
        %3127 = vmatprep.subr.mxu0 0.0
        %3128 = vmatpush1.msra.mxu0 0.0
        %3129 = vmatprep.subr.mxu0 0.0
        %3130 = vmatpush1.msra.mxu0 0.0
        %3131 = vmatprep.subr.mxu0 0.0
        %3132 = vmatpush1.msra.mxu0 0.0
        %3133 = vmatprep.subr.mxu0 0.0
        %3134 = vmatpush1.msra.mxu0 0.0
        %3135 = vmatprep.subr.mxu0 0.0
        %3136 = vmatpush1.msra.mxu0 0.0
        %3137 = vmatprep.subr.mxu0 0.0
        %3138 = vmatpush1.msra.mxu0 0.0
        %3139 = vmatprep.subr.mxu0 0.0
        %3140 = vmatpush1.msra.mxu0 0.0
        %3141 = vmatprep.subr.mxu0 0.0
        %3142 = vmatpush1.msra.mxu0 0.0
        %3143 = vmatprep.subr.mxu0 0.0
        %3144 = vmatpush1.msra.mxu0 0.0
        %3145 = vmatprep.subr.mxu0 0.0
        %3146 = vmatpush1.msra.mxu0 0.0
        %3147 = vmatprep.subr.mxu0 0.0
        %3148 = vmatpush1.msra.mxu0 0.0
        %3149 = vmatprep.subr.mxu0 0.0
        %3150 = vmatpush1.msra.mxu0 0.0
        %3151 = vmatprep.subr.mxu0 0.0
        %3152 = vmatpush1.msra.mxu0 0.0
        %3153 = vmatprep.subr.mxu0 0.0
        %3154 = vmatpush1.msra.mxu0 0.0
        %3155 = vmatprep.subr.mxu0 0.0
        %3156 = vmatpush1.msra.mxu0 0.0
        %3157 = vmatprep.subr.mxu0 0.0
        %3158 = vmatpush1.msra.mxu0 0.0
        %3159 = vmatprep.subr.mxu0 0.0
        %3160 = vmatpush1.msra.mxu0 0.0
        %3161 = vmatprep.mubr.f32.mxu0 0.0
        %3162 = vmatmul.mubr.f32.gmra.mrb[0].mxu0 %v508
        %v3163 = vpop.f32.mrb[0].mxu0
        %v3164 = vadd.f32 %v3089, %v3163
        %v3165 = vpop.f32.mrb[0].mxu0
        %3166 = vmatprep.mubr.f32.mxu0 0.0
        %3167 = vmatmul.mubr.f32.gmra.mrb[0].mxu0 %v511
        %v3168 = vpop.f32.mrb[0].mxu0
        %v3169 = vadd.f32 %v3094, %v3168
        %v3170 = vpop.f32.mrb[0].mxu0
        %3171 = vdwg.mxu0
        %v3173 = vsel %vm506, %v3020, 0
        %v3176 = vsel %vm506, %v3021, 0
        %3178 = vmatprep.subr.mxu0 0.0
        %3179 = vmatpush1.msra.mxu0 %v411
        %3180 = vmatprep.subr.mxu0 0.0
        %3181 = vmatpush1.msra.mxu0 %v412
        %3182 = vmatprep.subr.mxu0 0.0
        %3183 = vmatpush1.msra.mxu0 0.0
        %3184 = vmatprep.subr.mxu0 0.0
        %3185 = vmatpush1.msra.mxu0 0.0
        %3186 = vmatprep.subr.mxu0 0.0
        %3187 = vmatpush1.msra.mxu0 0.0
        %3188 = vmatprep.subr.mxu0 0.0
        %3189 = vmatpush1.msra.mxu0 0.0
        %3190 = vmatprep.subr.mxu0 0.0
        %3191 = vmatpush1.msra.mxu0 0.0
        %3192 = vmatprep.subr.mxu0 0.0
        %3193 = vmatpush1.msra.mxu0 0.0
        %3194 = vmatprep.subr.mxu0 0.0
        %3195 = vmatpush1.msra.mxu0 0.0
        %3196 = vmatprep.subr.mxu0 0.0
        %3197 = vmatpush1.msra.mxu0 0.0
        %3198 = vmatprep.subr.mxu0 0.0
        %3199 = vmatpush1.msra.mxu0 0.0
        %3200 = vmatprep.subr.mxu0 0.0
        %3201 = vmatpush1.msra.mxu0 0.0
        %3202 = vmatprep.subr.mxu0 0.0
        %3203 = vmatpush1.msra.mxu0 0.0
        %3204 = vmatprep.subr.mxu0 0.0
        %3205 = vmatpush1.msra.mxu0 0.0
        %3206 = vmatprep.subr.mxu0 0.0
        %3207 = vmatpush1.msra.mxu0 0.0
        %3208 = vmatprep.subr.mxu0 0.0
        %3209 = vmatpush1.msra.mxu0 0.0
        %3210 = vmatprep.subr.mxu0 0.0
        %3211 = vmatpush1.msra.mxu0 0.0
        %3212 = vmatprep.subr.mxu0 0.0
        %3213 = vmatpush1.msra.mxu0 0.0
        %3214 = vmatprep.subr.mxu0 0.0
        %3215 = vmatpush1.msra.mxu0 0.0
        %3216 = vmatprep.subr.mxu0 0.0
        %3217 = vmatpush1.msra.mxu0 0.0
        %3218 = vmatprep.subr.mxu0 0.0
        %3219 = vmatpush1.msra.mxu0 0.0
        %3220 = vmatprep.subr.mxu0 0.0
        %3221 = vmatpush1.msra.mxu0 0.0
        %3222 = vmatprep.subr.mxu0 0.0
        %3223 = vmatpush1.msra.mxu0 0.0
        %3224 = vmatprep.subr.mxu0 0.0
        %3225 = vmatpush1.msra.mxu0 0.0
        %3226 = vmatprep.subr.mxu0 0.0
        %3227 = vmatpush1.msra.mxu0 0.0
        %3228 = vmatprep.subr.mxu0 0.0
        %3229 = vmatpush1.msra.mxu0 0.0
        %3230 = vmatprep.subr.mxu0 0.0
        %3231 = vmatpush1.msra.mxu0 0.0
        %3232 = vmatprep.subr.mxu0 0.0
        %3233 = vmatpush1.msra.mxu0 0.0
        %3234 = vmatprep.subr.mxu0 0.0
        %3235 = vmatpush1.msra.mxu0 0.0
        %3236 = vmatprep.subr.mxu0 0.0
        %3237 = vmatpush1.msra.mxu0 0.0
        %3238 = vmatprep.subr.mxu0 0.0
        %3239 = vmatpush1.msra.mxu0 0.0
        %3240 = vmatprep.subr.mxu0 0.0
        %3241 = vmatpush1.msra.mxu0 0.0
        %3242 = vmatprep.mubr.f32.mxu0 0.0
        %3243 = vmatmul.mubr.f32.gmra.mrb[0].mxu0 %v3173
        %v3244 = vpop.f32.mrb[0].mxu0
        %v3245 = vadd.f32 0.0, %v3244
        %v3246 = vpop.f32.mrb[0].mxu0
        %3247 = vmatprep.mubr.f32.mxu0 0.0
        %3248 = vmatmul.mubr.f32.gmra.mrb[0].mxu0 %v3176
        %v3249 = vpop.f32.mrb[0].mxu0
        %v3250 = vadd.f32 0.0, %v3249
        %v3251 = vpop.f32.mrb[0].mxu0
        %3252 = vdwg.mxu0
        %v3254 = vsel %vm506, %v3164, 0
        %v3257 = vsel %vm506, %v3169, 0
        %3259 = vmatprep.subr.mxu0 0.0
        %3260 = vmatpush1.msra.mxu0 %v413
        %3261 = vmatprep.subr.mxu0 0.0
        %3262 = vmatpush1.msra.mxu0 %v414
        %3263 = vmatprep.subr.mxu0 0.0
        %3264 = vmatpush1.msra.mxu0 0.0
        %3265 = vmatprep.subr.mxu0 0.0
        %3266 = vmatpush1.msra.mxu0 0.0
        %3267 = vmatprep.subr.mxu0 0.0
        %3268 = vmatpush1.msra.mxu0 0.0
        %3269 = vmatprep.subr.mxu0 0.0
        %3270 = vmatpush1.msra.mxu0 0.0
        %3271 = vmatprep.subr.mxu0 0.0
        %3272 = vmatpush1.msra.mxu0 0.0
        %3273 = vmatprep.subr.mxu0 0.0
        %3274 = vmatpush1.msra.mxu0 0.0
        %3275 = vmatprep.subr.mxu0 0.0
        %3276 = vmatpush1.msra.mxu0 0.0
        %3277 = vmatprep.subr.mxu0 0.0
        %3278 = vmatpush1.msra.mxu0 0.0
        %3279 = vmatprep.subr.mxu0 0.0
        %3280 = vmatpush1.msra.mxu0 0.0
        %3281 = vmatprep.subr.mxu0 0.0
        %3282 = vmatpush1.msra.mxu0 0.0
        %3283 = vmatprep.subr.mxu0 0.0
        %3284 = vmatpush1.msra.mxu0 0.0
        %3285 = vmatprep.subr.mxu0 0.0
        %3286 = vmatpush1.msra.mxu0 0.0
        %3287 = vmatprep.subr.mxu0 0.0
        %3288 = vmatpush1.msra.mxu0 0.0
        %3289 = vmatprep.subr.mxu0 0.0
        %3290 = vmatpush1.msra.mxu0 0.0
        %3291 = vmatprep.subr.mxu0 0.0
        %3292 = vmatpush1.msra.mxu0 0.0
        %3293 = vmatprep.subr.mxu0 0.0
        %3294 = vmatpush1.msra.mxu0 0.0
        %3295 = vmatprep.subr.mxu0 0.0
        %3296 = vmatpush1.msra.mxu0 0.0
        %3297 = vmatprep.subr.mxu0 0.0
        %3298 = vmatpush1.msra.mxu0 0.0
        %3299 = vmatprep.subr.mxu0 0.0
        %3300 = vmatpush1.msra.mxu0 0.0
        %3301 = vmatprep.subr.mxu0 0.0
        %3302 = vmatpush1.msra.mxu0 0.0
        %3303 = vmatprep.subr.mxu0 0.0
        %3304 = vmatpush1.msra.mxu0 0.0
        %3305 = vmatprep.subr.mxu0 0.0
        %3306 = vmatpush1.msra.mxu0 0.0
        %3307 = vmatprep.subr.mxu0 0.0
        %3308 = vmatpush1.msra.mxu0 0.0
        %3309 = vmatprep.subr.mxu0 0.0
        %3310 = vmatpush1.msra.mxu0 0.0
        %3311 = vmatprep.subr.mxu0 0.0
        %3312 = vmatpush1.msra.mxu0 0.0
        %3313 = vmatprep.subr.mxu0 0.0
        %3314 = vmatpush1.msra.mxu0 0.0
        %3315 = vmatprep.subr.mxu0 0.0
        %3316 = vmatpush1.msra.mxu0 0.0
        %3317 = vmatprep.subr.mxu0 0.0
        %3318 = vmatpush1.msra.mxu0 0.0
        %3319 = vmatprep.subr.mxu0 0.0
        %3320 = vmatpush1.msra.mxu0 0.0
        %3321 = vmatprep.subr.mxu0 0.0
        %3322 = vmatpush1.msra.mxu0 0.0
        %3323 = vmatprep.mubr.f32.mxu0 0.0
        %3324 = vmatmul.mubr.f32.gmra.mrb[0].mxu0 %v3254
        %v3325 = vpop.f32.mrb[0].mxu0
        %v3326 = vadd.f32 0.0, %v3325
        %v3327 = vpop.f32.mrb[0].mxu0
        %3328 = vmatprep.mubr.f32.mxu0 0.0
        %3329 = vmatmul.mubr.f32.gmra.mrb[0].mxu0 %v3257
        %v3330 = vpop.f32.mrb[0].mxu0
        %v3331 = vadd.f32 0.0, %v3330
        %v3332 = vpop.f32.mrb[0].mxu0
        %3333 = vdwg.mxu0
        %v3334 = vsub.f32 %v3245, %v3326
        %v3335 = vsub.f32 %v3250, %v3331
        %v3336 = vmul.f32 %v3334, 0.00390625
        %v3337 = vmul.f32 %v3335, 0.00390625
        %s3338 = scalar_lea.vmem %s406, 32 [#allocation15]
        %3339 = vst.msk [vmem:[%s3338] sm:$0xff] %vm506, %v3336
        %3340 = vst.msk [vmem:[%s3338 + $0x8] sm:$0xff] %vm506, %v3337
        %s3341 = sand.u32 %s210, 1
        %s3342 = scalar_lea.sflag [#allocation4], %s3341
        %s3343 = sand.u32 %s210, 1
        %s3344 = smul.addr %s3343, 48
        %s3345 = scalar_lea.vmem [#allocation15], %s3344
        // Predicated region
        $region81: #{tpu_custom_call.1} parent=51 // pred_check
          %p3346 = pneg %p220
        $region82: #{tpu_custom_call.1} parent=51 // pred_check_branch
          %3348 = sbr.rel (%p3346) target = $region84
        $region83: #{tpu_custom_call.1} parent=51 // pred_region
          %s3350 = ssub.s32 768, 768
          %3351 = vsyncadd %s3342, %s3350
          %s3352 = smul.addr %s29, 6
          %s3353 = smul.addr %s3352, 128
          %s3354 = scalar_lea.hbm %s8, %s3353
          %s3355 = sshll.u32 %s3345, 4
          %s3356 = int_to_ptr.vmem [resolvable:$true] %s3355
          %3361 = dma.vmem_to_hbm [thread:$0]  %s3356, 768, %s3354, %s3342, 128, 128, 8
        $region84: #{tpu_custom_call.1} parent=51 // pred_fallthru
          _
      $region52: #{tpu_custom_call.1} parent=5 // pred_fallthru
        _
      %p3362 = scmp.le.s32.totalorder 2, %s24
      // Predicated region
      $region85: #{tpu_custom_call.1} parent=5 // pred_check
        %p3363 = pneg %p3362
      $region86: #{tpu_custom_call.1} parent=5 // pred_check_branch
        %3365 = sbr.rel (%p3363) target = $region88
      $region87: #{tpu_custom_call.1} parent=5 // pred_region
        %s3366 = ssub.s32 %s24, 2
        // Predicated region
        $region89: #{tpu_custom_call.1} parent=87 // pred_check
          %p3367 = pneg %p226
        $region90: #{tpu_custom_call.1} parent=87 // pred_check_branch
          %3369 = sbr.rel (%p3367) target = $region92
        $region91: #{tpu_custom_call.1} parent=87 // pred_region
          %s3370 = sand.u32 %s211, 1
          %s3371 = scalar_lea.sflag [#allocation4], %s3370
          %s3372 = sand.u32 %s211, 1
          %s3373 = smul.addr %s3372, 48
          %s3374 = scalar_lea.vmem [#allocation15], %s3373
          %3375 = dma.done %s3371, 768
        $region92: #{tpu_custom_call.1} parent=87 // pred_fallthru
          _
      $region88: #{tpu_custom_call.1} parent=5 // pred_fallthru
        _
    $region6: #{tpu_custom_call.1} parent=1 // loop_footer
      %s28 = sadd.s32 1, %s24
    $region7: #{tpu_custom_call.1} parent=1 // loop_footer_branch
      %23 = sbr.rel target = $region3
    $region8: #{tpu_custom_call.1} parent=1 // loop_exit
      _
    %3376 = vsyncpa [#allocation3], 1
    %s3377 = scalar_lea.sflag [#allocation3], 1
    %3378 = vsyncpa %s3377, 1
    %3379 = vsyncpa [#allocation10], 1
    %3380 = vsyncpa [#allocation13], 1
    %3381 = vsyncpa [#allocation4], 1
    %s3382 = scalar_lea.sflag [#allocation4], 1
    %3383 = vsyncpa %s3382, 1
    %3384 = vsyncpa [#allocation5], 1
    %s3385 = scalar_lea.sflag [#allocation5], 1
    %3386 = vsyncpa %s3385, 1
    %3387 = vsyncpa [#allocation6], 1
    %s3388 = scalar_lea.sflag [#allocation6], 1
    %3389 = vsyncpa %s3388, 1

</llo_original>
